<compile_context>
chip_gen: v7x
topology: tpu7x:2x2x1
jax: 0.10.0
libtpu: 0.0.40
codegen_flags: <defaults>
</compile_context>

<pallas_src>
import functools
import math

import jax
import jax.numpy as jnp
from jax.experimental import pallas as pl
from jax.experimental.pallas import tpu as pltpu

BIN_SIZES = (1, 2, 4, 6)
BN_EPS = 1e-5
LANE = 128
ROW_ALIGN = 16  # safe sublane granularity for bf16-packed rows


def _round_up(x, m):
    return ((x + m - 1) // m) * m


def _choose_tile(dim, cap):
    """Largest multiple of 128 <= cap that is not much larger than dim."""
    t = min(cap, _round_up(dim, LANE))
    return max(LANE, (t // LANE) * LANE)


def _vmem_budget_bytes():
    # ~45% of physical VMEM: ~28 MiB on v7x (64 MiB), ~57 MiB on v5e/v6e.
    cap = 128 * 1024 * 1024
    try:
        cap = int(getattr(pltpu.get_tpu_info(), "vmem_capacity_bytes", cap))
    except Exception:
        pass
    return int(cap * 0.45)


# ----------------------------------------------------------------------------
# Pallas kernel: fused 1x1 conv (all four pyramid stages) + BN + ReLU
# ----------------------------------------------------------------------------
def _stage_matmul_kernel(x_ref, w_ref, scale_ref, shift_ref, o_ref, acc_ref):
    # x:(M, tk) bf16, w:(tk, tn) bf16, scale/shift:(1, tn) f32 -> o:(M, tn)
    k = pl.program_id(1)

    @pl.when(k == 0)
    def _():
        acc_ref[...] = jnp.zeros_like(acc_ref)

    acc_ref[...] += jnp.dot(x_ref[...], w_ref[...],
                            preferred_element_type=jnp.float32)

    @pl.when(k == pl.num_programs(1) - 1)
    def _():
        y = acc_ref[...] * scale_ref[...] + shift_ref[...]   # f32 epilogue
        o_ref[...] = jnp.maximum(y, 0.0).astype(o_ref.dtype)


def fused_stage_conv1x1(pooled_rows, w_cat, scale_cat, shift_cat):
    """One launch for all four pyramid stages: ReLU(BN(pooled @ W_cat)).

    pooled_rows : (M, Cin)  pooled pixels of all bins, stacked
    w_cat       : (Cin, Ctot) the four 1x1 weights concatenated along Cout
    scale/shift : (Ctot,) folded BN
    returns (M, Ctot) bf16
    """
    M, Cin = pooled_rows.shape
    Ctot = w_cat.shape[1]

    tn = _choose_tile(Ctot, 512)
    tk = _choose_tile(Cin, 512)
    m_pad = _round_up(max(M, ROW_ALIGN), ROW_ALIGN)
    cin_p = _round_up(Cin, tk)
    ctot_p = _round_up(Ctot, tn)

    x = jnp.pad(pooled_rows.astype(jnp.bfloat16),
                ((0, m_pad - M), (0, cin_p - Cin)))
    w = jnp.pad(w_cat.astype(jnp.bfloat16),
                ((0, cin_p - Cin), (0, ctot_p - Ctot)))
    scale = jnp.pad(scale_cat.astype(jnp.float32),
                    (0, ctot_p - Ctot)).reshape(1, ctot_p)
    shift = jnp.pad(shift_cat.astype(jnp.float32),
                    (0, ctot_p - Ctot)).reshape(1, ctot_p)

    ws = (2 * m_pad * tk * 2 + 2 * tk * tn * 2 + 2 * m_pad * tn * 2
          + m_pad * tn * 4 + 4 * tn * 4)
    cost = pl.CostEstimate(
        flops=2 * m_pad * cin_p * ctot_p,
        transcendentals=0,
        bytes_accessed=2 * (m_pad * cin_p + cin_p * ctot_p + m_pad * ctot_p))

    out = pl.pallas_call(
        _stage_matmul_kernel,
        out_shape=jax.ShapeDtypeStruct((m_pad, ctot_p), jnp.bfloat16),
        grid=(ctot_p // tn, cin_p // tk),
        in_specs=[
            pl.BlockSpec((m_pad, tk), lambda j, k: (0, k)),
            pl.BlockSpec((tk, tn), lambda j, k: (k, j)),
            pl.BlockSpec((1, tn), lambda j, k: (0, j)),
            pl.BlockSpec((1, tn), lambda j, k: (0, j)),
        ],
        out_specs=pl.BlockSpec((m_pad, tn), lambda j, k: (0, j)),
        scratch_shapes=[pltpu.VMEM((m_pad, tn), jnp.float32)],
        compiler_params=pltpu.CompilerParams(
            dimension_semantics=("parallel", "arbitrary"),
            vmem_limit_bytes=int(min(64 * 2**20, max(2 * ws, 32 * 2**20)))),
        cost_estimate=cost,
    )(x, w, scale, shift)
    return out[:M, :Ctot]


# ----------------------------------------------------------------------------
# Pallas kernel: bottleneck 3x3 conv (padding=1, no bias) + BN + ReLU
# ----------------------------------------------------------------------------
def _conv3x3_kernel(x_ref, w_ref, scale_ref, shift_ref, o_ref, acc_ref,
                    *, tap_offsets, tm, dynamic_rows):
    # x_ref : (Lpad, tk) bf16   flattened, spatially zero-padded image slab
    # w_ref : (9, tk, tn) bf16  the 9 taps' weight slices for this (k, j)
    # scale/shift : (1, tn) f32; o_ref, acc_ref : (tm, tn) f32
    k = pl.program_id(3)

    @pl.when(k == 0)
    def _():
        acc_ref[...] = jnp.zeros_like(acc_ref)

    if dynamic_rows:
        base = pl.multiple_of(pl.program_id(1) * tm, 8)
    else:
        base = 0  # single row tile: purely static tap offsets

    # Nine constant-offset row slices -> pure MXU accumulation (no reshapes).
    for t, off in enumerate(tap_offsets):
        patch = x_ref[pl.ds(base + off, tm), :]
        acc_ref[...] += jnp.dot(patch, w_ref[t],
                                preferred_element_type=jnp.float32)

    @pl.when(k == pl.num_programs(3) - 1)
    def _():
        y = acc_ref[...] * scale_ref[...] + shift_ref[...]   # f32 epilogue
        o_ref[...] = jnp.maximum(y, 0.0).astype(o_ref.dtype)


def conv3x3_bn_relu(x_nhwc, w, scale, shift):
    """Fused 3x3 conv (padding=1, bias=False) + folded BN + ReLU, NHWC."""
    N, H, W, Cin = x_nhwc.shape
    Cout = w.shape[-1]
    Wp = W + 2                   # padded width
    M = H * Wp                   # output rows incl. 2 throwaway cols per row

    budget = _vmem_budget_bytes()
    tm = min(512, _round_up(M, ROW_ALIGN))
    tn = _choose_tile(Cout, 256)
    cap_k = 512
    while True:
        tk = _choose_tile(Cin, cap_k)
        m_pad = _round_up(M, tm)
        l_pad = _round_up(m_pad + 2 * Wp + 2, ROW_ALIGN)
        ws = (2 * l_pad * tk * 2        # double-buffered bf16 activation slab
              + 2 * 9 * tk * tn * 2     # double-buffered bf16 weight slab
              + 2 * tm * tn * 4         # double-buffered f32 output tile
              + tm * tn * 4             # f32 accumulator scratch
              + 4 * tn * 4)             # scale/shift
        if ws <= budget or cap_k <= LANE:
            break
        cap_k //= 2

    cin_p = _round_up(Cin, tk)
    cout_p = _round_up(Cout, tn)

    # Zero-pad spatially and flatten: tap (dy,dx) of flat output row q reads
    # flat input row q + dy*(W+2) + dx, so every tap is a constant offset.
    # TODO(synk): build this slab on the fly inside the kernel from the
    # pyramid sources to remove the concat/pad HBM round trip entirely.
    xp = jnp.pad(x_nhwc.astype(jnp.bfloat16), ((0, 0), (1, 1), (1, 1), (0, 0)))
    L = (H + 2) * Wp
    xf = jnp.pad(xp.reshape(N, L, Cin),
                 ((0, 0), (0, l_pad - L), (0, cin_p - Cin)))

    wf = jnp.pad(w.reshape(9, Cin, Cout).astype(jnp.bfloat16),
                 ((0, 0), (0, cin_p - Cin), (0, cout_p - Cout)))
    scale_p = jnp.pad(scale.astype(jnp.float32),
                      (0, cout_p - Cout)).reshape(1, cout_p)
    shift_p = jnp.pad(shift.astype(jnp.float32),
                      (0, cout_p - Cout)).reshape(1, cout_p)

    taps = tuple(dy * Wp + dx for dy in range(3) for dx in range(3))
    num_row_tiles = m_pad // tm
    grid = (N, num_row_tiles, cout_p // tn, cin_p // tk)

    cost = pl.CostEstimate(
        flops=2 * 9 * N * m_pad * cin_p * cout_p,
        transcendentals=0,
        bytes_accessed=(2 * N * l_pad * cin_p + 2 * 9 * cin_p * cout_p
                        + 4 * N * m_pad * cout_p))

    kern = functools.partial(_conv3x3_kernel, tap_offsets=taps, tm=tm,
                             dynamic_rows=num_row_tiles > 1)
    out = pl.pallas_call(
        kern,
        out_shape=jax.ShapeDtypeStruct((N, m_pad, cout_p), jnp.float32),
        grid=grid,
        in_specs=[
            # activation slab: block index independent of row/Cout tiles
            pl.BlockSpec((None, l_pad, tk), lambda n, i, j, k: (n, 0, k)),
            # weight slab: block index independent of batch/row tiles
            pl.BlockSpec((9, tk, tn), lambda n, i, j, k: (0, k, j)),
            pl.BlockSpec((1, tn), lambda n, i, j, k: (0, j)),
            pl.BlockSpec((1, tn), lambda n, i, j, k: (0, j)),
        ],
        out_specs=pl.BlockSpec((None, tm, tn), lambda n, i, j, k: (n, i, j)),
        scratch_shapes=[pltpu.VMEM((tm, tn), jnp.float32)],
        compiler_params=pltpu.CompilerParams(
            dimension_semantics=("parallel", "parallel", "parallel",
                                 "arbitrary"),
            vmem_limit_bytes=int(min(64 * 2**20, max(2 * ws, 32 * 2**20)))),
        cost_estimate=cost,
    )(xf, wf, scale_p, shift_p)

    out = out[:, :M, :Cout].reshape(N, H, Wp, Cout)
    return out[:, :, :W, :]


# ----------------------------------------------------------------------------
# Plain-JAX glue (tiny matrices, shape plumbing)
# ----------------------------------------------------------------------------
def _pool_matrix(in_size, bin_sizes):
    """Stacked averaging matrices for all adaptive-pool bins (PyTorch bounds)."""
    rows = []
    for b in bin_sizes:
        for r in range(b):
            s = (r * in_size) // b
            e = -(-((r + 1) * in_size) // b)
            row = [0.0] * in_size
            for t in range(s, e):
                row[t] = 1.0 / (e - s)
            rows.append(row)
    return jnp.array(rows, jnp.float32)            # (sum(bins), in_size)


def _bilinear_matrix(out_size, in_size):
    """F.interpolate(mode='bilinear', align_corners=True) along one axis."""
    if in_size == 1:
        return jnp.ones((out_size, 1), jnp.float32)
    scale = (in_size - 1) / (out_size - 1) if out_size > 1 else 0.0
    mat = [[0.0] * in_size for _ in range(out_size)]
    for o in range(out_size):
        src = o * scale
        i0 = min(int(math.floor(src)), in_size - 1)
        i1 = min(i0 + 1, in_size - 1)
        f = src - i0
        mat[o][i0] += 1.0 - f
        mat[o][i1] += f
    return jnp.array(mat, jnp.float32)


def fold_bn(bn):
    scale = bn["gamma"] / jnp.sqrt(bn["var"] + BN_EPS)
    shift = bn["beta"] - bn["mean"] * scale
    return scale, shift


# ----------------------------------------------------------------------------
# Parameters & forward
# ----------------------------------------------------------------------------
def _init_bn(key, c):
    k = jax.random.split(key, 4)
    return {
        "gamma": 1.0 + 0.1 * jax.random.normal(k[0], (c,), jnp.float32),
        "beta": 0.1 * jax.random.normal(k[1], (c,), jnp.float32),
        "mean": 0.1 * jax.random.normal(k[2], (c,), jnp.float32),
        "var": jnp.abs(jax.random.normal(k[3], (c,), jnp.float32)) + 0.5,
    }


def init_params(key, in_channels, bin_sizes=BIN_SIZES):
    out_channels = in_channels // len(bin_sizes)
    keys = jax.random.split(key, len(bin_sizes) + 1)
    stages = []
    for i, _ in enumerate(bin_sizes):
        kw, kbn = jax.random.split(keys[i])
        stages.append({
            "w": 0.1 * jax.random.normal(kw, (in_channels, out_channels),
                                         jnp.float32),
            "bn": _init_bn(kbn, out_channels),
        })
    kw, kbn = jax.random.split(keys[-1])
    cat_c = in_channels + out_channels * len(bin_sizes)
    return {
        "stages": stages,
        "bottleneck_w": 0.05 * jax.random.normal(
            kw, (3, 3, cat_c, in_channels), jnp.float32),
        "bottleneck_bn": _init_bn(kbn, in_channels),
    }


def psp_forward(x_nchw, params, bin_sizes=BIN_SIZES):
    x = jnp.transpose(x_nchw, (0, 2, 3, 1)).astype(jnp.float32)   # NHWC
    N, H, W, C = x.shape
    cout_stage = C // len(bin_sizes)

    # --- all adaptive avg-pools in one pass over x (stacked pool matrices) ---
    ph = _pool_matrix(H, bin_sizes)
    pw = _pool_matrix(W, bin_sizes)
    pooled_all = jnp.einsum("ph,qw,nhwc->npqc", ph, pw, x)   # (N, 13, 13, C)

    offs, o = [], 0
    for b in bin_sizes:
        offs.append(o)
        o += b

    stacked, row_slices, r0 = [], [], 0
    for b, ob in zip(bin_sizes, offs):
        blk = pooled_all[:, ob:ob + b, ob:ob + b, :].reshape(N * b * b, C)
        stacked.append(blk)
        row_slices.append((r0, N * b * b))
        r0 += N * b * b
    pooled_rows = jnp.concatenate(stacked, axis=0)            # (57N, C)

    # --- all four 1x1 conv + BN + ReLU stages in one Pallas launch ---
    w_cat = jnp.concatenate([p["w"] for p in params["stages"]], axis=1)
    sc, sh = zip(*(fold_bn(p["bn"]) for p in params["stages"]))
    y_all = fused_stage_conv1x1(pooled_rows, w_cat,
                                jnp.concatenate(sc), jnp.concatenate(sh))

    # --- bilinear upsample (align_corners=True) each stage, build pyramid ---
    pyramids = [x.astype(jnp.bfloat16)]
    for s, (b, (rs, nrows)) in enumerate(zip(bin_sizes, row_slices)):
        y = y_all[rs:rs + nrows, s * cout_stage:(s + 1) * cout_stage]
        y = y.reshape(N, b, b, cout_stage).astype(jnp.float32)
        wh = _bilinear_matrix(H, b)
        ww = _bilinear_matrix(W, b)
        up = jnp.einsum("hi,wj,nijc->nhwc", wh, ww, y)
        pyramids.append(up.astype(jnp.bfloat16))
    cat = jnp.concatenate(pyramids, axis=-1)                  # (N,H,W,2C) bf16

    # --- bottleneck: 3x3 conv + BN + ReLU; Dropout2d = inference identity ---
    scale, shift = fold_bn(params["bottleneck_bn"])
    out = conv3x3_bn_relu(cat, params["bottleneck_w"], scale, shift)
    return jnp.transpose(out, (0, 3, 1, 2)).astype(x_nchw.dtype)


if __name__ == "__main__":
    key = jax.random.PRNGKey(0)
    kx, kp = jax.random.split(key)
    N, C, H, W = 2, 8, 16, 16
    x = jax.random.normal(kx, (N, C, H, W), jnp.float32)
    params = init_params(kp, C)
    fwd = jax.jit(psp_forward)
    out = jax.block_until_ready(fwd(x, params))
    assert out.shape == (N, C, H, W), out.shape
    assert bool(jnp.all(jnp.isfinite(out)))
    print("KERNEL_OK")
</pallas_src>

<mosaic_0001>
module attributes {stable_mosaic.version = 11 : i64} {
  func.func @_stage_matmul_kernel(%arg0: i32, %arg1: i32, %arg2: memref<128x128xbf16, #tpu.memory_space<vmem>>, %arg3: memref<128x128xbf16, #tpu.memory_space<vmem>>, %arg4: memref<1x128xf32, #tpu.memory_space<vmem>>, %arg5: memref<1x128xf32, #tpu.memory_space<vmem>>, %arg6: memref<128x128xbf16, #tpu.memory_space<vmem>>, %arg7: memref<128x128xf32, #tpu.memory_space<vmem>>) attributes {dimension_semantics = [#tpu.dimension_semantics<parallel>, #tpu.dimension_semantics<arbitrary>], iteration_bounds = array<i64: 1, 1>, scalar_prefetch = 0 : i64, scratch_operands = 1 : i64, tpu.core_type = #tpu.core_type<tc>, window_params = [{transform_indices = @transform_0, window_bounds = array<i64: 128, 128>}, {transform_indices = @transform_1, window_bounds = array<i64: 128, 128>}, {transform_indices = @transform_2, window_bounds = array<i64: 1, 128>}, {transform_indices = @transform_3, window_bounds = array<i64: 1, 128>}, {transform_indices = @transform_4, window_bounds = array<i64: 128, 128>}]} {
    %c0_i32 = arith.constant 0 : i32
    %0 = arith.cmpi eq, %arg1, %c0_i32 : i32
    %1 = arith.extui %0 : i1 to i32
    %c0_i32_0 = arith.constant 0 : i32
    %2 = arith.cmpi ne, %1, %c0_i32_0 : i32
    scf.if %2 {
      %cst_10 = arith.constant 0.000000e+00 : f32
      %12 = vector.broadcast %cst_10 : f32 to vector<128x128xf32>
      %c0_11 = arith.constant 0 : index
      %c0_12 = arith.constant 0 : index
      %13 = vector.load %arg7[%c0_11, %c0_12] : memref<128x128xf32, #tpu.memory_space<vmem>>, vector<128x128xf32>
      tpu.vector_store %arg7[%c0_11, %c0_12], %12 {strides = array<i32>} : memref<128x128xf32, #tpu.memory_space<vmem>>, vector<128x128xf32>,
    } else {
    }
    %c0 = arith.constant 0 : index
    %c0_1 = arith.constant 0 : index
    %3 = vector.load %arg7[%c0, %c0_1] : memref<128x128xf32, #tpu.memory_space<vmem>>, vector<128x128xf32>
    %c0_2 = arith.constant 0 : index
    %c0_3 = arith.constant 0 : index
    %4 = vector.load %arg2[%c0_2, %c0_3] : memref<128x128xbf16, #tpu.memory_space<vmem>>, vector<128x128xbf16>
    %c0_4 = arith.constant 0 : index
    %c0_5 = arith.constant 0 : index
    %5 = vector.load %arg3[%c0_4, %c0_5] : memref<128x128xbf16, #tpu.memory_space<vmem>>, vector<128x128xbf16>
    %cst = arith.constant dense<0.000000e+00> : vector<128x128xf32>
    %6 = tpu.matmul %4, %5, %cst {dimension_numbers = #tpu.dot_dimension_numbers<[1], [0], [0], [1], [0, 0, 1, 1], [], []>} : vector<128x128xbf16>, vector<128x128xbf16>, vector<128x128xf32> -> vector<128x128xf32>
    %7 = arith.addf %3, %6 : vector<128x128xf32>
    %c0_6 = arith.constant 0 : index
    %c0_7 = arith.constant 0 : index
    %8 = vector.load %arg7[%c0_6, %c0_7] : memref<128x128xf32, #tpu.memory_space<vmem>>, vector<128x128xf32>
    tpu.vector_store %arg7[%c0_6, %c0_7], %7 {strides = array<i32>} : memref<128x128xf32, #tpu.memory_space<vmem>>, vector<128x128xf32>,
    %c0_i32_8 = arith.constant 0 : i32
    %9 = arith.cmpi eq, %arg1, %c0_i32_8 : i32
    %10 = arith.extui %9 : i1 to i32
    %c0_i32_9 = arith.constant 0 : i32
    %11 = arith.cmpi ne, %10, %c0_i32_9 : i32
    scf.if %11 {
      %c0_10 = arith.constant 0 : index
      %c0_11 = arith.constant 0 : index
      %12 = vector.load %arg7[%c0_10, %c0_11] : memref<128x128xf32, #tpu.memory_space<vmem>>, vector<128x128xf32>
      %c0_12 = arith.constant 0 : index
      %c0_13 = arith.constant 0 : index
      %13 = vector.load %arg4[%c0_12, %c0_13] : memref<1x128xf32, #tpu.memory_space<vmem>>, vector<1x128xf32>
      %14 = vector.broadcast %13 : vector<1x128xf32> to vector<128x128xf32>
      %15 = arith.mulf %12, %14 : vector<128x128xf32>
      %c0_14 = arith.constant 0 : index
      %c0_15 = arith.constant 0 : index
      %16 = vector.load %arg5[%c0_14, %c0_15] : memref<1x128xf32, #tpu.memory_space<vmem>>, vector<1x128xf32>
      %17 = vector.broadcast %16 : vector<1x128xf32> to vector<128x128xf32>
      %18 = arith.addf %15, %17 : vector<128x128xf32>
      %cst_16 = arith.constant 0.000000e+00 : f32
      %19 = vector.broadcast %cst_16 : f32 to vector<128x128xf32>
      %20 = arith.maximumf %18, %19 : vector<128x128xf32>
      %21 = arith.truncf %20 : vector<128x128xf32> to vector<128x128xbf16>
      %c0_17 = arith.constant 0 : index
      %c0_18 = arith.constant 0 : index
      %22 = vector.load %arg6[%c0_17, %c0_18] : memref<128x128xbf16, #tpu.memory_space<vmem>>, vector<128x128xbf16>
      tpu.vector_store %arg6[%c0_17, %c0_18], %21 {strides = array<i32>} : memref<128x128xbf16, #tpu.memory_space<vmem>>, vector<128x128xbf16>,
    } else {
    }
    return
  }
  func.func @transform_0(%arg0: i32, %arg1: i32) -> (i32, i32) {
    %c0_i32 = arith.constant 0 : i32
    %c0_i32_0 = arith.constant 0 : i32
    return %c0_i32, %arg1 : i32, i32
  }
  func.func @transform_1(%arg0: i32, %arg1: i32) -> (i32, i32) {
    %c0_i32 = arith.constant 0 : i32
    return %arg1, %arg0 : i32, i32
  }
  func.func @transform_2(%arg0: i32, %arg1: i32) -> (i32, i32) {
    %c0_i32 = arith.constant 0 : i32
    %c0_i32_0 = arith.constant 0 : i32
    return %c0_i32, %arg0 : i32, i32
  }
  func.func @transform_3(%arg0: i32, %arg1: i32) -> (i32, i32) {
    %c0_i32 = arith.constant 0 : i32
    %c0_i32_0 = arith.constant 0 : i32
    return %c0_i32, %arg0 : i32, i32
  }
  func.func @transform_4(%arg0: i32, %arg1: i32) -> (i32, i32) {
    %c0_i32 = arith.constant 0 : i32
    %c0_i32_0 = arith.constant 0 : i32
    return %c0_i32, %arg0 : i32, i32
  }
}

module attributes {stable_mosaic.version = 11 : i64} {
  func.func @_conv3x3_kernel(%arg0: i32, %arg1: i32, %arg2: i32, %arg3: i32, %arg4: memref<1x336x128xbf16, #tpu.memory_space<vmem>>, %arg5: memref<9x128x128xbf16, #tpu.memory_space<vmem>>, %arg6: memref<1x128xf32, #tpu.memory_space<vmem>>, %arg7: memref<1x128xf32, #tpu.memory_space<vmem>>, %arg8: memref<1x288x128xf32, #tpu.memory_space<vmem>>, %arg9: memref<288x128xf32, #tpu.memory_space<vmem>>) attributes {dimension_semantics = [#tpu.dimension_semantics<parallel>, #tpu.dimension_semantics<parallel>, #tpu.dimension_semantics<parallel>, #tpu.dimension_semantics<arbitrary>], iteration_bounds = array<i64: 2, 1, 1, 1>, scalar_prefetch = 0 : i64, scratch_operands = 1 : i64, tpu.core_type = #tpu.core_type<tc>, window_params = [{transform_indices = @transform_0, window_bounds = array<i64: 1, 336, 128>}, {transform_indices = @transform_1, window_bounds = array<i64: 9, 128, 128>}, {transform_indices = @transform_2, window_bounds = array<i64: 1, 128>}, {transform_indices = @transform_3, window_bounds = array<i64: 1, 128>}, {transform_indices = @transform_4, window_bounds = array<i64: 1, 288, 128>}]} {
    %c0_i32 = arith.constant 0 : i32
    %0 = arith.cmpi eq, %arg3, %c0_i32 : i32
    %1 = arith.extui %0 : i1 to i32
    %c0_i32_0 = arith.constant 0 : i32
    %2 = arith.cmpi ne, %1, %c0_i32_0 : i32
    scf.if %2 {
      %cst_86 = arith.constant 0.000000e+00 : f32
      %78 = vector.broadcast %cst_86 : f32 to vector<288x128xf32>
      %c0_87 = arith.constant 0 : index
      %c0_88 = arith.constant 0 : index
      %79 = vector.load %arg9[%c0_87, %c0_88] : memref<288x128xf32, #tpu.memory_space<vmem>>, vector<288x128xf32>
      tpu.vector_store %arg9[%c0_87, %c0_88], %78 {strides = array<i32>} : memref<288x128xf32, #tpu.memory_space<vmem>>, vector<288x128xf32>,
    } else {
    }
    %c0 = arith.constant 0 : index
    %c0_1 = arith.constant 0 : index
    %c0_2 = arith.constant 0 : index
    %3 = vector.load %arg4[%c0, %c0_1, %c0_2] : memref<1x336x128xbf16, #tpu.memory_space<vmem>>, vector<1x288x128xbf16>
    %4 = vector.shape_cast %3 : vector<1x288x128xbf16> to vector<288x128xbf16>
    %c0_3 = arith.constant 0 : index
    %c0_4 = arith.constant 0 : index
    %5 = vector.load %arg9[%c0_3, %c0_4] : memref<288x128xf32, #tpu.memory_space<vmem>>, vector<288x128xf32>
    %c0_5 = arith.constant 0 : index
    %c0_6 = arith.constant 0 : index
    %c0_7 = arith.constant 0 : index
    %6 = vector.load %arg5[%c0_5, %c0_6, %c0_7] : memref<9x128x128xbf16, #tpu.memory_space<vmem>>, vector<1x128x128xbf16>
    %7 = vector.shape_cast %6 : vector<1x128x128xbf16> to vector<128x128xbf16>
    %cst = arith.constant dense<0.000000e+00> : vector<288x128xf32>
    %8 = tpu.matmul %4, %7, %cst {dimension_numbers = #tpu.dot_dimension_numbers<[1], [0], [0], [1], [0, 0, 1, 1], [], []>} : vector<288x128xbf16>, vector<128x128xbf16>, vector<288x128xf32> -> vector<288x128xf32>
    %9 = arith.addf %5, %8 : vector<288x128xf32>
    %c0_8 = arith.constant 0 : index
    %c0_9 = arith.constant 0 : index
    %10 = vector.load %arg9[%c0_8, %c0_9] : memref<288x128xf32, #tpu.memory_space<vmem>>, vector<288x128xf32>
    tpu.vector_store %arg9[%c0_8, %c0_9], %9 {strides = array<i32>} : memref<288x128xf32, #tpu.memory_space<vmem>>, vector<288x128xf32>,
    %c0_10 = arith.constant 0 : index
    %c1 = arith.constant 1 : index
    %c0_11 = arith.constant 0 : index
    %11 = vector.load %arg4[%c0_10, %c1, %c0_11] : memref<1x336x128xbf16, #tpu.memory_space<vmem>>, vector<1x288x128xbf16>
    %12 = vector.shape_cast %11 : vector<1x288x128xbf16> to vector<288x128xbf16>
    %c0_12 = arith.constant 0 : index
    %c0_13 = arith.constant 0 : index
    %13 = vector.load %arg9[%c0_12, %c0_13] : memref<288x128xf32, #tpu.memory_space<vmem>>, vector<288x128xf32>
    %c1_14 = arith.constant 1 : index
    %c0_15 = arith.constant 0 : index
    %c0_16 = arith.constant 0 : index
    %14 = vector.load %arg5[%c1_14, %c0_15, %c0_16] : memref<9x128x128xbf16, #tpu.memory_space<vmem>>, vector<1x128x128xbf16>
    %15 = vector.shape_cast %14 : vector<1x128x128xbf16> to vector<128x128xbf16>
    %cst_17 = arith.constant dense<0.000000e+00> : vector<288x128xf32>
    %16 = tpu.matmul %12, %15, %cst_17 {dimension_numbers = #tpu.dot_dimension_numbers<[1], [0], [0], [1], [0, 0, 1, 1], [], []>} : vector<288x128xbf16>, vector<128x128xbf16>, vector<288x128xf32> -> vector<288x128xf32>
    %17 = arith.addf %13, %16 : vector<288x128xf32>
    %c0_18 = arith.constant 0 : index
    %c0_19 = arith.constant 0 : index
    %18 = vector.load %arg9[%c0_18, %c0_19] : memref<288x128xf32, #tpu.memory_space<vmem>>, vector<288x128xf32>
    tpu.vector_store %arg9[%c0_18, %c0_19], %17 {strides = array<i32>} : memref<288x128xf32, #tpu.memory_space<vmem>>, vector<288x128xf32>,
    %c0_20 = arith.constant 0 : index
    %c2 = arith.constant 2 : index
    %c0_21 = arith.constant 0 : index
    %19 = vector.load %arg4[%c0_20, %c2, %c0_21] : memref<1x336x128xbf16, #tpu.memory_space<vmem>>, vector<1x288x128xbf16>
    %20 = vector.shape_cast %19 : vector<1x288x128xbf16> to vector<288x128xbf16>
    %c0_22 = arith.constant 0 : index
    %c0_23 = arith.constant 0 : index
    %21 = vector.load %arg9[%c0_22, %c0_23] : memref<288x128xf32, #tpu.memory_space<vmem>>, vector<288x128xf32>
    %c2_24 = arith.constant 2 : index
    %c0_25 = arith.constant 0 : index
    %c0_26 = arith.constant 0 : index
    %22 = vector.load %arg5[%c2_24, %c0_25, %c0_26] : memref<9x128x128xbf16, #tpu.memory_space<vmem>>, vector<1x128x128xbf16>
    %23 = vector.shape_cast %22 : vector<1x128x128xbf16> to vector<128x128xbf16>
    %cst_27 = arith.constant dense<0.000000e+00> : vector<288x128xf32>
    %24 = tpu.matmul %20, %23, %cst_27 {dimension_numbers = #tpu.dot_dimension_numbers<[1], [0], [0], [1], [0, 0, 1, 1], [], []>} : vector<288x128xbf16>, vector<128x128xbf16>, vector<288x128xf32> -> vector<288x128xf32>
    %25 = arith.addf %21, %24 : vector<288x128xf32>
    %c0_28 = arith.constant 0 : index
    %c0_29 = arith.constant 0 : index
    %26 = vector.load %arg9[%c0_28, %c0_29] : memref<288x128xf32, #tpu.memory_space<vmem>>, vector<288x128xf32>
    tpu.vector_store %arg9[%c0_28, %c0_29], %25 {strides = array<i32>} : memref<288x128xf32, #tpu.memory_space<vmem>>, vector<288x128xf32>,
    %c0_30 = arith.constant 0 : index
    %c18 = arith.constant 18 : index
    %c0_31 = arith.constant 0 : index
    %27 = vector.load %arg4[%c0_30, %c18, %c0_31] : memref<1x336x128xbf16, #tpu.memory_space<vmem>>, vector<1x288x128xbf16>
    %28 = vector.shape_cast %27 : vector<1x288x128xbf16> to vector<288x128xbf16>
    %c0_32 = arith.constant 0 : index
    %c0_33 = arith.constant 0 : index
    %29 = vector.load %arg9[%c0_32, %c0_33] : memref<288x128xf32, #tpu.memory_space<vmem>>, vector<288x128xf32>
    %c3 = arith.constant 3 : index
    %c0_34 = arith.constant 0 : index
    %c0_35 = arith.constant 0 : index
    %30 = vector.load %arg5[%c3, %c0_34, %c0_35] : memref<9x128x128xbf16, #tpu.memory_space<vmem>>, vector<1x128x128xbf16>
    %31 = vector.shape_cast %30 : vector<1x128x128xbf16> to vector<128x128xbf16>
    %cst_36 = arith.constant dense<0.000000e+00> : vector<288x128xf32>
    %32 = tpu.matmul %28, %31, %cst_36 {dimension_numbers = #tpu.dot_dimension_numbers<[1], [0], [0], [1], [0, 0, 1, 1], [], []>} : vector<288x128xbf16>, vector<128x128xbf16>, vector<288x128xf32> -> vector<288x128xf32>
    %33 = arith.addf %29, %32 : vector<288x128xf32>
    %c0_37 = arith.constant 0 : index
    %c0_38 = arith.constant 0 : index
    %34 = vector.load %arg9[%c0_37, %c0_38] : memref<288x128xf32, #tpu.memory_space<vmem>>, vector<288x128xf32>
    tpu.vector_store %arg9[%c0_37, %c0_38], %33 {strides = array<i32>} : memref<288x128xf32, #tpu.memory_space<vmem>>, vector<288x128xf32>,
    %c0_39 = arith.constant 0 : index
    %c19 = arith.constant 19 : index
    %c0_40 = arith.constant 0 : index
    %35 = vector.load %arg4[%c0_39, %c19, %c0_40] : memref<1x336x128xbf16, #tpu.memory_space<vmem>>, vector<1x288x128xbf16>
    %36 = vector.shape_cast %35 : vector<1x288x128xbf16> to vector<288x128xbf16>
    %c0_41 = arith.constant 0 : index
    %c0_42 = arith.constant 0 : index
    %37 = vector.load %arg9[%c0_41, %c0_42] : memref<288x128xf32, #tpu.memory_space<vmem>>, vector<288x128xf32>
    %c4 = arith.constant 4 : index
    %c0_43 = arith.constant 0 : index
    %c0_44 = arith.constant 0 : index
    %38 = vector.load %arg5[%c4, %c0_43, %c0_44] : memref<9x128x128xbf16, #tpu.memory_space<vmem>>, vector<1x128x128xbf16>
    %39 = vector.shape_cast %38 : vector<1x128x128xbf16> to vector<128x128xbf16>
    %cst_45 = arith.constant dense<0.000000e+00> : vector<288x128xf32>
    %40 = tpu.matmul %36, %39, %cst_45 {dimension_numbers = #tpu.dot_dimension_numbers<[1], [0], [0], [1], [0, 0, 1, 1], [], []>} : vector<288x128xbf16>, vector<128x128xbf16>, vector<288x128xf32> -> vector<288x128xf32>
    %41 = arith.addf %37, %40 : vector<288x128xf32>
    %c0_46 = arith.constant 0 : index
    %c0_47 = arith.constant 0 : index
    %42 = vector.load %arg9[%c0_46, %c0_47] : memref<288x128xf32, #tpu.memory_space<vmem>>, vector<288x128xf32>
    tpu.vector_store %arg9[%c0_46, %c0_47], %41 {strides = array<i32>} : memref<288x128xf32, #tpu.memory_space<vmem>>, vector<288x128xf32>,
    %c0_48 = arith.constant 0 : index
    %c20 = arith.constant 20 : index
    %c0_49 = arith.constant 0 : index
    %43 = vector.load %arg4[%c0_48, %c20, %c0_49] : memref<1x336x128xbf16, #tpu.memory_space<vmem>>, vector<1x288x128xbf16>
    %44 = vector.shape_cast %43 : vector<1x288x128xbf16> to vector<288x128xbf16>
    %c0_50 = arith.constant 0 : index
    %c0_51 = arith.constant 0 : index
    %45 = vector.load %arg9[%c0_50, %c0_51] : memref<288x128xf32, #tpu.memory_space<vmem>>, vector<288x128xf32>
    %c5 = arith.constant 5 : index
    %c0_52 = arith.constant 0 : index
    %c0_53 = arith.constant 0 : index
    %46 = vector.load %arg5[%c5, %c0_52, %c0_53] : memref<9x128x128xbf16, #tpu.memory_space<vmem>>, vector<1x128x128xbf16>
    %47 = vector.shape_cast %46 : vector<1x128x128xbf16> to vector<128x128xbf16>
    %cst_54 = arith.constant dense<0.000000e+00> : vector<288x128xf32>
    %48 = tpu.matmul %44, %47, %cst_54 {dimension_numbers = #tpu.dot_dimension_numbers<[1], [0], [0], [1], [0, 0, 1, 1], [], []>} : vector<288x128xbf16>, vector<128x128xbf16>, vector<288x128xf32> -> vector<288x128xf32>
    %49 = arith.addf %45, %48 : vector<288x128xf32>
    %c0_55 = arith.constant 0 : index
    %c0_56 = arith.constant 0 : index
    %50 = vector.load %arg9[%c0_55, %c0_56] : memref<288x128xf32, #tpu.memory_space<vmem>>, vector<288x128xf32>
    tpu.vector_store %arg9[%c0_55, %c0_56], %49 {strides = array<i32>} : memref<288x128xf32, #tpu.memory_space<vmem>>, vector<288x128xf32>,
    %c0_57 = arith.constant 0 : index
    %c36 = arith.constant 36 : index
    %c0_58 = arith.constant 0 : index
    %51 = vector.load %arg4[%c0_57, %c36, %c0_58] : memref<1x336x128xbf16, #tpu.memory_space<vmem>>, vector<1x288x128xbf16>
    %52 = vector.shape_cast %51 : vector<1x288x128xbf16> to vector<288x128xbf16>
    %c0_59 = arith.constant 0 : index
    %c0_60 = arith.constant 0 : index
    %53 = vector.load %arg9[%c0_59, %c0_60] : memref<288x128xf32, #tpu.memory_space<vmem>>, vector<288x128xf32>
    %c6 = arith.constant 6 : index
    %c0_61 = arith.constant 0 : index
    %c0_62 = arith.constant 0 : index
    %54 = vector.load %arg5[%c6, %c0_61, %c0_62] : memref<9x128x128xbf16, #tpu.memory_space<vmem>>, vector<1x128x128xbf16>
    %55 = vector.shape_cast %54 : vector<1x128x128xbf16> to vector<128x128xbf16>
    %cst_63 = arith.constant dense<0.000000e+00> : vector<288x128xf32>
    %56 = tpu.matmul %52, %55, %cst_63 {dimension_numbers = #tpu.dot_dimension_numbers<[1], [0], [0], [1], [0, 0, 1, 1], [], []>} : vector<288x128xbf16>, vector<128x128xbf16>, vector<288x128xf32> -> vector<288x128xf32>
    %57 = arith.addf %53, %56 : vector<288x128xf32>
    %c0_64 = arith.constant 0 : index
    %c0_65 = arith.constant 0 : index
    %58 = vector.load %arg9[%c0_64, %c0_65] : memref<288x128xf32, #tpu.memory_space<vmem>>, vector<288x128xf32>
    tpu.vector_store %arg9[%c0_64, %c0_65], %57 {strides = array<i32>} : memref<288x128xf32, #tpu.memory_space<vmem>>, vector<288x128xf32>,
    %c0_66 = arith.constant 0 : index
    %c37 = arith.constant 37 : index
    %c0_67 = arith.constant 0 : index
    %59 = vector.load %arg4[%c0_66, %c37, %c0_67] : memref<1x336x128xbf16, #tpu.memory_space<vmem>>, vector<1x288x128xbf16>
    %60 = vector.shape_cast %59 : vector<1x288x128xbf16> to vector<288x128xbf16>
    %c0_68 = arith.constant 0 : index
    %c0_69 = arith.constant 0 : index
    %61 = vector.load %arg9[%c0_68, %c0_69] : memref<288x128xf32, #tpu.memory_space<vmem>>, vector<288x128xf32>
    %c7 = arith.constant 7 : index
    %c0_70 = arith.constant 0 : index
    %c0_71 = arith.constant 0 : index
    %62 = vector.load %arg5[%c7, %c0_70, %c0_71] : memref<9x128x128xbf16, #tpu.memory_space<vmem>>, vector<1x128x128xbf16>
    %63 = vector.shape_cast %62 : vector<1x128x128xbf16> to vector<128x128xbf16>
    %cst_72 = arith.constant dense<0.000000e+00> : vector<288x128xf32>
    %64 = tpu.matmul %60, %63, %cst_72 {dimension_numbers = #tpu.dot_dimension_numbers<[1], [0], [0], [1], [0, 0, 1, 1], [], []>} : vector<288x128xbf16>, vector<128x128xbf16>, vector<288x128xf32> -> vector<288x128xf32>
    %65 = arith.addf %61, %64 : vector<288x128xf32>
    %c0_73 = arith.constant 0 : index
    %c0_74 = arith.constant 0 : index
    %66 = vector.load %arg9[%c0_73, %c0_74] : memref<288x128xf32, #tpu.memory_space<vmem>>, vector<288x128xf32>
    tpu.vector_store %arg9[%c0_73, %c0_74], %65 {strides = array<i32>} : memref<288x128xf32, #tpu.memory_space<vmem>>, vector<288x128xf32>,
    %c0_75 = arith.constant 0 : index
    %c38 = arith.constant 38 : index
    %c0_76 = arith.constant 0 : index
    %67 = vector.load %arg4[%c0_75, %c38, %c0_76] : memref<1x336x128xbf16, #tpu.memory_space<vmem>>, vector<1x288x128xbf16>
    %68 = vector.shape_cast %67 : vector<1x288x128xbf16> to vector<288x128xbf16>
    %c0_77 = arith.constant 0 : index
    %c0_78 = arith.constant 0 : index
    %69 = vector.load %arg9[%c0_77, %c0_78] : memref<288x128xf32, #tpu.memory_space<vmem>>, vector<288x128xf32>
    %c8 = arith.constant 8 : index
    %c0_79 = arith.constant 0 : index
    %c0_80 = arith.constant 0 : index
    %70 = vector.load %arg5[%c8, %c0_79, %c0_80] : memref<9x128x128xbf16, #tpu.memory_space<vmem>>, vector<1x128x128xbf16>
    %71 = vector.shape_cast %70 : vector<1x128x128xbf16> to vector<128x128xbf16>
    %cst_81 = arith.constant dense<0.000000e+00> : vector<288x128xf32>
    %72 = tpu.matmul %68, %71, %cst_81 {dimension_numbers = #tpu.dot_dimension_numbers<[1], [0], [0], [1], [0, 0, 1, 1], [], []>} : vector<288x128xbf16>, vector<128x128xbf16>, vector<288x128xf32> -> vector<288x128xf32>
    %73 = arith.addf %69, %72 : vector<288x128xf32>
    %c0_82 = arith.constant 0 : index
    %c0_83 = arith.constant 0 : index
    %74 = vector.load %arg9[%c0_82, %c0_83] : memref<288x128xf32, #tpu.memory_space<vmem>>, vector<288x128xf32>
    tpu.vector_store %arg9[%c0_82, %c0_83], %73 {strides = array<i32>} : memref<288x128xf32, #tpu.memory_space<vmem>>, vector<288x128xf32>,
    %c0_i32_84 = arith.constant 0 : i32
    %75 = arith.cmpi eq, %arg3, %c0_i32_84 : i32
    %76 = arith.extui %75 : i1 to i32
    %c0_i32_85 = arith.constant 0 : i32
    %77 = arith.cmpi ne, %76, %c0_i32_85 : i32
    scf.if %77 {
      %c0_86 = arith.constant 0 : index
      %c0_87 = arith.constant 0 : index
      %78 = vector.load %arg9[%c0_86, %c0_87] : memref<288x128xf32, #tpu.memory_space<vmem>>, vector<288x128xf32>
      %c0_88 = arith.constant 0 : index
      %c0_89 = arith.constant 0 : index
      %79 = vector.load %arg6[%c0_88, %c0_89] : memref<1x128xf32, #tpu.memory_space<vmem>>, vector<1x128xf32>
      %80 = vector.broadcast %79 : vector<1x128xf32> to vector<288x128xf32>
      %81 = arith.mulf %78, %80 : vector<288x128xf32>
      %c0_90 = arith.constant 0 : index
      %c0_91 = arith.constant 0 : index
      %82 = vector.load %arg7[%c0_90, %c0_91] : memref<1x128xf32, #tpu.memory_space<vmem>>, vector<1x128xf32>
      %83 = vector.broadcast %82 : vector<1x128xf32> to vector<288x128xf32>
      %84 = arith.addf %81, %83 : vector<288x128xf32>
      %cst_92 = arith.constant 0.000000e+00 : f32
      %85 = vector.broadcast %cst_92 : f32 to vector<288x128xf32>
      %86 = arith.maximumf %84, %85 : vector<288x128xf32>
      %c0_93 = arith.constant 0 : index
      %c0_94 = arith.constant 0 : index
      %c0_95 = arith.constant 0 : index
      %87 = vector.load %arg8[%c0_93, %c0_94, %c0_95] : memref<1x288x128xf32, #tpu.memory_space<vmem>>, vector<1x288x128xf32>
      %88 = vector.shape_cast %87 : vector<1x288x128xf32> to vector<288x128xf32>
      %89 = vector.shape_cast %86 : vector<288x128xf32> to vector<1x288x128xf32>
      tpu.vector_store %arg8[%c0_93, %c0_94, %c0_95], %89 {strides = array<i32>} : memref<1x288x128xf32, #tpu.memory_space<vmem>>, vector<1x288x128xf32>,
    } else {
    }
    return
  }
  func.func @transform_0(%arg0: i32, %arg1: i32, %arg2: i32, %arg3: i32) -> (i32, i32, i32) {
    %c0_i32 = arith.constant 0 : i32
    %c0_i32_0 = arith.constant 0 : i32
    return %arg0, %c0_i32, %arg3 : i32, i32, i32
  }
  func.func @transform_1(%arg0: i32, %arg1: i32, %arg2: i32, %arg3: i32) -> (i32, i32, i32) {
    %c0_i32 = arith.constant 0 : i32
    %c0_i32_0 = arith.constant 0 : i32
    return %c0_i32, %arg3, %arg2 : i32, i32, i32
  }
  func.func @transform_2(%arg0: i32, %arg1: i32, %arg2: i32, %arg3: i32) -> (i32, i32) {
    %c0_i32 = arith.constant 0 : i32
    %c0_i32_0 = arith.constant 0 : i32
    return %c0_i32, %arg2 : i32, i32
  }
  func.func @transform_3(%arg0: i32, %arg1: i32, %arg2: i32, %arg3: i32) -> (i32, i32) {
    %c0_i32 = arith.constant 0 : i32
    %c0_i32_0 = arith.constant 0 : i32
    return %c0_i32, %arg2 : i32, i32
  }
  func.func @transform_4(%arg0: i32, %arg1: i32, %arg2: i32, %arg3: i32) -> (i32, i32, i32) {
    %c0_i32 = arith.constant 0 : i32
    return %arg0, %arg1, %arg2 : i32, i32, i32
  }
}

</mosaic_0001>

<llo_original>
// kernel: psp_forward.2
$region0: #{psp_forward.2}
  #allocation0 [shape = 'u32[]', space=smem, size = 0x4, offset = 0x4, fixed_abs, tag = 'smem constant byte address 0x4 - core index']
  #allocation1 [shape = 'u32[144,128]{1,0:T(1,128)}', space=vmem, size = 0x12000, scoped, tag = 'internal scratch']
  #allocation2 [shape = 'f32[128,128]{1,0:T(8,128)}', space=vmem, size = 0x10000, scoped, tag = 'scratch operand']
  %s0 = inlined_call_operand.vmem [shape: bf16[128,128], index: 0, kind: input, shape index: {}]
  %s1 = inlined_call_operand.vmem [shape: bf16[128,128], index: 1, kind: input, shape index: {}]
  %s2 = inlined_call_operand.vmem [shape: f32[1,128], index: 2, kind: input, shape index: {}]
  %s3 = inlined_call_operand.vmem [shape: f32[1,128], index: 3, kind: input, shape index: {}]
  %s4 = inlined_call_operand.vmem [shape: bf16[128,128], index: 4, kind: output, shape index: {}]
  %s5 = sld [smem:[#allocation0]]
  $region34: #{psp_forward.2} parent=0
    _
  %s7 = ssub.s32 1, %s5
  %s8 = scalar_select 0, %s7, %s5
  // Predicated region
  $region2: #{psp_forward.2} parent=0 // pred_check
    _
  $region3: #{psp_forward.2} parent=0 // pred_check_branch
    %10 = sbr.rel (0) target = $region5
  $region4: #{psp_forward.2} parent=0 // pred_region
    _
  $region5: #{psp_forward.2} parent=0 // pred_fallthru
    _
  // Predicated region
  $region6: #{psp_forward.2} parent=0 // pred_check
    _
  $region7: #{psp_forward.2} parent=0 // pred_check_branch
    %12 = sbr.rel (0) target = $region9
  $region8: #{psp_forward.2} parent=0 // pred_region
    _
  $region9: #{psp_forward.2} parent=0 // pred_fallthru
    _
  // Predicated region
  $region10: #{psp_forward.2} parent=0 // pred_check
    _
  $region11: #{psp_forward.2} parent=0 // pred_check_branch
    %14 = sbr.rel (0) target = $region13
  $region12: #{psp_forward.2} parent=0 // pred_region
    _
  $region13: #{psp_forward.2} parent=0 // pred_fallthru
    _
  // Predicated region
  $region14: #{psp_forward.2} parent=0 // pred_check
    _
  $region15: #{psp_forward.2} parent=0 // pred_check_branch
    %16 = sbr.rel (0) target = $region17
  $region16: #{psp_forward.2} parent=0 // pred_region
    _
  $region17: #{psp_forward.2} parent=0 // pred_fallthru
    _
  %p18 = scmp.eq.s32.totalorder 0, 0
  // Predicated region
  $region18: #{psp_forward.2} parent=0 // pred_check
    %p19 = pneg %p18
  $region19: #{psp_forward.2} parent=0 // pred_check_branch
    %21 = sbr.rel (%p19) target = $region21
  $region20: #{psp_forward.2} parent=0 // pred_region
    %22 = vst [vmem:[#allocation2] sm:$0xff] 0.0
    %23 = vst [vmem:[#allocation2 + $0x8] sm:$0xff] 0.0
    %24 = vst [vmem:[#allocation2 + $0x10] sm:$0xff] 0.0
    %25 = vst [vmem:[#allocation2 + $0x18] sm:$0xff] 0.0
    %26 = vst [vmem:[#allocation2 + $0x20] sm:$0xff] 0.0
    %27 = vst [vmem:[#allocation2 + $0x28] sm:$0xff] 0.0
    %28 = vst [vmem:[#allocation2 + $0x30] sm:$0xff] 0.0
    %29 = vst [vmem:[#allocation2 + $0x38] sm:$0xff] 0.0
    %30 = vst [vmem:[#allocation2 + $0x40] sm:$0xff] 0.0
    %31 = vst [vmem:[#allocation2 + $0x48] sm:$0xff] 0.0
    %32 = vst [vmem:[#allocation2 + $0x50] sm:$0xff] 0.0
    %33 = vst [vmem:[#allocation2 + $0x58] sm:$0xff] 0.0
    %34 = vst [vmem:[#allocation2 + $0x60] sm:$0xff] 0.0
    %35 = vst [vmem:[#allocation2 + $0x68] sm:$0xff] 0.0
    %36 = vst [vmem:[#allocation2 + $0x70] sm:$0xff] 0.0
    %37 = vst [vmem:[#allocation2 + $0x78] sm:$0xff] 0.0
  $region21: #{psp_forward.2} parent=0 // pred_fallthru
    _
  %v38 = vld [vmem:[#allocation2] sm:$0xff]
  %v39 = vld [vmem:[#allocation2 + $0x8] sm:$0xff]
  %v40 = vld [vmem:[#allocation2 + $0x10] sm:$0xff]
  %v41 = vld [vmem:[#allocation2 + $0x18] sm:$0xff]
  %v42 = vld [vmem:[#allocation2 + $0x20] sm:$0xff]
  %v43 = vld [vmem:[#allocation2 + $0x28] sm:$0xff]
  %v44 = vld [vmem:[#allocation2 + $0x30] sm:$0xff]
  %v45 = vld [vmem:[#allocation2 + $0x38] sm:$0xff]
  %v46 = vld [vmem:[#allocation2 + $0x40] sm:$0xff]
  %v47 = vld [vmem:[#allocation2 + $0x48] sm:$0xff]
  %v48 = vld [vmem:[#allocation2 + $0x50] sm:$0xff]
  %v49 = vld [vmem:[#allocation2 + $0x58] sm:$0xff]
  %v50 = vld [vmem:[#allocation2 + $0x60] sm:$0xff]
  %v51 = vld [vmem:[#allocation2 + $0x68] sm:$0xff]
  %v52 = vld [vmem:[#allocation2 + $0x70] sm:$0xff]
  %v53 = vld [vmem:[#allocation2 + $0x78] sm:$0xff]
  %v54 = vld [vmem:[%s0] sm:$0xf]
  %v55 = vld [vmem:[%s0 + $0x4] sm:$0xf]
  %v56 = vld [vmem:[%s0 + $0x8] sm:$0xf]
  %v57 = vld [vmem:[%s0 + $0xc] sm:$0xf]
  %v58 = vld [vmem:[%s0 + $0x10] sm:$0xf]
  %v59 = vld [vmem:[%s0 + $0x14] sm:$0xf]
  %v60 = vld [vmem:[%s0 + $0x18] sm:$0xf]
  %v61 = vld [vmem:[%s0 + $0x1c] sm:$0xf]
  %v62 = vld [vmem:[%s0 + $0x20] sm:$0xf]
  %v63 = vld [vmem:[%s0 + $0x24] sm:$0xf]
  %v64 = vld [vmem:[%s0 + $0x28] sm:$0xf]
  %v65 = vld [vmem:[%s0 + $0x2c] sm:$0xf]
  %v66 = vld [vmem:[%s0 + $0x30] sm:$0xf]
  %v67 = vld [vmem:[%s0 + $0x34] sm:$0xf]
  %v68 = vld [vmem:[%s0 + $0x38] sm:$0xf]
  %v69 = vld [vmem:[%s0 + $0x3c] sm:$0xf]
  %v70 = vld [vmem:[%s1] sm:$0xf]
  %v71 = vld [vmem:[%s1 + $0x4] sm:$0xf]
  %v72 = vld [vmem:[%s1 + $0x8] sm:$0xf]
  %v73 = vld [vmem:[%s1 + $0xc] sm:$0xf]
  %v74 = vld [vmem:[%s1 + $0x10] sm:$0xf]
  %v75 = vld [vmem:[%s1 + $0x14] sm:$0xf]
  %v76 = vld [vmem:[%s1 + $0x18] sm:$0xf]
  %v77 = vld [vmem:[%s1 + $0x1c] sm:$0xf]
  %v78 = vld [vmem:[%s1 + $0x20] sm:$0xf]
  %v79 = vld [vmem:[%s1 + $0x24] sm:$0xf]
  %v80 = vld [vmem:[%s1 + $0x28] sm:$0xf]
  %v81 = vld [vmem:[%s1 + $0x2c] sm:$0xf]
  %v82 = vld [vmem:[%s1 + $0x30] sm:$0xf]
  %v83 = vld [vmem:[%s1 + $0x34] sm:$0xf]
  %v84 = vld [vmem:[%s1 + $0x38] sm:$0xf]
  %v85 = vld [vmem:[%s1 + $0x3c] sm:$0xf]
  %v102 = vunpack.c.l.b16 %v54
  %v103 = vunpack.c.l.b16 %v55
  %v104 = vunpack.c.l.b16 %v56
  %v105 = vunpack.c.l.b16 %v57
  %v106 = vunpack.c.l.b16 %v58
  %v107 = vunpack.c.l.b16 %v59
  %v108 = vunpack.c.l.b16 %v60
  %v109 = vunpack.c.l.b16 %v61
  %v110 = vunpack.c.l.b16 %v62
  %v111 = vunpack.c.l.b16 %v63
  %v112 = vunpack.c.l.b16 %v64
  %v113 = vunpack.c.l.b16 %v65
  %v114 = vunpack.c.l.b16 %v66
  %v115 = vunpack.c.l.b16 %v67
  %v116 = vunpack.c.l.b16 %v68
  %v117 = vunpack.c.l.b16 %v69
  %v118 = vpack.c.b16 %v103, %v102
  %v119 = vpack.c.b16 %v105, %v104
  %v120 = vpack.c.b16 %v107, %v106
  %v121 = vpack.c.b16 %v109, %v108
  %v122 = vpack.c.b16 %v111, %v110
  %v123 = vpack.c.b16 %v113, %v112
  %v124 = vpack.c.b16 %v115, %v114
  %v125 = vpack.c.b16 %v117, %v116
  %v150 = vunpack.c.l.b16 %v70
  %v151 = vunpack.c.l.b16 %v71
  %v152 = vunpack.c.l.b16 %v72
  %v153 = vunpack.c.l.b16 %v73
  %v154 = vunpack.c.l.b16 %v74
  %v155 = vunpack.c.l.b16 %v75
  %v156 = vunpack.c.l.b16 %v76
  %v157 = vunpack.c.l.b16 %v77
  %v158 = vunpack.c.l.b16 %v78
  %v159 = vunpack.c.l.b16 %v79
  %v160 = vunpack.c.l.b16 %v80
  %v161 = vunpack.c.l.b16 %v81
  %v162 = vunpack.c.l.b16 %v82
  %v163 = vunpack.c.l.b16 %v83
  %v164 = vunpack.c.l.b16 %v84
  %v165 = vunpack.c.l.b16 %v85
  %v166 = vpack.c.b16 %v151, %v150
  %v167 = vpack.c.b16 %v153, %v152
  %v168 = vpack.c.b16 %v155, %v154
  %v169 = vpack.c.b16 %v157, %v156
  %v170 = vpack.c.b16 %v159, %v158
  %v171 = vpack.c.b16 %v161, %v160
  %v172 = vpack.c.b16 %v163, %v162
  %v173 = vpack.c.b16 %v165, %v164
  %182 = vmatprep.subr.bf16.mxu0 0
  %183 = vmatpush1.bf16.msra.mxu0 %v166
  %184 = vmatprep.subr.bf16.mxu0 0
  %185 = vmatpush1.bf16.msra.mxu0 %v167
  %186 = vmatprep.subr.bf16.mxu0 0
  %187 = vmatpush1.bf16.msra.mxu0 %v168
  %188 = vmatprep.subr.bf16.mxu0 0
  %189 = vmatpush1.bf16.msra.mxu0 %v169
  %190 = vmatprep.subr.bf16.mxu0 0
  %191 = vmatpush1.bf16.msra.mxu0 %v170
  %192 = vmatprep.subr.bf16.mxu0 0
  %193 = vmatpush1.bf16.msra.mxu0 %v171
  %194 = vmatprep.subr.bf16.mxu0 0
  %195 = vmatpush1.bf16.msra.mxu0 %v172
  %196 = vmatprep.subr.bf16.mxu0 0
  %197 = vmatpush1.bf16.msra.mxu0 %v173
  %198 = vmatprep.subr.bf16.mxu0 0
  %199 = vmatpush1.bf16.msra.mxu0 0
  %200 = vmatprep.subr.bf16.mxu0 0
  %201 = vmatpush1.bf16.msra.mxu0 0
  %202 = vmatprep.subr.bf16.mxu0 0
  %203 = vmatpush1.bf16.msra.mxu0 0
  %204 = vmatprep.subr.bf16.mxu0 0
  %205 = vmatpush1.bf16.msra.mxu0 0
  %206 = vmatprep.subr.bf16.mxu0 0
  %207 = vmatpush1.bf16.msra.mxu0 0
  %208 = vmatprep.subr.bf16.mxu0 0
  %209 = vmatpush1.bf16.msra.mxu0 0
  %210 = vmatprep.subr.bf16.mxu0 0
  %211 = vmatpush1.bf16.msra.mxu0 0
  %212 = vmatprep.subr.bf16.mxu0 0
  %213 = vmatpush1.bf16.msra.mxu0 0
  %214 = vmatprep.mubr.bf16.mxu0 0
  %215 = vmatmul.mubr.bf16.gmra.mrb[0].mxu0 %v118
  %v216 = vpop.f32.mrb[0].mxu0
  %v217 = vadd.f32 0.0, %v216
  %v218 = vpop.f32.mrb[0].mxu0
  %v219 = vpop.f32.mrb[0].mxu0
  %v220 = vadd.f32 0.0, %v219
  %v221 = vpop.f32.mrb[0].mxu0
  %222 = vmatprep.mubr.bf16.mxu0 0
  %223 = vmatmul.mubr.bf16.gmra.mrb[0].mxu0 %v119
  %v224 = vpop.f32.mrb[0].mxu0
  %v225 = vadd.f32 0.0, %v224
  %v226 = vpop.f32.mrb[0].mxu0
  %v227 = vpop.f32.mrb[0].mxu0
  %v228 = vadd.f32 0.0, %v227
  %v229 = vpop.f32.mrb[0].mxu0
  %230 = vmatprep.mubr.bf16.mxu0 0
  %231 = vmatmul.mubr.bf16.gmra.mrb[0].mxu0 %v120
  %v232 = vpop.f32.mrb[0].mxu0
  %v233 = vadd.f32 0.0, %v232
  %v234 = vpop.f32.mrb[0].mxu0
  %v235 = vpop.f32.mrb[0].mxu0
  %v236 = vadd.f32 0.0, %v235
  %v237 = vpop.f32.mrb[0].mxu0
  %238 = vmatprep.mubr.bf16.mxu0 0
  %239 = vmatmul.mubr.bf16.gmra.mrb[0].mxu0 %v121
  %v240 = vpop.f32.mrb[0].mxu0
  %v241 = vadd.f32 0.0, %v240
  %v242 = vpop.f32.mrb[0].mxu0
  %v243 = vpop.f32.mrb[0].mxu0
  %v244 = vadd.f32 0.0, %v243
  %v245 = vpop.f32.mrb[0].mxu0
  %246 = vmatprep.mubr.bf16.mxu0 0
  %247 = vmatmul.mubr.bf16.gmra.mrb[0].mxu0 %v122
  %v248 = vpop.f32.mrb[0].mxu0
  %v249 = vadd.f32 0.0, %v248
  %v250 = vpop.f32.mrb[0].mxu0
  %v251 = vpop.f32.mrb[0].mxu0
  %v252 = vadd.f32 0.0, %v251
  %v253 = vpop.f32.mrb[0].mxu0
  %254 = vmatprep.mubr.bf16.mxu0 0
  %255 = vmatmul.mubr.bf16.gmra.mrb[0].mxu0 %v123
  %v256 = vpop.f32.mrb[0].mxu0
  %v257 = vadd.f32 0.0, %v256
  %v258 = vpop.f32.mrb[0].mxu0
  %v259 = vpop.f32.mrb[0].mxu0
  %v260 = vadd.f32 0.0, %v259
  %v261 = vpop.f32.mrb[0].mxu0
  %262 = vmatprep.mubr.bf16.mxu0 0
  %263 = vmatmul.mubr.bf16.gmra.mrb[0].mxu0 %v124
  %v264 = vpop.f32.mrb[0].mxu0
  %v265 = vadd.f32 0.0, %v264
  %v266 = vpop.f32.mrb[0].mxu0
  %v267 = vpop.f32.mrb[0].mxu0
  %v268 = vadd.f32 0.0, %v267
  %v269 = vpop.f32.mrb[0].mxu0
  %270 = vmatprep.mubr.bf16.mxu0 0
  %271 = vmatmul.mubr.bf16.gmra.mrb[0].mxu0 %v125
  %v272 = vpop.f32.mrb[0].mxu0
  %v273 = vadd.f32 0.0, %v272
  %v274 = vpop.f32.mrb[0].mxu0
  %v275 = vpop.f32.mrb[0].mxu0
  %v276 = vadd.f32 0.0, %v275
  %v277 = vpop.f32.mrb[0].mxu0
  %278 = vdwg.mxu0
  %v279 = vadd.f32 %v38, %v217
  %v280 = vadd.f32 %v39, %v220
  %v281 = vadd.f32 %v40, %v225
  %v282 = vadd.f32 %v41, %v228
  %v283 = vadd.f32 %v42, %v233
  %v284 = vadd.f32 %v43, %v236
  %v285 = vadd.f32 %v44, %v241
  %v286 = vadd.f32 %v45, %v244
  %v287 = vadd.f32 %v46, %v249
  %v288 = vadd.f32 %v47, %v252
  %v289 = vadd.f32 %v48, %v257
  %v290 = vadd.f32 %v49, %v260
  %v291 = vadd.f32 %v50, %v265
  %v292 = vadd.f32 %v51, %v268
  %v293 = vadd.f32 %v52, %v273
  %v294 = vadd.f32 %v53, %v276
  %295 = vst [vmem:[#allocation2] sm:$0xff] %v279
  %296 = vst [vmem:[#allocation2 + $0x8] sm:$0xff] %v280
  %297 = vst [vmem:[#allocation2 + $0x10] sm:$0xff] %v281
  %298 = vst [vmem:[#allocation2 + $0x18] sm:$0xff] %v282
  %299 = vst [vmem:[#allocation2 + $0x20] sm:$0xff] %v283
  %300 = vst [vmem:[#allocation2 + $0x28] sm:$0xff] %v284
  %301 = vst [vmem:[#allocation2 + $0x30] sm:$0xff] %v285
  %302 = vst [vmem:[#allocation2 + $0x38] sm:$0xff] %v286
  %303 = vst [vmem:[#allocation2 + $0x40] sm:$0xff] %v287
  %304 = vst [vmem:[#allocation2 + $0x48] sm:$0xff] %v288
  %305 = vst [vmem:[#allocation2 + $0x50] sm:$0xff] %v289
  %306 = vst [vmem:[#allocation2 + $0x58] sm:$0xff] %v290
  %307 = vst [vmem:[#allocation2 + $0x60] sm:$0xff] %v291
  %308 = vst [vmem:[#allocation2 + $0x68] sm:$0xff] %v292
  %309 = vst [vmem:[#allocation2 + $0x70] sm:$0xff] %v293
  %310 = vst [vmem:[#allocation2 + $0x78] sm:$0xff] %v294
  // Predicated region
  $region22: #{psp_forward.2} parent=0 // pred_check
    %p311 = pneg %p18
  $region23: #{psp_forward.2} parent=0 // pred_check_branch
    %313 = sbr.rel (%p311) target = $region25
  $region24: #{psp_forward.2} parent=0 // pred_region
    %v314 = vld [vmem:[#allocation2] sm:$0xff]
    %v315 = vld [vmem:[#allocation2 + $0x8] sm:$0xff]
    %v316 = vld [vmem:[#allocation2 + $0x10] sm:$0xff]
    %v317 = vld [vmem:[#allocation2 + $0x18] sm:$0xff]
    %v318 = vld [vmem:[#allocation2 + $0x20] sm:$0xff]
    %v319 = vld [vmem:[#allocation2 + $0x28] sm:$0xff]
    %v320 = vld [vmem:[#allocation2 + $0x30] sm:$0xff]
    %v321 = vld [vmem:[#allocation2 + $0x38] sm:$0xff]
    %v322 = vld [vmem:[#allocation2 + $0x40] sm:$0xff]
    %v323 = vld [vmem:[#allocation2 + $0x48] sm:$0xff]
    %v324 = vld [vmem:[#allocation2 + $0x50] sm:$0xff]
    %v325 = vld [vmem:[#allocation2 + $0x58] sm:$0xff]
    %v326 = vld [vmem:[#allocation2 + $0x60] sm:$0xff]
    %v327 = vld [vmem:[#allocation2 + $0x68] sm:$0xff]
    %v328 = vld [vmem:[#allocation2 + $0x70] sm:$0xff]
    %v329 = vld [vmem:[#allocation2 + $0x78] sm:$0xff]
    %v330 = vld [vmem:[%s2] sm:$0x1]
    %v332 = vlaneseq
    %v333 = vshrl.u32 %v332, 7
    %v334 = vsub.s32 0, %v333
    %v335 = vrot.slane %v330, %v334
    %v337 = vmul.f32 %v314, %v335
    %v338 = vmul.f32 %v315, %v335
    %v339 = vmul.f32 %v316, %v335
    %v340 = vmul.f32 %v317, %v335
    %v341 = vmul.f32 %v318, %v335
    %v342 = vmul.f32 %v319, %v335
    %v343 = vmul.f32 %v320, %v335
    %v344 = vmul.f32 %v321, %v335
    %v345 = vmul.f32 %v322, %v335
    %v346 = vmul.f32 %v323, %v335
    %v347 = vmul.f32 %v324, %v335
    %v348 = vmul.f32 %v325, %v335
    %v349 = vmul.f32 %v326, %v335
    %v350 = vmul.f32 %v327, %v335
    %v351 = vmul.f32 %v328, %v335
    %v352 = vmul.f32 %v329, %v335
    %v353 = vld [vmem:[%s3] sm:$0x1]
    %v355 = vlaneseq
    %v356 = vshrl.u32 %v355, 7
    %v357 = vsub.s32 0, %v356
    %v358 = vrot.slane %v353, %v357
    %v360 = vadd.f32 %v337, %v358
    %v361 = vadd.f32 %v338, %v358
    %v362 = vadd.f32 %v339, %v358
    %v363 = vadd.f32 %v340, %v358
    %v364 = vadd.f32 %v341, %v358
    %v365 = vadd.f32 %v342, %v358
    %v366 = vadd.f32 %v343, %v358
    %v367 = vadd.f32 %v344, %v358
    %v368 = vadd.f32 %v345, %v358
    %v369 = vadd.f32 %v346, %v358
    %v370 = vadd.f32 %v347, %v358
    %v371 = vadd.f32 %v348, %v358
    %v372 = vadd.f32 %v349, %v358
    %v373 = vadd.f32 %v350, %v358
    %v374 = vadd.f32 %v351, %v358
    %v375 = vadd.f32 %v352, %v358
    %v376 = vmax.f32 %v360, 0.0
    %v377 = vmax.f32 %v361, 0.0
    %v378 = vmax.f32 %v362, 0.0
    %v379 = vmax.f32 %v363, 0.0
    %v380 = vmax.f32 %v364, 0.0
    %v381 = vmax.f32 %v365, 0.0
    %v382 = vmax.f32 %v366, 0.0
    %v383 = vmax.f32 %v367, 0.0
    %v384 = vmax.f32 %v368, 0.0
    %v385 = vmax.f32 %v369, 0.0
    %v386 = vmax.f32 %v370, 0.0
    %v387 = vmax.f32 %v371, 0.0
    %v388 = vmax.f32 %v372, 0.0
    %v389 = vmax.f32 %v373, 0.0
    %v390 = vmax.f32 %v374, 0.0
    %v391 = vmax.f32 %v375, 0.0
    %v392 = vpack.c.bf16 %v377, %v376
    %v393 = vpack.c.bf16 %v379, %v378
    %v394 = vpack.c.bf16 %v381, %v380
    %v395 = vpack.c.bf16 %v383, %v382
    %v396 = vpack.c.bf16 %v385, %v384
    %v397 = vpack.c.bf16 %v387, %v386
    %v398 = vpack.c.bf16 %v389, %v388
    %v399 = vpack.c.bf16 %v391, %v390
    %v408 = vunpack.c.l.b16 %v392
    %v409 = vunpack.c.h.b16 %v392
    %v410 = vunpack.c.l.b16 %v393
    %v411 = vunpack.c.h.b16 %v393
    %v412 = vunpack.c.l.b16 %v394
    %v413 = vunpack.c.h.b16 %v394
    %v414 = vunpack.c.l.b16 %v395
    %v415 = vunpack.c.h.b16 %v395
    %v416 = vunpack.c.l.b16 %v396
    %v417 = vunpack.c.h.b16 %v396
    %v418 = vunpack.c.l.b16 %v397
    %v419 = vunpack.c.h.b16 %v397
    %v420 = vunpack.c.l.b16 %v398
    %v421 = vunpack.c.h.b16 %v398
    %v422 = vunpack.c.l.b16 %v399
    %v423 = vunpack.c.h.b16 %v399
    %v424 = vpack.c.b16 %v408, %v408
    %v425 = vpack.c.b16 %v409, %v409
    %v426 = vpack.c.b16 %v410, %v410
    %v427 = vpack.c.b16 %v411, %v411
    %v428 = vpack.c.b16 %v412, %v412
    %v429 = vpack.c.b16 %v413, %v413
    %v430 = vpack.c.b16 %v414, %v414
    %v431 = vpack.c.b16 %v415, %v415
    %v432 = vpack.c.b16 %v416, %v416
    %v433 = vpack.c.b16 %v417, %v417
    %v434 = vpack.c.b16 %v418, %v418
    %v435 = vpack.c.b16 %v419, %v419
    %v436 = vpack.c.b16 %v420, %v420
    %v437 = vpack.c.b16 %v421, %v421
    %v438 = vpack.c.b16 %v422, %v422
    %v439 = vpack.c.b16 %v423, %v423
    %456 = vst [vmem:[%s4] sm:$0xf] %v424
    %457 = vst [vmem:[%s4 + $0x4] sm:$0xf] %v425
    %458 = vst [vmem:[%s4 + $0x8] sm:$0xf] %v426
    %459 = vst [vmem:[%s4 + $0xc] sm:$0xf] %v427
    %460 = vst [vmem:[%s4 + $0x10] sm:$0xf] %v428
    %461 = vst [vmem:[%s4 + $0x14] sm:$0xf] %v429
    %462 = vst [vmem:[%s4 + $0x18] sm:$0xf] %v430
    %463 = vst [vmem:[%s4 + $0x1c] sm:$0xf] %v431
    %464 = vst [vmem:[%s4 + $0x20] sm:$0xf] %v432
    %465 = vst [vmem:[%s4 + $0x24] sm:$0xf] %v433
    %466 = vst [vmem:[%s4 + $0x28] sm:$0xf] %v434
    %467 = vst [vmem:[%s4 + $0x2c] sm:$0xf] %v435
    %468 = vst [vmem:[%s4 + $0x30] sm:$0xf] %v436
    %469 = vst [vmem:[%s4 + $0x34] sm:$0xf] %v437
    %470 = vst [vmem:[%s4 + $0x38] sm:$0xf] %v438
    %471 = vst [vmem:[%s4 + $0x3c] sm:$0xf] %v439
  $region25: #{psp_forward.2} parent=0 // pred_fallthru
    _
  // Predicated region
  $region26: #{psp_forward.2} parent=0 // pred_check
    _
  $region27: #{psp_forward.2} parent=0 // pred_check_branch
    %473 = sbr.rel (0) target = $region29
  $region28: #{psp_forward.2} parent=0 // pred_region
    _
  $region29: #{psp_forward.2} parent=0 // pred_fallthru
    _
  // Predicated region
  $region30: #{psp_forward.2} parent=0 // pred_check
    _
  $region31: #{psp_forward.2} parent=0 // pred_check_branch
    %475 = sbr.rel (0) target = $region33
  $region32: #{psp_forward.2} parent=0 // pred_region
    _
  $region33: #{psp_forward.2} parent=0 // pred_fallthru
    _

// kernel: psp_forward.3
$region0: #{psp_forward.3}
  #allocation0 [shape = 'u32[]', space=smem, size = 0x4, offset = 0x4, fixed_abs, tag = 'smem constant byte address 0x4 - core index']
  #allocation1 [shape = 'u32[144,128]{1,0:T(1,128)}', space=vmem, size = 0x12000, scoped, tag = 'internal scratch']
  #allocation2 [shape = 'f32[288,128]{1,0:T(8,128)}', space=vmem, size = 0x24000, scoped, tag = 'scratch operand']
  %s0 = inlined_call_operand.vmem [shape: bf16[2,336,128], index: 0, kind: input, shape index: {}]
  %s1 = inlined_call_operand.vmem [shape: bf16[9,128,128], index: 1, kind: input, shape index: {}]
  %s2 = inlined_call_operand.vmem [shape: f32[1,128], index: 2, kind: input, shape index: {}]
  %s3 = inlined_call_operand.vmem [shape: f32[1,128], index: 3, kind: input, shape index: {}]
  %s4 = inlined_call_operand.vmem [shape: f32[2,288,128], index: 4, kind: output, shape index: {}]
  %s5 = sld [smem:[#allocation0]]
  $region57: #{psp_forward.3} parent=0
    _
  %s7 = ssub.s32 1, %s5
  %s8 = scalar_select 0, %s7, %s5
  loop: start=0, step=1, limit=4
  $region2: #{psp_forward.3} parent=0 // loop_pre_header
    _
  $region3: #{psp_forward.3} parent=0 // loop_header
    %s10 = sphi 0, %s14
    %p11 = scmp.ge.s32.totalorder %s10, 4
    %s17 = sphi 0, %s43
    %s18 = sphi 0, %s39
    %s19 = sphi 0, %s35
    %s20 = sphi 0, %s31
    %s21 = sphi 0, %s17
    %s22 = sphi 0, %s18
    %s23 = sphi 0, %s19
    %s24 = sphi 0, %s20
    %s25 = sphi 0, %s21
    %s26 = sphi 0, %s22
    %s27 = sphi 0, %s23
    %s28 = sphi 0, %s24
    %s48 = sphi 0, %s50
    %s51 = sphi 0, %s48
    %s52 = sphi 0, %s51
    %s68 = sphi 0, %s52
    %s76 = sphi 0, %s78
    %s79 = sphi 0, %s76
    %s80 = sphi 0, %s79
    %s96 = sphi 0, %s80
    %s102 = sphi 0, %s104
    %s105 = sphi 0, %s102
    %s106 = sphi 0, %s105
    %s122 = sphi 0, %s106
    %s128 = sphi 0, %s130
    %s131 = sphi 0, %s128
    %s132 = sphi 0, %s131
    %s148 = sphi 0, %s132
    %s158 = sphi 0, %s160
    %s161 = sphi 0, %s158
    %s162 = sphi 0, %s161
    %s178 = sphi 0, %s162
  $region4: #{psp_forward.3} parent=0 // loop_header_branch
    %13 = sbr.rel (%p11) target = $region8
  $region5: #{psp_forward.3} parent=0 // loop_body
    %s15 = ssub.s32 %s10, 1
    %s16 = ssub.s32 %s10, 2
    %s29 = sadd.s32 1, %s20
    %p30 = scmp.ge.s32.totalorder %s29, 1
    %s31 = scalar_select %p30, 0, %s29
    %s32 = sadd.s32 1, %s19
    %s33 = scalar_select %p30, %s32, %s19
    %p34 = scmp.ge.s32.totalorder %s33, 1
    %s35 = scalar_select %p34, 0, %s33
    %s36 = sadd.s32 1, %s18
    %s37 = scalar_select %p34, %s36, %s18
    %p38 = scmp.ge.s32.totalorder %s37, 1
    %s39 = scalar_select %p38, 0, %s37
    %s40 = sadd.s32 1, %s17
    %s41 = scalar_select %p38, %s40, %s17
    %p42 = scmp.ge.s32.totalorder %s41, 2
    %s43 = scalar_select %p42, 0, %s41
    %s44 = ssub.s32 %s17, %s43
    %s45 = ssub.s32 %s20, %s31
    %s46 = sor.u32 %s44, %s45
    %p47 = scmp.eq.s32.totalorder %s46, 0
    %s49 = sadd.s32 %s48, 1
    %s50 = scalar_select %p47, %s48, %s49
    %p53 = pneg %p47
    %p54 = scmp.eq.s32.totalorder %s10, 1
    %p55 = por %p53, %p54
    %p56 = scmp.ne.s32.totalorder %s48, %s51
    %p57 = scmp.eq.s32.totalorder %s10, 0
    %p58 = por %p56, %p57
    %p59 = scmp.ne.s32.totalorder %s48, %s51
    %p60 = scmp.eq.s32.totalorder %s15, 1
    %p61 = por %p59, %p60
    %p62 = scmp.ne.s32.totalorder %s51, %s52
    %p63 = scmp.eq.s32.totalorder %s15, 0
    %p64 = por %p62, %p63
    %p65 = scmp.ne.s32.totalorder %s51, %s52
    %p66 = scmp.eq.s32.totalorder %s16, 1
    %p67 = por %p65, %p66
    %p69 = scmp.ne.s32.totalorder %s52, %s68
    %p70 = scmp.eq.s32.totalorder %s16, 0
    %p71 = por %p69, %p70
    %s72 = ssub.s32 %s20, %s31
    %s73 = ssub.s32 %s19, %s35
    %s74 = sor.u32 %s72, %s73
    %p75 = scmp.eq.s32.totalorder %s74, 0
    %s77 = sadd.s32 %s76, 1
    %s78 = scalar_select %p75, %s76, %s77
    %p81 = pneg %p75
    %p82 = scmp.eq.s32.totalorder %s10, 1
    %p83 = por %p81, %p82
    %p84 = scmp.ne.s32.totalorder %s76, %s79
    %p85 = scmp.eq.s32.totalorder %s10, 0
    %p86 = por %p84, %p85
    %p87 = scmp.ne.s32.totalorder %s76, %s79
    %p88 = scmp.eq.s32.totalorder %s15, 1
    %p89 = por %p87, %p88
    %p90 = scmp.ne.s32.totalorder %s79, %s80
    %p91 = scmp.eq.s32.totalorder %s15, 0
    %p92 = por %p90, %p91
    %p93 = scmp.ne.s32.totalorder %s79, %s80
    %p94 = scmp.eq.s32.totalorder %s16, 1
    %p95 = por %p93, %p94
    %p97 = scmp.ne.s32.totalorder %s80, %s96
    %p98 = scmp.eq.s32.totalorder %s16, 0
    %p99 = por %p97, %p98
    %s100 = ssub.s32 %s19, %s35
    %p101 = scmp.eq.s32.totalorder %s100, 0
    %s103 = sadd.s32 %s102, 1
    %s104 = scalar_select %p101, %s102, %s103
    %p107 = pneg %p101
    %p108 = scmp.eq.s32.totalorder %s10, 1
    %p109 = por %p107, %p108
    %p110 = scmp.ne.s32.totalorder %s102, %s105
    %p111 = scmp.eq.s32.totalorder %s10, 0
    %p112 = por %p110, %p111
    %p113 = scmp.ne.s32.totalorder %s102, %s105
    %p114 = scmp.eq.s32.totalorder %s15, 1
    %p115 = por %p113, %p114
    %p116 = scmp.ne.s32.totalorder %s105, %s106
    %p117 = scmp.eq.s32.totalorder %s15, 0
    %p118 = por %p116, %p117
    %p119 = scmp.ne.s32.totalorder %s105, %s106
    %p120 = scmp.eq.s32.totalorder %s16, 1
    %p121 = por %p119, %p120
    %p123 = scmp.ne.s32.totalorder %s106, %s122
    %p124 = scmp.eq.s32.totalorder %s16, 0
    %p125 = por %p123, %p124
    %s126 = ssub.s32 %s19, %s35
    %p127 = scmp.eq.s32.totalorder %s126, 0
    %s129 = sadd.s32 %s128, 1
    %s130 = scalar_select %p127, %s128, %s129
    %p133 = pneg %p127
    %p134 = scmp.eq.s32.totalorder %s10, 1
    %p135 = por %p133, %p134
    %p136 = scmp.ne.s32.totalorder %s128, %s131
    %p137 = scmp.eq.s32.totalorder %s10, 0
    %p138 = por %p136, %p137
    %p139 = scmp.ne.s32.totalorder %s128, %s131
    %p140 = scmp.eq.s32.totalorder %s15, 1
    %p141 = por %p139, %p140
    %p142 = scmp.ne.s32.totalorder %s131, %s132
    %p143 = scmp.eq.s32.totalorder %s15, 0
    %p144 = por %p142, %p143
    %p145 = scmp.ne.s32.totalorder %s131, %s132
    %p146 = scmp.eq.s32.totalorder %s16, 1
    %p147 = por %p145, %p146
    %p149 = scmp.ne.s32.totalorder %s132, %s148
    %p150 = scmp.eq.s32.totalorder %s16, 0
    %p151 = por %p149, %p150
    %s152 = ssub.s32 %s17, %s43
    %s153 = ssub.s32 %s18, %s39
    %s154 = sor.u32 %s152, %s153
    %s155 = ssub.s32 %s19, %s35
    %s156 = sor.u32 %s154, %s155
    %p157 = scmp.eq.s32.totalorder %s156, 0
    %s159 = sadd.s32 %s158, 1
    %s160 = scalar_select %p157, %s158, %s159
    %p163 = pneg %p157
    %p164 = scmp.eq.s32.totalorder %s10, 1
    %p165 = por %p163, %p164
    %p166 = scmp.ne.s32.totalorder %s158, %s161
    %p167 = scmp.eq.s32.totalorder %s10, 0
    %p168 = por %p166, %p167
    %p169 = scmp.ne.s32.totalorder %s158, %s161
    %p170 = scmp.eq.s32.totalorder %s15, 1
    %p171 = por %p169, %p170
    %p172 = scmp.ne.s32.totalorder %s161, %s162
    %p173 = scmp.eq.s32.totalorder %s15, 0
    %p174 = por %p172, %p173
    %p175 = scmp.ne.s32.totalorder %s161, %s162
    %p176 = scmp.eq.s32.totalorder %s16, 1
    %p177 = por %p175, %p176
    %p179 = scmp.ne.s32.totalorder %s162, %s178
    %p180 = scmp.eq.s32.totalorder %s16, 0
    %p181 = por %p179, %p180
    %p182 = scmp.le.s32.totalorder 1, %s10
    %p183 = scmp.lt.s32.totalorder %s10, 3
    %p184 = pnand %p182, %p183
    %p185 = pneg %p184
    // Predicated region
    $region9: #{psp_forward.3} parent=5 // pred_check
      _
    $region10: #{psp_forward.3} parent=5 // pred_check_branch
      %187 = sbr.rel (%p184) target = $region12
    $region11: #{psp_forward.3} parent=5 // pred_region
      %s188 = ssub.s32 %s10, 1
      // Predicated region
      $region13: #{psp_forward.3} parent=11 // pred_check
        %p189 = pneg %p92
      $region14: #{psp_forward.3} parent=11 // pred_check_branch
        %191 = sbr.rel (%p189) target = $region16
      $region15: #{psp_forward.3} parent=11 // pred_region
        %s192 = smul.u32 16, %s24
        %p193 = scmp.lt.s32.totalorder %s192, 15
        %s194 = scalar_select %p193, %s192, 15
        %p195 = scmp.lt.s32.totalorder %s23, 0
        %s196 = scalar_select %p195, %s23, 0
        %s197 = sadd.s32 %s196, %s194
        %s198 = smul.addr %s197, 4
        %s199 = scalar_lea.vmem %s1, %s198
        %s200 = smul.u32 16, %s24
      $region16: #{psp_forward.3} parent=11 // pred_fallthru
        _
      // Predicated region
      $region17: #{psp_forward.3} parent=11 // pred_check
        %p201 = pneg %p118
      $region18: #{psp_forward.3} parent=11 // pred_check_branch
        %203 = sbr.rel (%p201) target = $region20
      $region19: #{psp_forward.3} parent=11 // pred_region
        %p204 = scmp.lt.s32.totalorder %s23, 0
        %s205 = scalar_select %p204, %s23, 0
        %s206 = scalar_lea.vmem %s2, %s205
      $region20: #{psp_forward.3} parent=11 // pred_fallthru
        _
      // Predicated region
      $region21: #{psp_forward.3} parent=11 // pred_check
        %p207 = pneg %p144
      $region22: #{psp_forward.3} parent=11 // pred_check_branch
        %209 = sbr.rel (%p207) target = $region24
      $region23: #{psp_forward.3} parent=11 // pred_region
        %p210 = scmp.lt.s32.totalorder %s23, 0
        %s211 = scalar_select %p210, %s23, 0
        %s212 = scalar_lea.vmem %s3, %s211
      $region24: #{psp_forward.3} parent=11 // pred_fallthru
        _
    $region12: #{psp_forward.3} parent=5 // pred_fallthru
      _
    %p213 = scmp.lt.s32.totalorder %s10, 2
    // Predicated region
    $region25: #{psp_forward.3} parent=5 // pred_check
      %p214 = pneg %p213
    $region26: #{psp_forward.3} parent=5 // pred_check_branch
      %216 = sbr.rel (%p214) target = $region28
    $region27: #{psp_forward.3} parent=5 // pred_region
      // Predicated region
      $region29: #{psp_forward.3} parent=27 // pred_check
        %p217 = pneg %p58
      $region30: #{psp_forward.3} parent=27 // pred_check_branch
        %219 = sbr.rel (%p217) target = $region32
      $region31: #{psp_forward.3} parent=27 // pred_region
        %p220 = scmp.lt.s32.totalorder %s17, 1
        %s221 = scalar_select %p220, %s17, 1
        %p222 = scmp.lt.s32.totalorder %s20, 0
        %s223 = scalar_select %p222, %s20, 0
        %s224 = smul.addr %s221, 42
        %s225 = sadd.s32 %s223, %s224
        %s226 = smul.addr %s225, 4
        %s227 = scalar_lea.vmem %s0, %s226
      $region32: #{psp_forward.3} parent=27 // pred_fallthru
        _
    $region28: #{psp_forward.3} parent=5 // pred_fallthru
      _
    %p228 = scmp.le.s32.totalorder 1, %s10
    %p229 = scmp.lt.s32.totalorder %s10, 3
    %p230 = pnand %p228, %p229
    %p231 = pneg %p230
    // Predicated region
    $region33: #{psp_forward.3} parent=5 // pred_check
      _
    $region34: #{psp_forward.3} parent=5 // pred_check_branch
      %233 = sbr.rel (%p230) target = $region36
    $region35: #{psp_forward.3} parent=5 // pred_region
      %s234 = ssub.s32 %s10, 1
      %p235 = scmp.lt.s32.totalorder %s21, 1
      %s236 = scalar_select %p235, %s21, 1
      %p237 = scmp.lt.s32.totalorder %s24, 0
      %s238 = scalar_select %p237, %s24, 0
      %s239 = smul.addr %s236, 42
      %s240 = sadd.s32 %s238, %s239
      %s241 = smul.addr %s240, 4
      %s242 = scalar_lea.vmem %s0, %s241
      %p243 = pneg %p64
      %p244 = pneg %p61
      %s245 = smul.u32 16, %s24
      %p246 = scmp.lt.s32.totalorder %s245, 15
      %s247 = scalar_select %p246, %s245, 15
      %p248 = scmp.lt.s32.totalorder %s23, 0
      %s249 = scalar_select %p248, %s23, 0
      %s250 = sadd.s32 %s249, %s247
      %s251 = smul.addr %s250, 4
      %s252 = scalar_lea.vmem %s1, %s251
      %p253 = pneg %p92
      %p254 = pneg %p89
      %p255 = scmp.lt.s32.totalorder %s23, 0
      %s256 = scalar_select %p255, %s23, 0
      %s257 = scalar_lea.vmem %s2, %s256
      %p258 = pneg %p118
      %p259 = pneg %p115
      %p260 = scmp.lt.s32.totalorder %s23, 0
      %s261 = scalar_select %p260, %s23, 0
      %s262 = scalar_lea.vmem %s3, %s261
      %p263 = pneg %p144
      %p264 = pneg %p141
      %p265 = pneg %p174
      %p266 = pneg %p171
      %s267 = smul.u32 36, %s22
      %p268 = scmp.lt.s32.totalorder %s21, 1
      %s269 = scalar_select %p268, %s21, 1
      %p270 = scmp.lt.s32.totalorder %s267, 35
      %s271 = scalar_select %p270, %s267, 35
      %p272 = scmp.lt.s32.totalorder %s23, 0
      %s273 = scalar_select %p272, %s23, 0
      %s274 = sadd.s32 %s273, %s271
      %s275 = smul.addr %s269, 36
      %s276 = sadd.s32 %s274, %s275
      %s277 = smul.addr %s276, 8
      %s278 = scalar_lea.vmem %s4, %s277
      %p279 = scmp.lt.s32.totalorder %s21, 1
      %s280 = scalar_select %p279, %s21, 1
      %p281 = scmp.lt.s32.totalorder %s24, 0
      %s282 = scalar_select %p281, %s24, 0
      %s283 = smul.addr %s280, 42
      %s284 = sadd.s32 %s282, %s283
      %s285 = smul.addr %s284, 4
      %s286 = scalar_lea.vmem %s0, %s285
      %s287 = smul.u32 16, %s24
      %p288 = scmp.lt.s32.totalorder %s287, 15
      %s289 = scalar_select %p288, %s287, 15
      %p290 = scmp.lt.s32.totalorder %s23, 0
      %s291 = scalar_select %p290, %s23, 0
      %s292 = sadd.s32 %s291, %s289
      %s293 = smul.addr %s292, 4
      %s294 = scalar_lea.vmem %s1, %s293
      %s295 = smul.u32 16, %s24
      %p296 = scmp.lt.s32.totalorder %s23, 0
      %s297 = scalar_select %p296, %s23, 0
      %s298 = scalar_lea.vmem %s2, %s297
      %p299 = scmp.lt.s32.totalorder %s23, 0
      %s300 = scalar_select %p299, %s23, 0
      %s301 = scalar_lea.vmem %s3, %s300
      %s302 = smul.u32 36, %s22
      %p303 = scmp.lt.s32.totalorder %s21, 1
      %s304 = scalar_select %p303, %s21, 1
      %p305 = scmp.lt.s32.totalorder %s302, 35
      %s306 = scalar_select %p305, %s302, 35
      %p307 = scmp.lt.s32.totalorder %s23, 0
      %s308 = scalar_select %p307, %s23, 0
      %s309 = sadd.s32 %s308, %s306
      %s310 = smul.addr %s304, 36
      %s311 = sadd.s32 %s309, %s310
      %s312 = smul.addr %s311, 8
      %s313 = scalar_lea.vmem %s4, %s312
      %s314 = smul.u32 36, %s22
      %p316 = scmp.eq.s32.totalorder %s24, 0
      // Predicated region
      $region37: #{psp_forward.3} parent=35 // pred_check
        %p317 = pneg %p316
      $region38: #{psp_forward.3} parent=35 // pred_check_branch
        %319 = sbr.rel (%p317) target = $region40
      $region39: #{psp_forward.3} parent=35 // pred_region
        %320 = vst [vmem:[#allocation2] sm:$0xff] 0.0
        %321 = vst [vmem:[#allocation2 + $0x8] sm:$0xff] 0.0
        %322 = vst [vmem:[#allocation2 + $0x10] sm:$0xff] 0.0
        %323 = vst [vmem:[#allocation2 + $0x18] sm:$0xff] 0.0
        %324 = vst [vmem:[#allocation2 + $0x20] sm:$0xff] 0.0
        %325 = vst [vmem:[#allocation2 + $0x28] sm:$0xff] 0.0
        %326 = vst [vmem:[#allocation2 + $0x30] sm:$0xff] 0.0
        %327 = vst [vmem:[#allocation2 + $0x38] sm:$0xff] 0.0
        %328 = vst [vmem:[#allocation2 + $0x40] sm:$0xff] 0.0
        %329 = vst [vmem:[#allocation2 + $0x48] sm:$0xff] 0.0
        %330 = vst [vmem:[#allocation2 + $0x50] sm:$0xff] 0.0
        %331 = vst [vmem:[#allocation2 + $0x58] sm:$0xff] 0.0
        %332 = vst [vmem:[#allocation2 + $0x60] sm:$0xff] 0.0
        %333 = vst [vmem:[#allocation2 + $0x68] sm:$0xff] 0.0
        %334 = vst [vmem:[#allocation2 + $0x70] sm:$0xff] 0.0
        %335 = vst [vmem:[#allocation2 + $0x78] sm:$0xff] 0.0
        %336 = vst [vmem:[#allocation2 + $0x80] sm:$0xff] 0.0
        %337 = vst [vmem:[#allocation2 + $0x88] sm:$0xff] 0.0
        %338 = vst [vmem:[#allocation2 + $0x90] sm:$0xff] 0.0
        %339 = vst [vmem:[#allocation2 + $0x98] sm:$0xff] 0.0
        %340 = vst [vmem:[#allocation2 + $0xa0] sm:$0xff] 0.0
        %341 = vst [vmem:[#allocation2 + $0xa8] sm:$0xff] 0.0
        %342 = vst [vmem:[#allocation2 + $0xb0] sm:$0xff] 0.0
        %343 = vst [vmem:[#allocation2 + $0xb8] sm:$0xff] 0.0
        %344 = vst [vmem:[#allocation2 + $0xc0] sm:$0xff] 0.0
        %345 = vst [vmem:[#allocation2 + $0xc8] sm:$0xff] 0.0
        %346 = vst [vmem:[#allocation2 + $0xd0] sm:$0xff] 0.0
        %347 = vst [vmem:[#allocation2 + $0xd8] sm:$0xff] 0.0
        %348 = vst [vmem:[#allocation2 + $0xe0] sm:$0xff] 0.0
        %349 = vst [vmem:[#allocation2 + $0xe8] sm:$0xff] 0.0
        %350 = vst [vmem:[#allocation2 + $0xf0] sm:$0xff] 0.0
        %351 = vst [vmem:[#allocation2 + $0xf8] sm:$0xff] 0.0
        %352 = vst [vmem:[#allocation2 + $0x100] sm:$0xff] 0.0
        %353 = vst [vmem:[#allocation2 + $0x108] sm:$0xff] 0.0
        %354 = vst [vmem:[#allocation2 + $0x110] sm:$0xff] 0.0
        %355 = vst [vmem:[#allocation2 + $0x118] sm:$0xff] 0.0
      $region40: #{psp_forward.3} parent=35 // pred_fallthru
        _
      %v356 = vld [vmem:[%s286] sm:$0xf]
      %v357 = vld [vmem:[%s286 + $0x4] sm:$0xf]
      %v358 = vld [vmem:[%s286 + $0x8] sm:$0xf]
      %v359 = vld [vmem:[%s286 + $0xc] sm:$0xf]
      %v360 = vld [vmem:[%s286 + $0x10] sm:$0xf]
      %v361 = vld [vmem:[%s286 + $0x14] sm:$0xf]
      %v362 = vld [vmem:[%s286 + $0x18] sm:$0xf]
      %v363 = vld [vmem:[%s286 + $0x1c] sm:$0xf]
      %v364 = vld [vmem:[%s286 + $0x20] sm:$0xf]
      %v365 = vld [vmem:[%s286 + $0x24] sm:$0xf]
      %v366 = vld [vmem:[%s286 + $0x28] sm:$0xf]
      %v367 = vld [vmem:[%s286 + $0x2c] sm:$0xf]
      %v368 = vld [vmem:[%s286 + $0x30] sm:$0xf]
      %v369 = vld [vmem:[%s286 + $0x34] sm:$0xf]
      %v370 = vld [vmem:[%s286 + $0x38] sm:$0xf]
      %v371 = vld [vmem:[%s286 + $0x3c] sm:$0xf]
      %v372 = vld [vmem:[%s286 + $0x40] sm:$0xf]
      %v373 = vld [vmem:[%s286 + $0x44] sm:$0xf]
      %v374 = vld [vmem:[%s286 + $0x48] sm:$0xf]
      %v375 = vld [vmem:[%s286 + $0x4c] sm:$0xf]
      %v376 = vld [vmem:[%s286 + $0x50] sm:$0xf]
      %v377 = vld [vmem:[%s286 + $0x54] sm:$0xf]
      %v378 = vld [vmem:[%s286 + $0x58] sm:$0xf]
      %v379 = vld [vmem:[%s286 + $0x5c] sm:$0xf]
      %v380 = vld [vmem:[%s286 + $0x60] sm:$0xf]
      %v381 = vld [vmem:[%s286 + $0x64] sm:$0xf]
      %v382 = vld [vmem:[%s286 + $0x68] sm:$0xf]
      %v383 = vld [vmem:[%s286 + $0x6c] sm:$0xf]
      %v384 = vld [vmem:[%s286 + $0x70] sm:$0xf]
      %v385 = vld [vmem:[%s286 + $0x74] sm:$0xf]
      %v386 = vld [vmem:[%s286 + $0x78] sm:$0xf]
      %v387 = vld [vmem:[%s286 + $0x7c] sm:$0xf]
      %v388 = vld [vmem:[%s286 + $0x80] sm:$0xf]
      %v389 = vld [vmem:[%s286 + $0x84] sm:$0xf]
      %v390 = vld [vmem:[%s286 + $0x88] sm:$0xf]
      %v391 = vld [vmem:[%s286 + $0x8c] sm:$0xf]
      %v392 = vld [vmem:[#allocation2] sm:$0xff]
      %v393 = vld [vmem:[#allocation2 + $0x8] sm:$0xff]
      %v394 = vld [vmem:[#allocation2 + $0x10] sm:$0xff]
      %v395 = vld [vmem:[#allocation2 + $0x18] sm:$0xff]
      %v396 = vld [vmem:[#allocation2 + $0x20] sm:$0xff]
      %v397 = vld [vmem:[#allocation2 + $0x28] sm:$0xff]
      %v398 = vld [vmem:[#allocation2 + $0x30] sm:$0xff]
      %v399 = vld [vmem:[#allocation2 + $0x38] sm:$0xff]
      %v400 = vld [vmem:[#allocation2 + $0x40] sm:$0xff]
      %v401 = vld [vmem:[#allocation2 + $0x48] sm:$0xff]
      %v402 = vld [vmem:[#allocation2 + $0x50] sm:$0xff]
      %v403 = vld [vmem:[#allocation2 + $0x58] sm:$0xff]
      %v404 = vld [vmem:[#allocation2 + $0x60] sm:$0xff]
      %v405 = vld [vmem:[#allocation2 + $0x68] sm:$0xff]
      %v406 = vld [vmem:[#allocation2 + $0x70] sm:$0xff]
      %v407 = vld [vmem:[#allocation2 + $0x78] sm:$0xff]
      %v408 = vld [vmem:[#allocation2 + $0x80] sm:$0xff]
      %v409 = vld [vmem:[#allocation2 + $0x88] sm:$0xff]
      %v410 = vld [vmem:[#allocation2 + $0x90] sm:$0xff]
      %v411 = vld [vmem:[#allocation2 + $0x98] sm:$0xff]
      %v412 = vld [vmem:[#allocation2 + $0xa0] sm:$0xff]
      %v413 = vld [vmem:[#allocation2 + $0xa8] sm:$0xff]
      %v414 = vld [vmem:[#allocation2 + $0xb0] sm:$0xff]
      %v415 = vld [vmem:[#allocation2 + $0xb8] sm:$0xff]
      %v416 = vld [vmem:[#allocation2 + $0xc0] sm:$0xff]
      %v417 = vld [vmem:[#allocation2 + $0xc8] sm:$0xff]
      %v418 = vld [vmem:[#allocation2 + $0xd0] sm:$0xff]
      %v419 = vld [vmem:[#allocation2 + $0xd8] sm:$0xff]
      %v420 = vld [vmem:[#allocation2 + $0xe0] sm:$0xff]
      %v421 = vld [vmem:[#allocation2 + $0xe8] sm:$0xff]
      %v422 = vld [vmem:[#allocation2 + $0xf0] sm:$0xff]
      %v423 = vld [vmem:[#allocation2 + $0xf8] sm:$0xff]
      %v424 = vld [vmem:[#allocation2 + $0x100] sm:$0xff]
      %v425 = vld [vmem:[#allocation2 + $0x108] sm:$0xff]
      %v426 = vld [vmem:[#allocation2 + $0x110] sm:$0xff]
      %v427 = vld [vmem:[#allocation2 + $0x118] sm:$0xff]
      %v428 = vld [vmem:[%s294] sm:$0xf]
      %v429 = vld [vmem:[%s294 + $0x4] sm:$0xf]
      %v430 = vld [vmem:[%s294 + $0x8] sm:$0xf]
      %v431 = vld [vmem:[%s294 + $0xc] sm:$0xf]
      %v432 = vld [vmem:[%s294 + $0x10] sm:$0xf]
      %v433 = vld [vmem:[%s294 + $0x14] sm:$0xf]
      %v434 = vld [vmem:[%s294 + $0x18] sm:$0xf]
      %v435 = vld [vmem:[%s294 + $0x1c] sm:$0xf]
      %v436 = vld [vmem:[%s294 + $0x20] sm:$0xf]
      %v437 = vld [vmem:[%s294 + $0x24] sm:$0xf]
      %v438 = vld [vmem:[%s294 + $0x28] sm:$0xf]
      %v439 = vld [vmem:[%s294 + $0x2c] sm:$0xf]
      %v440 = vld [vmem:[%s294 + $0x30] sm:$0xf]
      %v441 = vld [vmem:[%s294 + $0x34] sm:$0xf]
      %v442 = vld [vmem:[%s294 + $0x38] sm:$0xf]
      %v443 = vld [vmem:[%s294 + $0x3c] sm:$0xf]
      %v480 = vunpack.c.l.b16 %v356
      %v481 = vunpack.c.l.b16 %v357
      %v482 = vunpack.c.l.b16 %v358
      %v483 = vunpack.c.l.b16 %v359
      %v484 = vunpack.c.l.b16 %v360
      %v485 = vunpack.c.l.b16 %v361
      %v486 = vunpack.c.l.b16 %v362
      %v487 = vunpack.c.l.b16 %v363
      %v488 = vunpack.c.l.b16 %v364
      %v489 = vunpack.c.l.b16 %v365
      %v490 = vunpack.c.l.b16 %v366
      %v491 = vunpack.c.l.b16 %v367
      %v492 = vunpack.c.l.b16 %v368
      %v493 = vunpack.c.l.b16 %v369
      %v494 = vunpack.c.l.b16 %v370
      %v495 = vunpack.c.l.b16 %v371
      %v496 = vunpack.c.l.b16 %v372
      %v497 = vunpack.c.l.b16 %v373
      %v498 = vunpack.c.l.b16 %v374
      %v499 = vunpack.c.l.b16 %v375
      %v500 = vunpack.c.l.b16 %v376
      %v501 = vunpack.c.l.b16 %v377
      %v502 = vunpack.c.l.b16 %v378
      %v503 = vunpack.c.l.b16 %v379
      %v504 = vunpack.c.l.b16 %v380
      %v505 = vunpack.c.l.b16 %v381
      %v506 = vunpack.c.l.b16 %v382
      %v507 = vunpack.c.l.b16 %v383
      %v508 = vunpack.c.l.b16 %v384
      %v509 = vunpack.c.l.b16 %v385
      %v510 = vunpack.c.l.b16 %v386
      %v511 = vunpack.c.l.b16 %v387
      %v512 = vunpack.c.l.b16 %v388
      %v513 = vunpack.c.l.b16 %v389
      %v514 = vunpack.c.l.b16 %v390
      %v515 = vunpack.c.l.b16 %v391
      %v516 = vpack.c.b16 %v481, %v480
      %v517 = vpack.c.b16 %v483, %v482
      %v518 = vpack.c.b16 %v485, %v484
      %v519 = vpack.c.b16 %v487, %v486
      %v520 = vpack.c.b16 %v489, %v488
      %v521 = vpack.c.b16 %v491, %v490
      %v522 = vpack.c.b16 %v493, %v492
      %v523 = vpack.c.b16 %v495, %v494
      %v524 = vpack.c.b16 %v497, %v496
      %v525 = vpack.c.b16 %v499, %v498
      %v526 = vpack.c.b16 %v501, %v500
      %v527 = vpack.c.b16 %v503, %v502
      %v528 = vpack.c.b16 %v505, %v504
      %v529 = vpack.c.b16 %v507, %v506
      %v530 = vpack.c.b16 %v509, %v508
      %v531 = vpack.c.b16 %v511, %v510
      %v532 = vpack.c.b16 %v513, %v512
      %v533 = vpack.c.b16 %v515, %v514
      %v568 = vunpack.c.l.b16 %v428
      %v569 = vunpack.c.l.b16 %v429
      %v570 = vunpack.c.l.b16 %v430
      %v571 = vunpack.c.l.b16 %v431
      %v572 = vunpack.c.l.b16 %v432
      %v573 = vunpack.c.l.b16 %v433
      %v574 = vunpack.c.l.b16 %v434
      %v575 = vunpack.c.l.b16 %v435
      %v576 = vunpack.c.l.b16 %v436
      %v577 = vunpack.c.l.b16 %v437
      %v578 = vunpack.c.l.b16 %v438
      %v579 = vunpack.c.l.b16 %v439
      %v580 = vunpack.c.l.b16 %v440
      %v581 = vunpack.c.l.b16 %v441
      %v582 = vunpack.c.l.b16 %v442
      %v583 = vunpack.c.l.b16 %v443
      %v584 = vpack.c.b16 %v569, %v568
      %v585 = vpack.c.b16 %v571, %v570
      %v586 = vpack.c.b16 %v573, %v572
      %v587 = vpack.c.b16 %v575, %v574
      %v588 = vpack.c.b16 %v577, %v576
      %v589 = vpack.c.b16 %v579, %v578
      %v590 = vpack.c.b16 %v581, %v580
      %v591 = vpack.c.b16 %v583, %v582
      %600 = vmatprep.subr.bf16.mxu0 0
      %601 = vmatpush1.bf16.msra.mxu0 %v584
      %602 = vmatprep.subr.bf16.mxu0 0
      %603 = vmatpush1.bf16.msra.mxu0 %v585
      %604 = vmatprep.subr.bf16.mxu0 0
      %605 = vmatpush1.bf16.msra.mxu0 %v586
      %606 = vmatprep.subr.bf16.mxu0 0
      %607 = vmatpush1.bf16.msra.mxu0 %v587
      %608 = vmatprep.subr.bf16.mxu0 0
      %609 = vmatpush1.bf16.msra.mxu0 %v588
      %610 = vmatprep.subr.bf16.mxu0 0
      %611 = vmatpush1.bf16.msra.mxu0 %v589
      %612 = vmatprep.subr.bf16.mxu0 0
      %613 = vmatpush1.bf16.msra.mxu0 %v590
      %614 = vmatprep.subr.bf16.mxu0 0
      %615 = vmatpush1.bf16.msra.mxu0 %v591
      %616 = vmatprep.subr.bf16.mxu0 0
      %617 = vmatpush1.bf16.msra.mxu0 0
      %618 = vmatprep.subr.bf16.mxu0 0
      %619 = vmatpush1.bf16.msra.mxu0 0
      %620 = vmatprep.subr.bf16.mxu0 0
      %621 = vmatpush1.bf16.msra.mxu0 0
      %622 = vmatprep.subr.bf16.mxu0 0
      %623 = vmatpush1.bf16.msra.mxu0 0
      %624 = vmatprep.subr.bf16.mxu0 0
      %625 = vmatpush1.bf16.msra.mxu0 0
      %626 = vmatprep.subr.bf16.mxu0 0
      %627 = vmatpush1.bf16.msra.mxu0 0
      %628 = vmatprep.subr.bf16.mxu0 0
      %629 = vmatpush1.bf16.msra.mxu0 0
      %630 = vmatprep.subr.bf16.mxu0 0
      %631 = vmatpush1.bf16.msra.mxu0 0
      %632 = vmatprep.mubr.bf16.mxu0 0
      %633 = vmatmul.mubr.bf16.gmra.mrb[0].mxu0 %v516
      %v634 = vpop.f32.mrb[0].mxu0
      %v635 = vadd.f32 0.0, %v634
      %v636 = vpop.f32.mrb[0].mxu0
      %v637 = vpop.f32.mrb[0].mxu0
      %v638 = vadd.f32 0.0, %v637
      %v639 = vpop.f32.mrb[0].mxu0
      %640 = vmatprep.mubr.bf16.mxu0 0
      %641 = vmatmul.mubr.bf16.gmra.mrb[0].mxu0 %v517
      %v642 = vpop.f32.mrb[0].mxu0
      %v643 = vadd.f32 0.0, %v642
      %v644 = vpop.f32.mrb[0].mxu0
      %v645 = vpop.f32.mrb[0].mxu0
      %v646 = vadd.f32 0.0, %v645
      %v647 = vpop.f32.mrb[0].mxu0
      %648 = vmatprep.mubr.bf16.mxu0 0
      %649 = vmatmul.mubr.bf16.gmra.mrb[0].mxu0 %v518
      %v650 = vpop.f32.mrb[0].mxu0
      %v651 = vadd.f32 0.0, %v650
      %v652 = vpop.f32.mrb[0].mxu0
      %v653 = vpop.f32.mrb[0].mxu0
      %v654 = vadd.f32 0.0, %v653
      %v655 = vpop.f32.mrb[0].mxu0
      %656 = vmatprep.mubr.bf16.mxu0 0
      %657 = vmatmul.mubr.bf16.gmra.mrb[0].mxu0 %v519
      %v658 = vpop.f32.mrb[0].mxu0
      %v659 = vadd.f32 0.0, %v658
      %v660 = vpop.f32.mrb[0].mxu0
      %v661 = vpop.f32.mrb[0].mxu0
      %v662 = vadd.f32 0.0, %v661
      %v663 = vpop.f32.mrb[0].mxu0
      %664 = vmatprep.mubr.bf16.mxu0 0
      %665 = vmatmul.mubr.bf16.gmra.mrb[0].mxu0 %v520
      %v666 = vpop.f32.mrb[0].mxu0
      %v667 = vadd.f32 0.0, %v666
      %v668 = vpop.f32.mrb[0].mxu0
      %v669 = vpop.f32.mrb[0].mxu0
      %v670 = vadd.f32 0.0, %v669
      %v671 = vpop.f32.mrb[0].mxu0
      %672 = vmatprep.mubr.bf16.mxu0 0
      %673 = vmatmul.mubr.bf16.gmra.mrb[0].mxu0 %v521
      %v674 = vpop.f32.mrb[0].mxu0
      %v675 = vadd.f32 0.0, %v674
      %v676 = vpop.f32.mrb[0].mxu0
      %v677 = vpop.f32.mrb[0].mxu0
      %v678 = vadd.f32 0.0, %v677
      %v679 = vpop.f32.mrb[0].mxu0
      %680 = vmatprep.mubr.bf16.mxu0 0
      %681 = vmatmul.mubr.bf16.gmra.mrb[0].mxu0 %v522
      %v682 = vpop.f32.mrb[0].mxu0
      %v683 = vadd.f32 0.0, %v682
      %v684 = vpop.f32.mrb[0].mxu0
      %v685 = vpop.f32.mrb[0].mxu0
      %v686 = vadd.f32 0.0, %v685
      %v687 = vpop.f32.mrb[0].mxu0
      %688 = vmatprep.mubr.bf16.mxu0 0
      %689 = vmatmul.mubr.bf16.gmra.mrb[0].mxu0 %v523
      %v690 = vpop.f32.mrb[0].mxu0
      %v691 = vadd.f32 0.0, %v690
      %v692 = vpop.f32.mrb[0].mxu0
      %v693 = vpop.f32.mrb[0].mxu0
      %v694 = vadd.f32 0.0, %v693
      %v695 = vpop.f32.mrb[0].mxu0
      %696 = vmatprep.mubr.bf16.mxu0 0
      %697 = vmatmul.mubr.bf16.gmra.mrb[0].mxu0 %v524
      %v698 = vpop.f32.mrb[0].mxu0
      %v699 = vadd.f32 0.0, %v698
      %v700 = vpop.f32.mrb[0].mxu0
      %v701 = vpop.f32.mrb[0].mxu0
      %v702 = vadd.f32 0.0, %v701
      %v703 = vpop.f32.mrb[0].mxu0
      %704 = vmatprep.mubr.bf16.mxu0 0
      %705 = vmatmul.mubr.bf16.gmra.mrb[0].mxu0 %v525
      %v706 = vpop.f32.mrb[0].mxu0
      %v707 = vadd.f32 0.0, %v706
      %v708 = vpop.f32.mrb[0].mxu0
      %v709 = vpop.f32.mrb[0].mxu0
      %v710 = vadd.f32 0.0, %v709
      %v711 = vpop.f32.mrb[0].mxu0
      %712 = vmatprep.mubr.bf16.mxu0 0
      %713 = vmatmul.mubr.bf16.gmra.mrb[0].mxu0 %v526
      %v714 = vpop.f32.mrb[0].mxu0
      %v715 = vadd.f32 0.0, %v714
      %v716 = vpop.f32.mrb[0].mxu0
      %v717 = vpop.f32.mrb[0].mxu0
      %v718 = vadd.f32 0.0, %v717
      %v719 = vpop.f32.mrb[0].mxu0
      %720 = vmatprep.mubr.bf16.mxu0 0
      %721 = vmatmul.mubr.bf16.gmra.mrb[0].mxu0 %v527
      %v722 = vpop.f32.mrb[0].mxu0
      %v723 = vadd.f32 0.0, %v722
      %v724 = vpop.f32.mrb[0].mxu0
      %v725 = vpop.f32.mrb[0].mxu0
      %v726 = vadd.f32 0.0, %v725
      %v727 = vpop.f32.mrb[0].mxu0
      %728 = vmatprep.mubr.bf16.mxu0 0
      %729 = vmatmul.mubr.bf16.gmra.mrb[0].mxu0 %v528
      %v730 = vpop.f32.mrb[0].mxu0
      %v731 = vadd.f32 0.0, %v730
      %v732 = vpop.f32.mrb[0].mxu0
      %v733 = vpop.f32.mrb[0].mxu0
      %v734 = vadd.f32 0.0, %v733
      %v735 = vpop.f32.mrb[0].mxu0
      %736 = vmatprep.mubr.bf16.mxu0 0
      %737 = vmatmul.mubr.bf16.gmra.mrb[0].mxu0 %v529
      %v738 = vpop.f32.mrb[0].mxu0
      %v739 = vadd.f32 0.0, %v738
      %v740 = vpop.f32.mrb[0].mxu0
      %v741 = vpop.f32.mrb[0].mxu0
      %v742 = vadd.f32 0.0, %v741
      %v743 = vpop.f32.mrb[0].mxu0
      %744 = vmatprep.mubr.bf16.mxu0 0
      %745 = vmatmul.mubr.bf16.gmra.mrb[0].mxu0 %v530
      %v746 = vpop.f32.mrb[0].mxu0
      %v747 = vadd.f32 0.0, %v746
      %v748 = vpop.f32.mrb[0].mxu0
      %v749 = vpop.f32.mrb[0].mxu0
      %v750 = vadd.f32 0.0, %v749
      %v751 = vpop.f32.mrb[0].mxu0
      %752 = vmatprep.mubr.bf16.mxu0 0
      %753 = vmatmul.mubr.bf16.gmra.mrb[0].mxu0 %v531
      %v754 = vpop.f32.mrb[0].mxu0
      %v755 = vadd.f32 0.0, %v754
      %v756 = vpop.f32.mrb[0].mxu0
      %v757 = vpop.f32.mrb[0].mxu0
      %v758 = vadd.f32 0.0, %v757
      %v759 = vpop.f32.mrb[0].mxu0
      %760 = vmatprep.mubr.bf16.mxu0 0
      %761 = vmatmul.mubr.bf16.gmra.mrb[0].mxu0 %v532
      %v762 = vpop.f32.mrb[0].mxu0
      %v763 = vadd.f32 0.0, %v762
      %v764 = vpop.f32.mrb[0].mxu0
      %v765 = vpop.f32.mrb[0].mxu0
      %v766 = vadd.f32 0.0, %v765
      %v767 = vpop.f32.mrb[0].mxu0
      %768 = vmatprep.mubr.bf16.mxu0 0
      %769 = vmatmul.mubr.bf16.gmra.mrb[0].mxu0 %v533
      %v770 = vpop.f32.mrb[0].mxu0
      %v771 = vadd.f32 0.0, %v770
      %v772 = vpop.f32.mrb[0].mxu0
      %v773 = vpop.f32.mrb[0].mxu0
      %v774 = vadd.f32 0.0, %v773
      %v775 = vpop.f32.mrb[0].mxu0
      %776 = vdwg.mxu0
      %v777 = vadd.f32 %v392, %v635
      %v778 = vadd.f32 %v393, %v638
      %v779 = vadd.f32 %v394, %v643
      %v780 = vadd.f32 %v395, %v646
      %v781 = vadd.f32 %v396, %v651
      %v782 = vadd.f32 %v397, %v654
      %v783 = vadd.f32 %v398, %v659
      %v784 = vadd.f32 %v399, %v662
      %v785 = vadd.f32 %v400, %v667
      %v786 = vadd.f32 %v401, %v670
      %v787 = vadd.f32 %v402, %v675
      %v788 = vadd.f32 %v403, %v678
      %v789 = vadd.f32 %v404, %v683
      %v790 = vadd.f32 %v405, %v686
      %v791 = vadd.f32 %v406, %v691
      %v792 = vadd.f32 %v407, %v694
      %v793 = vadd.f32 %v408, %v699
      %v794 = vadd.f32 %v409, %v702
      %v795 = vadd.f32 %v410, %v707
      %v796 = vadd.f32 %v411, %v710
      %v797 = vadd.f32 %v412, %v715
      %v798 = vadd.f32 %v413, %v718
      %v799 = vadd.f32 %v414, %v723
      %v800 = vadd.f32 %v415, %v726
      %v801 = vadd.f32 %v416, %v731
      %v802 = vadd.f32 %v417, %v734
      %v803 = vadd.f32 %v418, %v739
      %v804 = vadd.f32 %v419, %v742
      %v805 = vadd.f32 %v420, %v747
      %v806 = vadd.f32 %v421, %v750
      %v807 = vadd.f32 %v422, %v755
      %v808 = vadd.f32 %v423, %v758
      %v809 = vadd.f32 %v424, %v763
      %v810 = vadd.f32 %v425, %v766
      %v811 = vadd.f32 %v426, %v771
      %v812 = vadd.f32 %v427, %v774
      %813 = vst [vmem:[#allocation2] sm:$0xff] %v777
      %814 = vst [vmem:[#allocation2 + $0x8] sm:$0xff] %v778
      %815 = vst [vmem:[#allocation2 + $0x10] sm:$0xff] %v779
      %816 = vst [vmem:[#allocation2 + $0x18] sm:$0xff] %v780
      %817 = vst [vmem:[#allocation2 + $0x20] sm:$0xff] %v781
      %818 = vst [vmem:[#allocation2 + $0x28] sm:$0xff] %v782
      %819 = vst [vmem:[#allocation2 + $0x30] sm:$0xff] %v783
      %820 = vst [vmem:[#allocation2 + $0x38] sm:$0xff] %v784
      %821 = vst [vmem:[#allocation2 + $0x40] sm:$0xff] %v785
      %822 = vst [vmem:[#allocation2 + $0x48] sm:$0xff] %v786
      %823 = vst [vmem:[#allocation2 + $0x50] sm:$0xff] %v787
      %824 = vst [vmem:[#allocation2 + $0x58] sm:$0xff] %v788
      %825 = vst [vmem:[#allocation2 + $0x60] sm:$0xff] %v789
      %826 = vst [vmem:[#allocation2 + $0x68] sm:$0xff] %v790
      %827 = vst [vmem:[#allocation2 + $0x70] sm:$0xff] %v791
      %828 = vst [vmem:[#allocation2 + $0x78] sm:$0xff] %v792
      %829 = vst [vmem:[#allocation2 + $0x80] sm:$0xff] %v793
      %830 = vst [vmem:[#allocation2 + $0x88] sm:$0xff] %v794
      %831 = vst [vmem:[#allocation2 + $0x90] sm:$0xff] %v795
      %832 = vst [vmem:[#allocation2 + $0x98] sm:$0xff] %v796
      %833 = vst [vmem:[#allocation2 + $0xa0] sm:$0xff] %v797
      %834 = vst [vmem:[#allocation2 + $0xa8] sm:$0xff] %v798
      %835 = vst [vmem:[#allocation2 + $0xb0] sm:$0xff] %v799
      %836 = vst [vmem:[#allocation2 + $0xb8] sm:$0xff] %v800
      %837 = vst [vmem:[#allocation2 + $0xc0] sm:$0xff] %v801
      %838 = vst [vmem:[#allocation2 + $0xc8] sm:$0xff] %v802
      %839 = vst [vmem:[#allocation2 + $0xd0] sm:$0xff] %v803
      %840 = vst [vmem:[#allocation2 + $0xd8] sm:$0xff] %v804
      %841 = vst [vmem:[#allocation2 + $0xe0] sm:$0xff] %v805
      %842 = vst [vmem:[#allocation2 + $0xe8] sm:$0xff] %v806
      %843 = vst [vmem:[#allocation2 + $0xf0] sm:$0xff] %v807
      %844 = vst [vmem:[#allocation2 + $0xf8] sm:$0xff] %v808
      %845 = vst [vmem:[#allocation2 + $0x100] sm:$0xff] %v809
      %846 = vst [vmem:[#allocation2 + $0x108] sm:$0xff] %v810
      %847 = vst [vmem:[#allocation2 + $0x110] sm:$0xff] %v811
      %848 = vst [vmem:[#allocation2 + $0x118] sm:$0xff] %v812
      %v849 = vld [vmem:[%s286] sm:$0xf]
      %v850 = vld [vmem:[%s286 + $0x4] sm:$0xf]
      %v851 = vld [vmem:[%s286 + $0x8] sm:$0xf]
      %v852 = vld [vmem:[%s286 + $0xc] sm:$0xf]
      %v853 = vld [vmem:[%s286 + $0x10] sm:$0xf]
      %v854 = vld [vmem:[%s286 + $0x14] sm:$0xf]
      %v855 = vld [vmem:[%s286 + $0x18] sm:$0xf]
      %v856 = vld [vmem:[%s286 + $0x1c] sm:$0xf]
      %v857 = vld [vmem:[%s286 + $0x20] sm:$0xf]
      %v858 = vld [vmem:[%s286 + $0x24] sm:$0xf]
      %v859 = vld [vmem:[%s286 + $0x28] sm:$0xf]
      %v860 = vld [vmem:[%s286 + $0x2c] sm:$0xf]
      %v861 = vld [vmem:[%s286 + $0x30] sm:$0xf]
      %v862 = vld [vmem:[%s286 + $0x34] sm:$0xf]
      %v863 = vld [vmem:[%s286 + $0x38] sm:$0xf]
      %v864 = vld [vmem:[%s286 + $0x3c] sm:$0xf]
      %v865 = vld [vmem:[%s286 + $0x40] sm:$0xf]
      %v866 = vld [vmem:[%s286 + $0x44] sm:$0xf]
      %v867 = vld [vmem:[%s286 + $0x48] sm:$0xf]
      %v868 = vld [vmem:[%s286 + $0x4c] sm:$0xf]
      %v869 = vld [vmem:[%s286 + $0x50] sm:$0xf]
      %v870 = vld [vmem:[%s286 + $0x54] sm:$0xf]
      %v871 = vld [vmem:[%s286 + $0x58] sm:$0xf]
      %v872 = vld [vmem:[%s286 + $0x5c] sm:$0xf]
      %v873 = vld [vmem:[%s286 + $0x60] sm:$0xf]
      %v874 = vld [vmem:[%s286 + $0x64] sm:$0xf]
      %v875 = vld [vmem:[%s286 + $0x68] sm:$0xf]
      %v876 = vld [vmem:[%s286 + $0x6c] sm:$0xf]
      %v877 = vld [vmem:[%s286 + $0x70] sm:$0xf]
      %v878 = vld [vmem:[%s286 + $0x74] sm:$0xf]
      %v879 = vld [vmem:[%s286 + $0x78] sm:$0xf]
      %v880 = vld [vmem:[%s286 + $0x7c] sm:$0xf]
      %v881 = vld [vmem:[%s286 + $0x80] sm:$0xf]
      %v882 = vld [vmem:[%s286 + $0x84] sm:$0xf]
      %v883 = vld [vmem:[%s286 + $0x88] sm:$0xf]
      %v884 = vld [vmem:[%s286 + $0x8c] sm:$0xf]
      %v885 = vld [vmem:[%s286 + $0x90] sm:$0x1]
      %v886 = vld [vmem:[#allocation2] sm:$0xff]
      %v887 = vld [vmem:[#allocation2 + $0x8] sm:$0xff]
      %v888 = vld [vmem:[#allocation2 + $0x10] sm:$0xff]
      %v889 = vld [vmem:[#allocation2 + $0x18] sm:$0xff]
      %v890 = vld [vmem:[#allocation2 + $0x20] sm:$0xff]
      %v891 = vld [vmem:[#allocation2 + $0x28] sm:$0xff]
      %v892 = vld [vmem:[#allocation2 + $0x30] sm:$0xff]
      %v893 = vld [vmem:[#allocation2 + $0x38] sm:$0xff]
      %v894 = vld [vmem:[#allocation2 + $0x40] sm:$0xff]
      %v895 = vld [vmem:[#allocation2 + $0x48] sm:$0xff]
      %v896 = vld [vmem:[#allocation2 + $0x50] sm:$0xff]
      %v897 = vld [vmem:[#allocation2 + $0x58] sm:$0xff]
      %v898 = vld [vmem:[#allocation2 + $0x60] sm:$0xff]
      %v899 = vld [vmem:[#allocation2 + $0x68] sm:$0xff]
      %v900 = vld [vmem:[#allocation2 + $0x70] sm:$0xff]
      %v901 = vld [vmem:[#allocation2 + $0x78] sm:$0xff]
      %v902 = vld [vmem:[#allocation2 + $0x80] sm:$0xff]
      %v903 = vld [vmem:[#allocation2 + $0x88] sm:$0xff]
      %v904 = vld [vmem:[#allocation2 + $0x90] sm:$0xff]
      %v905 = vld [vmem:[#allocation2 + $0x98] sm:$0xff]
      %v906 = vld [vmem:[#allocation2 + $0xa0] sm:$0xff]
      %v907 = vld [vmem:[#allocation2 + $0xa8] sm:$0xff]
      %v908 = vld [vmem:[#allocation2 + $0xb0] sm:$0xff]
      %v909 = vld [vmem:[#allocation2 + $0xb8] sm:$0xff]
      %v910 = vld [vmem:[#allocation2 + $0xc0] sm:$0xff]
      %v911 = vld [vmem:[#allocation2 + $0xc8] sm:$0xff]
      %v912 = vld [vmem:[#allocation2 + $0xd0] sm:$0xff]
      %v913 = vld [vmem:[#allocation2 + $0xd8] sm:$0xff]
      %v914 = vld [vmem:[#allocation2 + $0xe0] sm:$0xff]
      %v915 = vld [vmem:[#allocation2 + $0xe8] sm:$0xff]
      %v916 = vld [vmem:[#allocation2 + $0xf0] sm:$0xff]
      %v917 = vld [vmem:[#allocation2 + $0xf8] sm:$0xff]
      %v918 = vld [vmem:[#allocation2 + $0x100] sm:$0xff]
      %v919 = vld [vmem:[#allocation2 + $0x108] sm:$0xff]
      %v920 = vld [vmem:[#allocation2 + $0x110] sm:$0xff]
      %v921 = vld [vmem:[#allocation2 + $0x118] sm:$0xff]
      %s922 = scalar_lea.vmem %s294, 64
      %v923 = vld [vmem:[%s922] sm:$0xf]
      %v924 = vld [vmem:[%s922 + $0x4] sm:$0xf]
      %v925 = vld [vmem:[%s922 + $0x8] sm:$0xf]
      %v926 = vld [vmem:[%s922 + $0xc] sm:$0xf]
      %v927 = vld [vmem:[%s922 + $0x10] sm:$0xf]
      %v928 = vld [vmem:[%s922 + $0x14] sm:$0xf]
      %v929 = vld [vmem:[%s922 + $0x18] sm:$0xf]
      %v930 = vld [vmem:[%s922 + $0x1c] sm:$0xf]
      %v931 = vld [vmem:[%s922 + $0x20] sm:$0xf]
      %v932 = vld [vmem:[%s922 + $0x24] sm:$0xf]
      %v933 = vld [vmem:[%s922 + $0x28] sm:$0xf]
      %v934 = vld [vmem:[%s922 + $0x2c] sm:$0xf]
      %v935 = vld [vmem:[%s922 + $0x30] sm:$0xf]
      %v936 = vld [vmem:[%s922 + $0x34] sm:$0xf]
      %v937 = vld [vmem:[%s922 + $0x38] sm:$0xf]
      %v938 = vld [vmem:[%s922 + $0x3c] sm:$0xf]
      %v976 = vunpack.c.l.b16 %v849
      %v977 = vunpack.c.l.b16 %v850
      %v978 = vunpack.c.l.b16 %v851
      %v979 = vunpack.c.l.b16 %v852
      %v980 = vunpack.c.l.b16 %v853
      %v981 = vunpack.c.l.b16 %v854
      %v982 = vunpack.c.l.b16 %v855
      %v983 = vunpack.c.l.b16 %v856
      %v984 = vunpack.c.l.b16 %v857
      %v985 = vunpack.c.l.b16 %v858
      %v986 = vunpack.c.l.b16 %v859
      %v987 = vunpack.c.l.b16 %v860
      %v988 = vunpack.c.l.b16 %v861
      %v989 = vunpack.c.l.b16 %v862
      %v990 = vunpack.c.l.b16 %v863
      %v991 = vunpack.c.l.b16 %v864
      %v992 = vunpack.c.l.b16 %v865
      %v993 = vunpack.c.l.b16 %v866
      %v994 = vunpack.c.l.b16 %v867
      %v995 = vunpack.c.l.b16 %v868
      %v996 = vunpack.c.l.b16 %v869
      %v997 = vunpack.c.l.b16 %v870
      %v998 = vunpack.c.l.b16 %v871
      %v999 = vunpack.c.l.b16 %v872
      %v1000 = vunpack.c.l.b16 %v873
      %v1001 = vunpack.c.l.b16 %v874
      %v1002 = vunpack.c.l.b16 %v875
      %v1003 = vunpack.c.l.b16 %v876
      %v1004 = vunpack.c.l.b16 %v877
      %v1005 = vunpack.c.l.b16 %v878
      %v1006 = vunpack.c.l.b16 %v879
      %v1007 = vunpack.c.l.b16 %v880
      %v1008 = vunpack.c.l.b16 %v881
      %v1009 = vunpack.c.l.b16 %v882
      %v1010 = vunpack.c.l.b16 %v883
      %v1011 = vunpack.c.l.b16 %v884
      %v1012 = vunpack.c.l.b16 %v885
      %v1013 = vpack.c.b16 %v977, %v976
      %v1014 = vpack.c.b16 %v979, %v978
      %v1015 = vpack.c.b16 %v981, %v980
      %v1016 = vpack.c.b16 %v983, %v982
      %v1017 = vpack.c.b16 %v985, %v984
      %v1018 = vpack.c.b16 %v987, %v986
      %v1019 = vpack.c.b16 %v989, %v988
      %v1020 = vpack.c.b16 %v991, %v990
      %v1021 = vpack.c.b16 %v993, %v992
      %v1022 = vpack.c.b16 %v995, %v994
      %v1023 = vpack.c.b16 %v997, %v996
      %v1024 = vpack.c.b16 %v999, %v998
      %v1025 = vpack.c.b16 %v1001, %v1000
      %v1026 = vpack.c.b16 %v1003, %v1002
      %v1027 = vpack.c.b16 %v1005, %v1004
      %v1028 = vpack.c.b16 %v1007, %v1006
      %v1029 = vpack.c.b16 %v1009, %v1008
      %v1030 = vpack.c.b16 %v1011, %v1010
      %v1031 = vpack.c.b16 %v1012, %v1012
      %vm1032 = vsmask.f32 7424
      %v1034 = vshrl.u32 %v1013, 16
      %v1036 = vshll.u32 %v1013, 16
      %v1038 = vrot.slane %v1036, 1
      %v1039 = vor.u32 %v1034, %v1038
      %v1041 = vshll.u32 %v1014, 16
      %v1043 = vrot.slane %v1041, 1
      %v1044 = vsel %vm1032, %v1039, %v1043
      %v1045 = vshrl.u32 %v1014, 16
      %v1047 = vor.u32 %v1045, %v1043
      %v1049 = vshll.u32 %v1015, 16
      %v1051 = vrot.slane %v1049, 1
      %v1052 = vsel %vm1032, %v1047, %v1051
      %v1053 = vshrl.u32 %v1015, 16
      %v1055 = vor.u32 %v1053, %v1051
      %v1057 = vshll.u32 %v1016, 16
      %v1059 = vrot.slane %v1057, 1
      %v1060 = vsel %vm1032, %v1055, %v1059
      %v1061 = vshrl.u32 %v1016, 16
      %v1063 = vor.u32 %v1061, %v1059
      %v1065 = vshll.u32 %v1017, 16
      %v1067 = vrot.slane %v1065, 1
      %v1068 = vsel %vm1032, %v1063, %v1067
      %v1069 = vshrl.u32 %v1017, 16
      %v1071 = vor.u32 %v1069, %v1067
      %v1073 = vshll.u32 %v1018, 16
      %v1075 = vrot.slane %v1073, 1
      %v1076 = vsel %vm1032, %v1071, %v1075
      %v1077 = vshrl.u32 %v1018, 16
      %v1079 = vor.u32 %v1077, %v1075
      %v1081 = vshll.u32 %v1019, 16
      %v1083 = vrot.slane %v1081, 1
      %v1084 = vsel %vm1032, %v1079, %v1083
      %v1085 = vshrl.u32 %v1019, 16
      %v1087 = vor.u32 %v1085, %v1083
      %v1089 = vshll.u32 %v1020, 16
      %v1091 = vrot.slane %v1089, 1
      %v1092 = vsel %vm1032, %v1087, %v1091
      %v1093 = vshrl.u32 %v1020, 16
      %v1095 = vor.u32 %v1093, %v1091
      %v1097 = vshll.u32 %v1021, 16
      %v1099 = vrot.slane %v1097, 1
      %v1100 = vsel %vm1032, %v1095, %v1099
      %v1101 = vshrl.u32 %v1021, 16
      %v1103 = vor.u32 %v1101, %v1099
      %v1105 = vshll.u32 %v1022, 16
      %v1107 = vrot.slane %v1105, 1
      %v1108 = vsel %vm1032, %v1103, %v1107
      %v1109 = vshrl.u32 %v1022, 16
      %v1111 = vor.u32 %v1109, %v1107
      %v1113 = vshll.u32 %v1023, 16
      %v1115 = vrot.slane %v1113, 1
      %v1116 = vsel %vm1032, %v1111, %v1115
      %v1117 = vshrl.u32 %v1023, 16
      %v1119 = vor.u32 %v1117, %v1115
      %v1121 = vshll.u32 %v1024, 16
      %v1123 = vrot.slane %v1121, 1
      %v1124 = vsel %vm1032, %v1119, %v1123
      %v1125 = vshrl.u32 %v1024, 16
      %v1127 = vor.u32 %v1125, %v1123
      %v1129 = vshll.u32 %v1025, 16
      %v1131 = vrot.slane %v1129, 1
      %v1132 = vsel %vm1032, %v1127, %v1131
      %v1133 = vshrl.u32 %v1025, 16
      %v1135 = vor.u32 %v1133, %v1131
      %v1137 = vshll.u32 %v1026, 16
      %v1139 = vrot.slane %v1137, 1
      %v1140 = vsel %vm1032, %v1135, %v1139
      %v1141 = vshrl.u32 %v1026, 16
      %v1143 = vor.u32 %v1141, %v1139
      %v1145 = vshll.u32 %v1027, 16
      %v1147 = vrot.slane %v1145, 1
      %v1148 = vsel %vm1032, %v1143, %v1147
      %v1149 = vshrl.u32 %v1027, 16
      %v1151 = vor.u32 %v1149, %v1147
      %v1153 = vshll.u32 %v1028, 16
      %v1155 = vrot.slane %v1153, 1
      %v1156 = vsel %vm1032, %v1151, %v1155
      %v1157 = vshrl.u32 %v1028, 16
      %v1159 = vor.u32 %v1157, %v1155
      %v1161 = vshll.u32 %v1029, 16
      %v1163 = vrot.slane %v1161, 1
      %v1164 = vsel %vm1032, %v1159, %v1163
      %v1165 = vshrl.u32 %v1029, 16
      %v1167 = vor.u32 %v1165, %v1163
      %v1169 = vshll.u32 %v1030, 16
      %v1171 = vrot.slane %v1169, 1
      %v1172 = vsel %vm1032, %v1167, %v1171
      %v1173 = vshrl.u32 %v1030, 16
      %v1175 = vor.u32 %v1173, %v1171
      %v1177 = vshll.u32 %v1031, 16
      %v1179 = vrot.slane %v1177, 1
      %v1180 = vsel %vm1032, %v1175, %v1179
      %v1215 = vunpack.c.l.b16 %v923
      %v1216 = vunpack.c.l.b16 %v924
      %v1217 = vunpack.c.l.b16 %v925
      %v1218 = vunpack.c.l.b16 %v926
      %v1219 = vunpack.c.l.b16 %v927
      %v1220 = vunpack.c.l.b16 %v928
      %v1221 = vunpack.c.l.b16 %v929
      %v1222 = vunpack.c.l.b16 %v930
      %v1223 = vunpack.c.l.b16 %v931
      %v1224 = vunpack.c.l.b16 %v932
      %v1225 = vunpack.c.l.b16 %v933
      %v1226 = vunpack.c.l.b16 %v934
      %v1227 = vunpack.c.l.b16 %v935
      %v1228 = vunpack.c.l.b16 %v936
      %v1229 = vunpack.c.l.b16 %v937
      %v1230 = vunpack.c.l.b16 %v938
      %v1231 = vpack.c.b16 %v1216, %v1215
      %v1232 = vpack.c.b16 %v1218, %v1217
      %v1233 = vpack.c.b16 %v1220, %v1219
      %v1234 = vpack.c.b16 %v1222, %v1221
      %v1235 = vpack.c.b16 %v1224, %v1223
      %v1236 = vpack.c.b16 %v1226, %v1225
      %v1237 = vpack.c.b16 %v1228, %v1227
      %v1238 = vpack.c.b16 %v1230, %v1229
      %1247 = vmatprep.subr.bf16.mxu0 0
      %1248 = vmatpush1.bf16.msra.mxu0 %v1231
      %1249 = vmatprep.subr.bf16.mxu0 0
      %1250 = vmatpush1.bf16.msra.mxu0 %v1232
      %1251 = vmatprep.subr.bf16.mxu0 0
      %1252 = vmatpush1.bf16.msra.mxu0 %v1233
      %1253 = vmatprep.subr.bf16.mxu0 0
      %1254 = vmatpush1.bf16.msra.mxu0 %v1234
      %1255 = vmatprep.subr.bf16.mxu0 0
      %1256 = vmatpush1.bf16.msra.mxu0 %v1235
      %1257 = vmatprep.subr.bf16.mxu0 0
      %1258 = vmatpush1.bf16.msra.mxu0 %v1236
      %1259 = vmatprep.subr.bf16.mxu0 0
      %1260 = vmatpush1.bf16.msra.mxu0 %v1237
      %1261 = vmatprep.subr.bf16.mxu0 0
      %1262 = vmatpush1.bf16.msra.mxu0 %v1238
      %1263 = vmatprep.subr.bf16.mxu0 0
      %1264 = vmatpush1.bf16.msra.mxu0 0
      %1265 = vmatprep.subr.bf16.mxu0 0
      %1266 = vmatpush1.bf16.msra.mxu0 0
      %1267 = vmatprep.subr.bf16.mxu0 0
      %1268 = vmatpush1.bf16.msra.mxu0 0
      %1269 = vmatprep.subr.bf16.mxu0 0
      %1270 = vmatpush1.bf16.msra.mxu0 0
      %1271 = vmatprep.subr.bf16.mxu0 0
      %1272 = vmatpush1.bf16.msra.mxu0 0
      %1273 = vmatprep.subr.bf16.mxu0 0
      %1274 = vmatpush1.bf16.msra.mxu0 0
      %1275 = vmatprep.subr.bf16.mxu0 0
      %1276 = vmatpush1.bf16.msra.mxu0 0
      %1277 = vmatprep.subr.bf16.mxu0 0
      %1278 = vmatpush1.bf16.msra.mxu0 0
      %1279 = vmatprep.mubr.bf16.mxu0 0
      %1280 = vmatmul.mubr.bf16.gmra.mrb[0].mxu0 %v1044
      %v1281 = vpop.f32.mrb[0].mxu0
      %v1282 = vadd.f32 0.0, %v1281
      %v1283 = vpop.f32.mrb[0].mxu0
      %v1284 = vpop.f32.mrb[0].mxu0
      %v1285 = vadd.f32 0.0, %v1284
      %v1286 = vpop.f32.mrb[0].mxu0
      %1287 = vmatprep.mubr.bf16.mxu0 0
      %1288 = vmatmul.mubr.bf16.gmra.mrb[0].mxu0 %v1052
      %v1289 = vpop.f32.mrb[0].mxu0
      %v1290 = vadd.f32 0.0, %v1289
      %v1291 = vpop.f32.mrb[0].mxu0
      %v1292 = vpop.f32.mrb[0].mxu0
      %v1293 = vadd.f32 0.0, %v1292
      %v1294 = vpop.f32.mrb[0].mxu0
      %1295 = vmatprep.mubr.bf16.mxu0 0
      %1296 = vmatmul.mubr.bf16.gmra.mrb[0].mxu0 %v1060
      %v1297 = vpop.f32.mrb[0].mxu0
      %v1298 = vadd.f32 0.0, %v1297
      %v1299 = vpop.f32.mrb[0].mxu0
      %v1300 = vpop.f32.mrb[0].mxu0
      %v1301 = vadd.f32 0.0, %v1300
      %v1302 = vpop.f32.mrb[0].mxu0
      %1303 = vmatprep.mubr.bf16.mxu0 0
      %1304 = vmatmul.mubr.bf16.gmra.mrb[0].mxu0 %v1068
      %v1305 = vpop.f32.mrb[0].mxu0
      %v1306 = vadd.f32 0.0, %v1305
      %v1307 = vpop.f32.mrb[0].mxu0
      %v1308 = vpop.f32.mrb[0].mxu0
      %v1309 = vadd.f32 0.0, %v1308
      %v1310 = vpop.f32.mrb[0].mxu0
      %1311 = vmatprep.mubr.bf16.mxu0 0
      %1312 = vmatmul.mubr.bf16.gmra.mrb[0].mxu0 %v1076
      %v1313 = vpop.f32.mrb[0].mxu0
      %v1314 = vadd.f32 0.0, %v1313
      %v1315 = vpop.f32.mrb[0].mxu0
      %v1316 = vpop.f32.mrb[0].mxu0
      %v1317 = vadd.f32 0.0, %v1316
      %v1318 = vpop.f32.mrb[0].mxu0
      %1319 = vmatprep.mubr.bf16.mxu0 0
      %1320 = vmatmul.mubr.bf16.gmra.mrb[0].mxu0 %v1084
      %v1321 = vpop.f32.mrb[0].mxu0
      %v1322 = vadd.f32 0.0, %v1321
      %v1323 = vpop.f32.mrb[0].mxu0
      %v1324 = vpop.f32.mrb[0].mxu0
      %v1325 = vadd.f32 0.0, %v1324
      %v1326 = vpop.f32.mrb[0].mxu0
      %1327 = vmatprep.mubr.bf16.mxu0 0
      %1328 = vmatmul.mubr.bf16.gmra.mrb[0].mxu0 %v1092
      %v1329 = vpop.f32.mrb[0].mxu0
      %v1330 = vadd.f32 0.0, %v1329
      %v1331 = vpop.f32.mrb[0].mxu0
      %v1332 = vpop.f32.mrb[0].mxu0
      %v1333 = vadd.f32 0.0, %v1332
      %v1334 = vpop.f32.mrb[0].mxu0
      %1335 = vmatprep.mubr.bf16.mxu0 0
      %1336 = vmatmul.mubr.bf16.gmra.mrb[0].mxu0 %v1100
      %v1337 = vpop.f32.mrb[0].mxu0
      %v1338 = vadd.f32 0.0, %v1337
      %v1339 = vpop.f32.mrb[0].mxu0
      %v1340 = vpop.f32.mrb[0].mxu0
      %v1341 = vadd.f32 0.0, %v1340
      %v1342 = vpop.f32.mrb[0].mxu0
      %1343 = vmatprep.mubr.bf16.mxu0 0
      %1344 = vmatmul.mubr.bf16.gmra.mrb[0].mxu0 %v1108
      %v1345 = vpop.f32.mrb[0].mxu0
      %v1346 = vadd.f32 0.0, %v1345
      %v1347 = vpop.f32.mrb[0].mxu0
      %v1348 = vpop.f32.mrb[0].mxu0
      %v1349 = vadd.f32 0.0, %v1348
      %v1350 = vpop.f32.mrb[0].mxu0
      %1351 = vmatprep.mubr.bf16.mxu0 0
      %1352 = vmatmul.mubr.bf16.gmra.mrb[0].mxu0 %v1116
      %v1353 = vpop.f32.mrb[0].mxu0
      %v1354 = vadd.f32 0.0, %v1353
      %v1355 = vpop.f32.mrb[0].mxu0
      %v1356 = vpop.f32.mrb[0].mxu0
      %v1357 = vadd.f32 0.0, %v1356
      %v1358 = vpop.f32.mrb[0].mxu0
      %1359 = vmatprep.mubr.bf16.mxu0 0
      %1360 = vmatmul.mubr.bf16.gmra.mrb[0].mxu0 %v1124
      %v1361 = vpop.f32.mrb[0].mxu0
      %v1362 = vadd.f32 0.0, %v1361
      %v1363 = vpop.f32.mrb[0].mxu0
      %v1364 = vpop.f32.mrb[0].mxu0
      %v1365 = vadd.f32 0.0, %v1364
      %v1366 = vpop.f32.mrb[0].mxu0
      %1367 = vmatprep.mubr.bf16.mxu0 0
      %1368 = vmatmul.mubr.bf16.gmra.mrb[0].mxu0 %v1132
      %v1369 = vpop.f32.mrb[0].mxu0
      %v1370 = vadd.f32 0.0, %v1369
      %v1371 = vpop.f32.mrb[0].mxu0
      %v1372 = vpop.f32.mrb[0].mxu0
      %v1373 = vadd.f32 0.0, %v1372
      %v1374 = vpop.f32.mrb[0].mxu0
      %1375 = vmatprep.mubr.bf16.mxu0 0
      %1376 = vmatmul.mubr.bf16.gmra.mrb[0].mxu0 %v1140
      %v1377 = vpop.f32.mrb[0].mxu0
      %v1378 = vadd.f32 0.0, %v1377
      %v1379 = vpop.f32.mrb[0].mxu0
      %v1380 = vpop.f32.mrb[0].mxu0
      %v1381 = vadd.f32 0.0, %v1380
      %v1382 = vpop.f32.mrb[0].mxu0
      %1383 = vmatprep.mubr.bf16.mxu0 0
      %1384 = vmatmul.mubr.bf16.gmra.mrb[0].mxu0 %v1148
      %v1385 = vpop.f32.mrb[0].mxu0
      %v1386 = vadd.f32 0.0, %v1385
      %v1387 = vpop.f32.mrb[0].mxu0
      %v1388 = vpop.f32.mrb[0].mxu0
      %v1389 = vadd.f32 0.0, %v1388
      %v1390 = vpop.f32.mrb[0].mxu0
      %1391 = vmatprep.mubr.bf16.mxu0 0
      %1392 = vmatmul.mubr.bf16.gmra.mrb[0].mxu0 %v1156
      %v1393 = vpop.f32.mrb[0].mxu0
      %v1394 = vadd.f32 0.0, %v1393
      %v1395 = vpop.f32.mrb[0].mxu0
      %v1396 = vpop.f32.mrb[0].mxu0
      %v1397 = vadd.f32 0.0, %v1396
      %v1398 = vpop.f32.mrb[0].mxu0
      %1399 = vmatprep.mubr.bf16.mxu0 0
      %1400 = vmatmul.mubr.bf16.gmra.mrb[0].mxu0 %v1164
      %v1401 = vpop.f32.mrb[0].mxu0
      %v1402 = vadd.f32 0.0, %v1401
      %v1403 = vpop.f32.mrb[0].mxu0
      %v1404 = vpop.f32.mrb[0].mxu0
      %v1405 = vadd.f32 0.0, %v1404
      %v1406 = vpop.f32.mrb[0].mxu0
      %1407 = vmatprep.mubr.bf16.mxu0 0
      %1408 = vmatmul.mubr.bf16.gmra.mrb[0].mxu0 %v1172
      %v1409 = vpop.f32.mrb[0].mxu0
      %v1410 = vadd.f32 0.0, %v1409
      %v1411 = vpop.f32.mrb[0].mxu0
      %v1412 = vpop.f32.mrb[0].mxu0
      %v1413 = vadd.f32 0.0, %v1412
      %v1414 = vpop.f32.mrb[0].mxu0
      %1415 = vmatprep.mubr.bf16.mxu0 0
      %1416 = vmatmul.mubr.bf16.gmra.mrb[0].mxu0 %v1180
      %v1417 = vpop.f32.mrb[0].mxu0
      %v1418 = vadd.f32 0.0, %v1417
      %v1419 = vpop.f32.mrb[0].mxu0
      %v1420 = vpop.f32.mrb[0].mxu0
      %v1421 = vadd.f32 0.0, %v1420
      %v1422 = vpop.f32.mrb[0].mxu0
      %1423 = vdwg.mxu0
      %v1424 = vadd.f32 %v886, %v1282
      %v1425 = vadd.f32 %v887, %v1285
      %v1426 = vadd.f32 %v888, %v1290
      %v1427 = vadd.f32 %v889, %v1293
      %v1428 = vadd.f32 %v890, %v1298
      %v1429 = vadd.f32 %v891, %v1301
      %v1430 = vadd.f32 %v892, %v1306
      %v1431 = vadd.f32 %v893, %v1309
      %v1432 = vadd.f32 %v894, %v1314
      %v1433 = vadd.f32 %v895, %v1317
      %v1434 = vadd.f32 %v896, %v1322
      %v1435 = vadd.f32 %v897, %v1325
      %v1436 = vadd.f32 %v898, %v1330
      %v1437 = vadd.f32 %v899, %v1333
      %v1438 = vadd.f32 %v900, %v1338
      %v1439 = vadd.f32 %v901, %v1341
      %v1440 = vadd.f32 %v902, %v1346
      %v1441 = vadd.f32 %v903, %v1349
      %v1442 = vadd.f32 %v904, %v1354
      %v1443 = vadd.f32 %v905, %v1357
      %v1444 = vadd.f32 %v906, %v1362
      %v1445 = vadd.f32 %v907, %v1365
      %v1446 = vadd.f32 %v908, %v1370
      %v1447 = vadd.f32 %v909, %v1373
      %v1448 = vadd.f32 %v910, %v1378
      %v1449 = vadd.f32 %v911, %v1381
      %v1450 = vadd.f32 %v912, %v1386
      %v1451 = vadd.f32 %v913, %v1389
      %v1452 = vadd.f32 %v914, %v1394
      %v1453 = vadd.f32 %v915, %v1397
      %v1454 = vadd.f32 %v916, %v1402
      %v1455 = vadd.f32 %v917, %v1405
      %v1456 = vadd.f32 %v918, %v1410
      %v1457 = vadd.f32 %v919, %v1413
      %v1458 = vadd.f32 %v920, %v1418
      %v1459 = vadd.f32 %v921, %v1421
      %1460 = vst [vmem:[#allocation2] sm:$0xff] %v1424
      %1461 = vst [vmem:[#allocation2 + $0x8] sm:$0xff] %v1425
      %1462 = vst [vmem:[#allocation2 + $0x10] sm:$0xff] %v1426
      %1463 = vst [vmem:[#allocation2 + $0x18] sm:$0xff] %v1427
      %1464 = vst [vmem:[#allocation2 + $0x20] sm:$0xff] %v1428
      %1465 = vst [vmem:[#allocation2 + $0x28] sm:$0xff] %v1429
      %1466 = vst [vmem:[#allocation2 + $0x30] sm:$0xff] %v1430
      %1467 = vst [vmem:[#allocation2 + $0x38] sm:$0xff] %v1431
      %1468 = vst [vmem:[#allocation2 + $0x40] sm:$0xff] %v1432
      %1469 = vst [vmem:[#allocation2 + $0x48] sm:$0xff] %v1433
      %1470 = vst [vmem:[#allocation2 + $0x50] sm:$0xff] %v1434
      %1471 = vst [vmem:[#allocation2 + $0x58] sm:$0xff] %v1435
      %1472 = vst [vmem:[#allocation2 + $0x60] sm:$0xff] %v1436
      %1473 = vst [vmem:[#allocation2 + $0x68] sm:$0xff] %v1437
      %1474 = vst [vmem:[#allocation2 + $0x70] sm:$0xff] %v1438
      %1475 = vst [vmem:[#allocation2 + $0x78] sm:$0xff] %v1439
      %1476 = vst [vmem:[#allocation2 + $0x80] sm:$0xff] %v1440
      %1477 = vst [vmem:[#allocation2 + $0x88] sm:$0xff] %v1441
      %1478 = vst [vmem:[#allocation2 + $0x90] sm:$0xff] %v1442
      %1479 = vst [vmem:[#allocation2 + $0x98] sm:$0xff] %v1443
      %1480 = vst [vmem:[#allocation2 + $0xa0] sm:$0xff] %v1444
      %1481 = vst [vmem:[#allocation2 + $0xa8] sm:$0xff] %v1445
      %1482 = vst [vmem:[#allocation2 + $0xb0] sm:$0xff] %v1446
      %1483 = vst [vmem:[#allocation2 + $0xb8] sm:$0xff] %v1447
      %1484 = vst [vmem:[#allocation2 + $0xc0] sm:$0xff] %v1448
      %1485 = vst [vmem:[#allocation2 + $0xc8] sm:$0xff] %v1449
      %1486 = vst [vmem:[#allocation2 + $0xd0] sm:$0xff] %v1450
      %1487 = vst [vmem:[#allocation2 + $0xd8] sm:$0xff] %v1451
      %1488 = vst [vmem:[#allocation2 + $0xe0] sm:$0xff] %v1452
      %1489 = vst [vmem:[#allocation2 + $0xe8] sm:$0xff] %v1453
      %1490 = vst [vmem:[#allocation2 + $0xf0] sm:$0xff] %v1454
      %1491 = vst [vmem:[#allocation2 + $0xf8] sm:$0xff] %v1455
      %1492 = vst [vmem:[#allocation2 + $0x100] sm:$0xff] %v1456
      %1493 = vst [vmem:[#allocation2 + $0x108] sm:$0xff] %v1457
      %1494 = vst [vmem:[#allocation2 + $0x110] sm:$0xff] %v1458
      %1495 = vst [vmem:[#allocation2 + $0x118] sm:$0xff] %v1459
      %v1496 = vld [vmem:[%s286] sm:$0xe]
      %v1497 = vld [vmem:[%s286 + $0x4] sm:$0xf]
      %v1498 = vld [vmem:[%s286 + $0x8] sm:$0xf]
      %v1499 = vld [vmem:[%s286 + $0xc] sm:$0xf]
      %v1500 = vld [vmem:[%s286 + $0x10] sm:$0xf]
      %v1501 = vld [vmem:[%s286 + $0x14] sm:$0xf]
      %v1502 = vld [vmem:[%s286 + $0x18] sm:$0xf]
      %v1503 = vld [vmem:[%s286 + $0x1c] sm:$0xf]
      %v1504 = vld [vmem:[%s286 + $0x20] sm:$0xf]
      %v1505 = vld [vmem:[%s286 + $0x24] sm:$0xf]
      %v1506 = vld [vmem:[%s286 + $0x28] sm:$0xf]
      %v1507 = vld [vmem:[%s286 + $0x2c] sm:$0xf]
      %v1508 = vld [vmem:[%s286 + $0x30] sm:$0xf]
      %v1509 = vld [vmem:[%s286 + $0x34] sm:$0xf]
      %v1510 = vld [vmem:[%s286 + $0x38] sm:$0xf]
      %v1511 = vld [vmem:[%s286 + $0x3c] sm:$0xf]
      %v1512 = vld [vmem:[%s286 + $0x40] sm:$0xf]
      %v1513 = vld [vmem:[%s286 + $0x44] sm:$0xf]
      %v1514 = vld [vmem:[%s286 + $0x48] sm:$0xf]
      %v1515 = vld [vmem:[%s286 + $0x4c] sm:$0xf]
      %v1516 = vld [vmem:[%s286 + $0x50] sm:$0xf]
      %v1517 = vld [vmem:[%s286 + $0x54] sm:$0xf]
      %v1518 = vld [vmem:[%s286 + $0x58] sm:$0xf]
      %v1519 = vld [vmem:[%s286 + $0x5c] sm:$0xf]
      %v1520 = vld [vmem:[%s286 + $0x60] sm:$0xf]
      %v1521 = vld [vmem:[%s286 + $0x64] sm:$0xf]
      %v1522 = vld [vmem:[%s286 + $0x68] sm:$0xf]
      %v1523 = vld [vmem:[%s286 + $0x6c] sm:$0xf]
      %v1524 = vld [vmem:[%s286 + $0x70] sm:$0xf]
      %v1525 = vld [vmem:[%s286 + $0x74] sm:$0xf]
      %v1526 = vld [vmem:[%s286 + $0x78] sm:$0xf]
      %v1527 = vld [vmem:[%s286 + $0x7c] sm:$0xf]
      %v1528 = vld [vmem:[%s286 + $0x80] sm:$0xf]
      %v1529 = vld [vmem:[%s286 + $0x84] sm:$0xf]
      %v1530 = vld [vmem:[%s286 + $0x88] sm:$0xf]
      %v1531 = vld [vmem:[%s286 + $0x8c] sm:$0xf]
      %v1532 = vld [vmem:[%s286 + $0x90] sm:$0x1]
      %v1533 = vld [vmem:[#allocation2] sm:$0xff]
      %v1534 = vld [vmem:[#allocation2 + $0x8] sm:$0xff]
      %v1535 = vld [vmem:[#allocation2 + $0x10] sm:$0xff]
      %v1536 = vld [vmem:[#allocation2 + $0x18] sm:$0xff]
      %v1537 = vld [vmem:[#allocation2 + $0x20] sm:$0xff]
      %v1538 = vld [vmem:[#allocation2 + $0x28] sm:$0xff]
      %v1539 = vld [vmem:[#allocation2 + $0x30] sm:$0xff]
      %v1540 = vld [vmem:[#allocation2 + $0x38] sm:$0xff]
      %v1541 = vld [vmem:[#allocation2 + $0x40] sm:$0xff]
      %v1542 = vld [vmem:[#allocation2 + $0x48] sm:$0xff]
      %v1543 = vld [vmem:[#allocation2 + $0x50] sm:$0xff]
      %v1544 = vld [vmem:[#allocation2 + $0x58] sm:$0xff]
      %v1545 = vld [vmem:[#allocation2 + $0x60] sm:$0xff]
      %v1546 = vld [vmem:[#allocation2 + $0x68] sm:$0xff]
      %v1547 = vld [vmem:[#allocation2 + $0x70] sm:$0xff]
      %v1548 = vld [vmem:[#allocation2 + $0x78] sm:$0xff]
      %v1549 = vld [vmem:[#allocation2 + $0x80] sm:$0xff]
      %v1550 = vld [vmem:[#allocation2 + $0x88] sm:$0xff]
      %v1551 = vld [vmem:[#allocation2 + $0x90] sm:$0xff]
      %v1552 = vld [vmem:[#allocation2 + $0x98] sm:$0xff]
      %v1553 = vld [vmem:[#allocation2 + $0xa0] sm:$0xff]
      %v1554 = vld [vmem:[#allocation2 + $0xa8] sm:$0xff]
      %v1555 = vld [vmem:[#allocation2 + $0xb0] sm:$0xff]
      %v1556 = vld [vmem:[#allocation2 + $0xb8] sm:$0xff]
      %v1557 = vld [vmem:[#allocation2 + $0xc0] sm:$0xff]
      %v1558 = vld [vmem:[#allocation2 + $0xc8] sm:$0xff]
      %v1559 = vld [vmem:[#allocation2 + $0xd0] sm:$0xff]
      %v1560 = vld [vmem:[#allocation2 + $0xd8] sm:$0xff]
      %v1561 = vld [vmem:[#allocation2 + $0xe0] sm:$0xff]
      %v1562 = vld [vmem:[#allocation2 + $0xe8] sm:$0xff]
      %v1563 = vld [vmem:[#allocation2 + $0xf0] sm:$0xff]
      %v1564 = vld [vmem:[#allocation2 + $0xf8] sm:$0xff]
      %v1565 = vld [vmem:[#allocation2 + $0x100] sm:$0xff]
      %v1566 = vld [vmem:[#allocation2 + $0x108] sm:$0xff]
      %v1567 = vld [vmem:[#allocation2 + $0x110] sm:$0xff]
      %v1568 = vld [vmem:[#allocation2 + $0x118] sm:$0xff]
      %s1569 = scalar_lea.vmem %s294, 128
      %v1570 = vld [vmem:[%s1569] sm:$0xf]
      %v1571 = vld [vmem:[%s1569 + $0x4] sm:$0xf]
      %v1572 = vld [vmem:[%s1569 + $0x8] sm:$0xf]
      %v1573 = vld [vmem:[%s1569 + $0xc] sm:$0xf]
      %v1574 = vld [vmem:[%s1569 + $0x10] sm:$0xf]
      %v1575 = vld [vmem:[%s1569 + $0x14] sm:$0xf]
      %v1576 = vld [vmem:[%s1569 + $0x18] sm:$0xf]
      %v1577 = vld [vmem:[%s1569 + $0x1c] sm:$0xf]
      %v1578 = vld [vmem:[%s1569 + $0x20] sm:$0xf]
      %v1579 = vld [vmem:[%s1569 + $0x24] sm:$0xf]
      %v1580 = vld [vmem:[%s1569 + $0x28] sm:$0xf]
      %v1581 = vld [vmem:[%s1569 + $0x2c] sm:$0xf]
      %v1582 = vld [vmem:[%s1569 + $0x30] sm:$0xf]
      %v1583 = vld [vmem:[%s1569 + $0x34] sm:$0xf]
      %v1584 = vld [vmem:[%s1569 + $0x38] sm:$0xf]
      %v1585 = vld [vmem:[%s1569 + $0x3c] sm:$0xf]
      %v1623 = vunpack.c.l.b16 %v1496
      %v1624 = vunpack.c.l.b16 %v1497
      %v1625 = vunpack.c.l.b16 %v1498
      %v1626 = vunpack.c.l.b16 %v1499
      %v1627 = vunpack.c.l.b16 %v1500
      %v1628 = vunpack.c.l.b16 %v1501
      %v1629 = vunpack.c.l.b16 %v1502
      %v1630 = vunpack.c.l.b16 %v1503
      %v1631 = vunpack.c.l.b16 %v1504
      %v1632 = vunpack.c.l.b16 %v1505
      %v1633 = vunpack.c.l.b16 %v1506
      %v1634 = vunpack.c.l.b16 %v1507
      %v1635 = vunpack.c.l.b16 %v1508
      %v1636 = vunpack.c.l.b16 %v1509
      %v1637 = vunpack.c.l.b16 %v1510
      %v1638 = vunpack.c.l.b16 %v1511
      %v1639 = vunpack.c.l.b16 %v1512
      %v1640 = vunpack.c.l.b16 %v1513
      %v1641 = vunpack.c.l.b16 %v1514
      %v1642 = vunpack.c.l.b16 %v1515
      %v1643 = vunpack.c.l.b16 %v1516
      %v1644 = vunpack.c.l.b16 %v1517
      %v1645 = vunpack.c.l.b16 %v1518
      %v1646 = vunpack.c.l.b16 %v1519
      %v1647 = vunpack.c.l.b16 %v1520
      %v1648 = vunpack.c.l.b16 %v1521
      %v1649 = vunpack.c.l.b16 %v1522
      %v1650 = vunpack.c.l.b16 %v1523
      %v1651 = vunpack.c.l.b16 %v1524
      %v1652 = vunpack.c.l.b16 %v1525
      %v1653 = vunpack.c.l.b16 %v1526
      %v1654 = vunpack.c.l.b16 %v1527
      %v1655 = vunpack.c.l.b16 %v1528
      %v1656 = vunpack.c.l.b16 %v1529
      %v1657 = vunpack.c.l.b16 %v1530
      %v1658 = vunpack.c.l.b16 %v1531
      %v1659 = vunpack.c.l.b16 %v1532
      %v1660 = vpack.c.b16 %v1624, %v1623
      %v1661 = vpack.c.b16 %v1626, %v1625
      %v1662 = vpack.c.b16 %v1628, %v1627
      %v1663 = vpack.c.b16 %v1630, %v1629
      %v1664 = vpack.c.b16 %v1632, %v1631
      %v1665 = vpack.c.b16 %v1634, %v1633
      %v1666 = vpack.c.b16 %v1636, %v1635
      %v1667 = vpack.c.b16 %v1638, %v1637
      %v1668 = vpack.c.b16 %v1640, %v1639
      %v1669 = vpack.c.b16 %v1642, %v1641
      %v1670 = vpack.c.b16 %v1644, %v1643
      %v1671 = vpack.c.b16 %v1646, %v1645
      %v1672 = vpack.c.b16 %v1648, %v1647
      %v1673 = vpack.c.b16 %v1650, %v1649
      %v1674 = vpack.c.b16 %v1652, %v1651
      %v1675 = vpack.c.b16 %v1654, %v1653
      %v1676 = vpack.c.b16 %v1656, %v1655
      %v1677 = vpack.c.b16 %v1658, %v1657
      %v1678 = vpack.c.b16 %v1659, %v1659
      %vm1679 = vcmask 1046528
      %v1680 = vrot.slane %v1660, 1
      %v1681 = vrot.slane %v1661, 1
      %v1682 = vsel %vm1679, %v1680, %v1681
      %v1683 = vrot.slane %v1662, 1
      %v1684 = vsel %vm1679, %v1681, %v1683
      %v1685 = vrot.slane %v1663, 1
      %v1686 = vsel %vm1679, %v1683, %v1685
      %v1687 = vrot.slane %v1664, 1
      %v1688 = vsel %vm1679, %v1685, %v1687
      %v1689 = vrot.slane %v1665, 1
      %v1690 = vsel %vm1679, %v1687, %v1689
      %v1691 = vrot.slane %v1666, 1
      %v1692 = vsel %vm1679, %v1689, %v1691
      %v1693 = vrot.slane %v1667, 1
      %v1694 = vsel %vm1679, %v1691, %v1693
      %v1695 = vrot.slane %v1668, 1
      %v1696 = vsel %vm1679, %v1693, %v1695
      %v1697 = vrot.slane %v1669, 1
      %v1698 = vsel %vm1679, %v1695, %v1697
      %v1699 = vrot.slane %v1670, 1
      %v1700 = vsel %vm1679, %v1697, %v1699
      %v1701 = vrot.slane %v1671, 1
      %v1702 = vsel %vm1679, %v1699, %v1701
      %v1703 = vrot.slane %v1672, 1
      %v1704 = vsel %vm1679, %v1701, %v1703
      %v1705 = vrot.slane %v1673, 1
      %v1706 = vsel %vm1679, %v1703, %v1705
      %v1707 = vrot.slane %v1674, 1
      %v1708 = vsel %vm1679, %v1705, %v1707
      %v1709 = vrot.slane %v1675, 1
      %v1710 = vsel %vm1679, %v1707, %v1709
      %v1711 = vrot.slane %v1676, 1
      %v1712 = vsel %vm1679, %v1709, %v1711
      %v1713 = vrot.slane %v1677, 1
      %v1714 = vsel %vm1679, %v1711, %v1713
      %v1715 = vrot.slane %v1678, 1
      %v1716 = vsel %vm1679, %v1713, %v1715
      %v1751 = vunpack.c.l.b16 %v1570
      %v1752 = vunpack.c.l.b16 %v1571
      %v1753 = vunpack.c.l.b16 %v1572
      %v1754 = vunpack.c.l.b16 %v1573
      %v1755 = vunpack.c.l.b16 %v1574
      %v1756 = vunpack.c.l.b16 %v1575
      %v1757 = vunpack.c.l.b16 %v1576
      %v1758 = vunpack.c.l.b16 %v1577
      %v1759 = vunpack.c.l.b16 %v1578
      %v1760 = vunpack.c.l.b16 %v1579
      %v1761 = vunpack.c.l.b16 %v1580
      %v1762 = vunpack.c.l.b16 %v1581
      %v1763 = vunpack.c.l.b16 %v1582
      %v1764 = vunpack.c.l.b16 %v1583
      %v1765 = vunpack.c.l.b16 %v1584
      %v1766 = vunpack.c.l.b16 %v1585
      %v1767 = vpack.c.b16 %v1752, %v1751
      %v1768 = vpack.c.b16 %v1754, %v1753
      %v1769 = vpack.c.b16 %v1756, %v1755
      %v1770 = vpack.c.b16 %v1758, %v1757
      %v1771 = vpack.c.b16 %v1760, %v1759
      %v1772 = vpack.c.b16 %v1762, %v1761
      %v1773 = vpack.c.b16 %v1764, %v1763
      %v1774 = vpack.c.b16 %v1766, %v1765
      %1783 = vmatprep.subr.bf16.mxu0 0
      %1784 = vmatpush1.bf16.msra.mxu0 %v1767
      %1785 = vmatprep.subr.bf16.mxu0 0
      %1786 = vmatpush1.bf16.msra.mxu0 %v1768
      %1787 = vmatprep.subr.bf16.mxu0 0
      %1788 = vmatpush1.bf16.msra.mxu0 %v1769
      %1789 = vmatprep.subr.bf16.mxu0 0
      %1790 = vmatpush1.bf16.msra.mxu0 %v1770
      %1791 = vmatprep.subr.bf16.mxu0 0
      %1792 = vmatpush1.bf16.msra.mxu0 %v1771
      %1793 = vmatprep.subr.bf16.mxu0 0
      %1794 = vmatpush1.bf16.msra.mxu0 %v1772
      %1795 = vmatprep.subr.bf16.mxu0 0
      %1796 = vmatpush1.bf16.msra.mxu0 %v1773
      %1797 = vmatprep.subr.bf16.mxu0 0
      %1798 = vmatpush1.bf16.msra.mxu0 %v1774
      %1799 = vmatprep.subr.bf16.mxu0 0
      %1800 = vmatpush1.bf16.msra.mxu0 0
      %1801 = vmatprep.subr.bf16.mxu0 0
      %1802 = vmatpush1.bf16.msra.mxu0 0
      %1803 = vmatprep.subr.bf16.mxu0 0
      %1804 = vmatpush1.bf16.msra.mxu0 0
      %1805 = vmatprep.subr.bf16.mxu0 0
      %1806 = vmatpush1.bf16.msra.mxu0 0
      %1807 = vmatprep.subr.bf16.mxu0 0
      %1808 = vmatpush1.bf16.msra.mxu0 0
      %1809 = vmatprep.subr.bf16.mxu0 0
      %1810 = vmatpush1.bf16.msra.mxu0 0
      %1811 = vmatprep.subr.bf16.mxu0 0
      %1812 = vmatpush1.bf16.msra.mxu0 0
      %1813 = vmatprep.subr.bf16.mxu0 0
      %1814 = vmatpush1.bf16.msra.mxu0 0
      %1815 = vmatprep.mubr.bf16.mxu0 0
      %1816 = vmatmul.mubr.bf16.gmra.mrb[0].mxu0 %v1682
      %v1817 = vpop.f32.mrb[0].mxu0
      %v1818 = vadd.f32 0.0, %v1817
      %v1819 = vpop.f32.mrb[0].mxu0
      %v1820 = vpop.f32.mrb[0].mxu0
      %v1821 = vadd.f32 0.0, %v1820
      %v1822 = vpop.f32.mrb[0].mxu0
      %1823 = vmatprep.mubr.bf16.mxu0 0
      %1824 = vmatmul.mubr.bf16.gmra.mrb[0].mxu0 %v1684
      %v1825 = vpop.f32.mrb[0].mxu0
      %v1826 = vadd.f32 0.0, %v1825
      %v1827 = vpop.f32.mrb[0].mxu0
      %v1828 = vpop.f32.mrb[0].mxu0
      %v1829 = vadd.f32 0.0, %v1828
      %v1830 = vpop.f32.mrb[0].mxu0
      %1831 = vmatprep.mubr.bf16.mxu0 0
      %1832 = vmatmul.mubr.bf16.gmra.mrb[0].mxu0 %v1686
      %v1833 = vpop.f32.mrb[0].mxu0
      %v1834 = vadd.f32 0.0, %v1833
      %v1835 = vpop.f32.mrb[0].mxu0
      %v1836 = vpop.f32.mrb[0].mxu0
      %v1837 = vadd.f32 0.0, %v1836
      %v1838 = vpop.f32.mrb[0].mxu0
      %1839 = vmatprep.mubr.bf16.mxu0 0
      %1840 = vmatmul.mubr.bf16.gmra.mrb[0].mxu0 %v1688
      %v1841 = vpop.f32.mrb[0].mxu0
      %v1842 = vadd.f32 0.0, %v1841
      %v1843 = vpop.f32.mrb[0].mxu0
      %v1844 = vpop.f32.mrb[0].mxu0
      %v1845 = vadd.f32 0.0, %v1844
      %v1846 = vpop.f32.mrb[0].mxu0
      %1847 = vmatprep.mubr.bf16.mxu0 0
      %1848 = vmatmul.mubr.bf16.gmra.mrb[0].mxu0 %v1690
      %v1849 = vpop.f32.mrb[0].mxu0
      %v1850 = vadd.f32 0.0, %v1849
      %v1851 = vpop.f32.mrb[0].mxu0
      %v1852 = vpop.f32.mrb[0].mxu0
      %v1853 = vadd.f32 0.0, %v1852
      %v1854 = vpop.f32.mrb[0].mxu0
      %1855 = vmatprep.mubr.bf16.mxu0 0
      %1856 = vmatmul.mubr.bf16.gmra.mrb[0].mxu0 %v1692
      %v1857 = vpop.f32.mrb[0].mxu0
      %v1858 = vadd.f32 0.0, %v1857
      %v1859 = vpop.f32.mrb[0].mxu0
      %v1860 = vpop.f32.mrb[0].mxu0
      %v1861 = vadd.f32 0.0, %v1860
      %v1862 = vpop.f32.mrb[0].mxu0
      %1863 = vmatprep.mubr.bf16.mxu0 0
      %1864 = vmatmul.mubr.bf16.gmra.mrb[0].mxu0 %v1694
      %v1865 = vpop.f32.mrb[0].mxu0
      %v1866 = vadd.f32 0.0, %v1865
      %v1867 = vpop.f32.mrb[0].mxu0
      %v1868 = vpop.f32.mrb[0].mxu0
      %v1869 = vadd.f32 0.0, %v1868
      %v1870 = vpop.f32.mrb[0].mxu0
      %1871 = vmatprep.mubr.bf16.mxu0 0
      %1872 = vmatmul.mubr.bf16.gmra.mrb[0].mxu0 %v1696
      %v1873 = vpop.f32.mrb[0].mxu0
      %v1874 = vadd.f32 0.0, %v1873
      %v1875 = vpop.f32.mrb[0].mxu0
      %v1876 = vpop.f32.mrb[0].mxu0
      %v1877 = vadd.f32 0.0, %v1876
      %v1878 = vpop.f32.mrb[0].mxu0
      %1879 = vmatprep.mubr.bf16.mxu0 0
      %1880 = vmatmul.mubr.bf16.gmra.mrb[0].mxu0 %v1698
      %v1881 = vpop.f32.mrb[0].mxu0
      %v1882 = vadd.f32 0.0, %v1881
      %v1883 = vpop.f32.mrb[0].mxu0
      %v1884 = vpop.f32.mrb[0].mxu0
      %v1885 = vadd.f32 0.0, %v1884
      %v1886 = vpop.f32.mrb[0].mxu0
      %1887 = vmatprep.mubr.bf16.mxu0 0
      %1888 = vmatmul.mubr.bf16.gmra.mrb[0].mxu0 %v1700
      %v1889 = vpop.f32.mrb[0].mxu0
      %v1890 = vadd.f32 0.0, %v1889
      %v1891 = vpop.f32.mrb[0].mxu0
      %v1892 = vpop.f32.mrb[0].mxu0
      %v1893 = vadd.f32 0.0, %v1892
      %v1894 = vpop.f32.mrb[0].mxu0
      %1895 = vmatprep.mubr.bf16.mxu0 0
      %1896 = vmatmul.mubr.bf16.gmra.mrb[0].mxu0 %v1702
      %v1897 = vpop.f32.mrb[0].mxu0
      %v1898 = vadd.f32 0.0, %v1897
      %v1899 = vpop.f32.mrb[0].mxu0
      %v1900 = vpop.f32.mrb[0].mxu0
      %v1901 = vadd.f32 0.0, %v1900
      %v1902 = vpop.f32.mrb[0].mxu0
      %1903 = vmatprep.mubr.bf16.mxu0 0
      %1904 = vmatmul.mubr.bf16.gmra.mrb[0].mxu0 %v1704
      %v1905 = vpop.f32.mrb[0].mxu0
      %v1906 = vadd.f32 0.0, %v1905
      %v1907 = vpop.f32.mrb[0].mxu0
      %v1908 = vpop.f32.mrb[0].mxu0
      %v1909 = vadd.f32 0.0, %v1908
      %v1910 = vpop.f32.mrb[0].mxu0
      %1911 = vmatprep.mubr.bf16.mxu0 0
      %1912 = vmatmul.mubr.bf16.gmra.mrb[0].mxu0 %v1706
      %v1913 = vpop.f32.mrb[0].mxu0
      %v1914 = vadd.f32 0.0, %v1913
      %v1915 = vpop.f32.mrb[0].mxu0
      %v1916 = vpop.f32.mrb[0].mxu0
      %v1917 = vadd.f32 0.0, %v1916
      %v1918 = vpop.f32.mrb[0].mxu0
      %1919 = vmatprep.mubr.bf16.mxu0 0
      %1920 = vmatmul.mubr.bf16.gmra.mrb[0].mxu0 %v1708
      %v1921 = vpop.f32.mrb[0].mxu0
      %v1922 = vadd.f32 0.0, %v1921
      %v1923 = vpop.f32.mrb[0].mxu0
      %v1924 = vpop.f32.mrb[0].mxu0
      %v1925 = vadd.f32 0.0, %v1924
      %v1926 = vpop.f32.mrb[0].mxu0
      %1927 = vmatprep.mubr.bf16.mxu0 0
      %1928 = vmatmul.mubr.bf16.gmra.mrb[0].mxu0 %v1710
      %v1929 = vpop.f32.mrb[0].mxu0
      %v1930 = vadd.f32 0.0, %v1929
      %v1931 = vpop.f32.mrb[0].mxu0
      %v1932 = vpop.f32.mrb[0].mxu0
      %v1933 = vadd.f32 0.0, %v1932
      %v1934 = vpop.f32.mrb[0].mxu0
      %1935 = vmatprep.mubr.bf16.mxu0 0
      %1936 = vmatmul.mubr.bf16.gmra.mrb[0].mxu0 %v1712
      %v1937 = vpop.f32.mrb[0].mxu0
      %v1938 = vadd.f32 0.0, %v1937
      %v1939 = vpop.f32.mrb[0].mxu0
      %v1940 = vpop.f32.mrb[0].mxu0
      %v1941 = vadd.f32 0.0, %v1940
      %v1942 = vpop.f32.mrb[0].mxu0
      %1943 = vmatprep.mubr.bf16.mxu0 0
      %1944 = vmatmul.mubr.bf16.gmra.mrb[0].mxu0 %v1714
      %v1945 = vpop.f32.mrb[0].mxu0
      %v1946 = vadd.f32 0.0, %v1945
      %v1947 = vpop.f32.mrb[0].mxu0
      %v1948 = vpop.f32.mrb[0].mxu0
      %v1949 = vadd.f32 0.0, %v1948
      %v1950 = vpop.f32.mrb[0].mxu0
      %1951 = vmatprep.mubr.bf16.mxu0 0
      %1952 = vmatmul.mubr.bf16.gmra.mrb[0].mxu0 %v1716
      %v1953 = vpop.f32.mrb[0].mxu0
      %v1954 = vadd.f32 0.0, %v1953
      %v1955 = vpop.f32.mrb[0].mxu0
      %v1956 = vpop.f32.mrb[0].mxu0
      %v1957 = vadd.f32 0.0, %v1956
      %v1958 = vpop.f32.mrb[0].mxu0
      %1959 = vdwg.mxu0
      %v1960 = vadd.f32 %v1533, %v1818
      %v1961 = vadd.f32 %v1534, %v1821
      %v1962 = vadd.f32 %v1535, %v1826
      %v1963 = vadd.f32 %v1536, %v1829
      %v1964 = vadd.f32 %v1537, %v1834
      %v1965 = vadd.f32 %v1538, %v1837
      %v1966 = vadd.f32 %v1539, %v1842
      %v1967 = vadd.f32 %v1540, %v1845
      %v1968 = vadd.f32 %v1541, %v1850
      %v1969 = vadd.f32 %v1542, %v1853
      %v1970 = vadd.f32 %v1543, %v1858
      %v1971 = vadd.f32 %v1544, %v1861
      %v1972 = vadd.f32 %v1545, %v1866
      %v1973 = vadd.f32 %v1546, %v1869
      %v1974 = vadd.f32 %v1547, %v1874
      %v1975 = vadd.f32 %v1548, %v1877
      %v1976 = vadd.f32 %v1549, %v1882
      %v1977 = vadd.f32 %v1550, %v1885
      %v1978 = vadd.f32 %v1551, %v1890
      %v1979 = vadd.f32 %v1552, %v1893
      %v1980 = vadd.f32 %v1553, %v1898
      %v1981 = vadd.f32 %v1554, %v1901
      %v1982 = vadd.f32 %v1555, %v1906
      %v1983 = vadd.f32 %v1556, %v1909
      %v1984 = vadd.f32 %v1557, %v1914
      %v1985 = vadd.f32 %v1558, %v1917
      %v1986 = vadd.f32 %v1559, %v1922
      %v1987 = vadd.f32 %v1560, %v1925
      %v1988 = vadd.f32 %v1561, %v1930
      %v1989 = vadd.f32 %v1562, %v1933
      %v1990 = vadd.f32 %v1563, %v1938
      %v1991 = vadd.f32 %v1564, %v1941
      %v1992 = vadd.f32 %v1565, %v1946
      %v1993 = vadd.f32 %v1566, %v1949
      %v1994 = vadd.f32 %v1567, %v1954
      %v1995 = vadd.f32 %v1568, %v1957
      %1996 = vst [vmem:[#allocation2] sm:$0xff] %v1960
      %1997 = vst [vmem:[#allocation2 + $0x8] sm:$0xff] %v1961
      %1998 = vst [vmem:[#allocation2 + $0x10] sm:$0xff] %v1962
      %1999 = vst [vmem:[#allocation2 + $0x18] sm:$0xff] %v1963
      %2000 = vst [vmem:[#allocation2 + $0x20] sm:$0xff] %v1964
      %2001 = vst [vmem:[#allocation2 + $0x28] sm:$0xff] %v1965
      %2002 = vst [vmem:[#allocation2 + $0x30] sm:$0xff] %v1966
      %2003 = vst [vmem:[#allocation2 + $0x38] sm:$0xff] %v1967
      %2004 = vst [vmem:[#allocation2 + $0x40] sm:$0xff] %v1968
      %2005 = vst [vmem:[#allocation2 + $0x48] sm:$0xff] %v1969
      %2006 = vst [vmem:[#allocation2 + $0x50] sm:$0xff] %v1970
      %2007 = vst [vmem:[#allocation2 + $0x58] sm:$0xff] %v1971
      %2008 = vst [vmem:[#allocation2 + $0x60] sm:$0xff] %v1972
      %2009 = vst [vmem:[#allocation2 + $0x68] sm:$0xff] %v1973
      %2010 = vst [vmem:[#allocation2 + $0x70] sm:$0xff] %v1974
      %2011 = vst [vmem:[#allocation2 + $0x78] sm:$0xff] %v1975
      %2012 = vst [vmem:[#allocation2 + $0x80] sm:$0xff] %v1976
      %2013 = vst [vmem:[#allocation2 + $0x88] sm:$0xff] %v1977
      %2014 = vst [vmem:[#allocation2 + $0x90] sm:$0xff] %v1978
      %2015 = vst [vmem:[#allocation2 + $0x98] sm:$0xff] %v1979
      %2016 = vst [vmem:[#allocation2 + $0xa0] sm:$0xff] %v1980
      %2017 = vst [vmem:[#allocation2 + $0xa8] sm:$0xff] %v1981
      %2018 = vst [vmem:[#allocation2 + $0xb0] sm:$0xff] %v1982
      %2019 = vst [vmem:[#allocation2 + $0xb8] sm:$0xff] %v1983
      %2020 = vst [vmem:[#allocation2 + $0xc0] sm:$0xff] %v1984
      %2021 = vst [vmem:[#allocation2 + $0xc8] sm:$0xff] %v1985
      %2022 = vst [vmem:[#allocation2 + $0xd0] sm:$0xff] %v1986
      %2023 = vst [vmem:[#allocation2 + $0xd8] sm:$0xff] %v1987
      %2024 = vst [vmem:[#allocation2 + $0xe0] sm:$0xff] %v1988
      %2025 = vst [vmem:[#allocation2 + $0xe8] sm:$0xff] %v1989
      %2026 = vst [vmem:[#allocation2 + $0xf0] sm:$0xff] %v1990
      %2027 = vst [vmem:[#allocation2 + $0xf8] sm:$0xff] %v1991
      %2028 = vst [vmem:[#allocation2 + $0x100] sm:$0xff] %v1992
      %2029 = vst [vmem:[#allocation2 + $0x108] sm:$0xff] %v1993
      %2030 = vst [vmem:[#allocation2 + $0x110] sm:$0xff] %v1994
      %2031 = vst [vmem:[#allocation2 + $0x118] sm:$0xff] %v1995
      %v2032 = vld [vmem:[%s286 + $0x8] sm:$0xe]
      %v2033 = vld [vmem:[%s286 + $0xc] sm:$0xf]
      %v2034 = vld [vmem:[%s286 + $0x10] sm:$0xf]
      %v2035 = vld [vmem:[%s286 + $0x14] sm:$0xf]
      %v2036 = vld [vmem:[%s286 + $0x18] sm:$0xf]
      %v2037 = vld [vmem:[%s286 + $0x1c] sm:$0xf]
      %v2038 = vld [vmem:[%s286 + $0x20] sm:$0xf]
      %v2039 = vld [vmem:[%s286 + $0x24] sm:$0xf]
      %v2040 = vld [vmem:[%s286 + $0x28] sm:$0xf]
      %v2041 = vld [vmem:[%s286 + $0x2c] sm:$0xf]
      %v2042 = vld [vmem:[%s286 + $0x30] sm:$0xf]
      %v2043 = vld [vmem:[%s286 + $0x34] sm:$0xf]
      %v2044 = vld [vmem:[%s286 + $0x38] sm:$0xf]
      %v2045 = vld [vmem:[%s286 + $0x3c] sm:$0xf]
      %v2046 = vld [vmem:[%s286 + $0x40] sm:$0xf]
      %v2047 = vld [vmem:[%s286 + $0x44] sm:$0xf]
      %v2048 = vld [vmem:[%s286 + $0x48] sm:$0xf]
      %v2049 = vld [vmem:[%s286 + $0x4c] sm:$0xf]
      %v2050 = vld [vmem:[%s286 + $0x50] sm:$0xf]
      %v2051 = vld [vmem:[%s286 + $0x54] sm:$0xf]
      %v2052 = vld [vmem:[%s286 + $0x58] sm:$0xf]
      %v2053 = vld [vmem:[%s286 + $0x5c] sm:$0xf]
      %v2054 = vld [vmem:[%s286 + $0x60] sm:$0xf]
      %v2055 = vld [vmem:[%s286 + $0x64] sm:$0xf]
      %v2056 = vld [vmem:[%s286 + $0x68] sm:$0xf]
      %v2057 = vld [vmem:[%s286 + $0x6c] sm:$0xf]
      %v2058 = vld [vmem:[%s286 + $0x70] sm:$0xf]
      %v2059 = vld [vmem:[%s286 + $0x74] sm:$0xf]
      %v2060 = vld [vmem:[%s286 + $0x78] sm:$0xf]
      %v2061 = vld [vmem:[%s286 + $0x7c] sm:$0xf]
      %v2062 = vld [vmem:[%s286 + $0x80] sm:$0xf]
      %v2063 = vld [vmem:[%s286 + $0x84] sm:$0xf]
      %v2064 = vld [vmem:[%s286 + $0x88] sm:$0xf]
      %v2065 = vld [vmem:[%s286 + $0x8c] sm:$0xf]
      %v2066 = vld [vmem:[%s286 + $0x90] sm:$0xf]
      %v2067 = vld [vmem:[%s286 + $0x94] sm:$0xf]
      %v2068 = vld [vmem:[%s286 + $0x98] sm:$0x1]
      %v2069 = vld [vmem:[#allocation2] sm:$0xff]
      %v2070 = vld [vmem:[#allocation2 + $0x8] sm:$0xff]
      %v2071 = vld [vmem:[#allocation2 + $0x10] sm:$0xff]
      %v2072 = vld [vmem:[#allocation2 + $0x18] sm:$0xff]
      %v2073 = vld [vmem:[#allocation2 + $0x20] sm:$0xff]
      %v2074 = vld [vmem:[#allocation2 + $0x28] sm:$0xff]
      %v2075 = vld [vmem:[#allocation2 + $0x30] sm:$0xff]
      %v2076 = vld [vmem:[#allocation2 + $0x38] sm:$0xff]
      %v2077 = vld [vmem:[#allocation2 + $0x40] sm:$0xff]
      %v2078 = vld [vmem:[#allocation2 + $0x48] sm:$0xff]
      %v2079 = vld [vmem:[#allocation2 + $0x50] sm:$0xff]
      %v2080 = vld [vmem:[#allocation2 + $0x58] sm:$0xff]
      %v2081 = vld [vmem:[#allocation2 + $0x60] sm:$0xff]
      %v2082 = vld [vmem:[#allocation2 + $0x68] sm:$0xff]
      %v2083 = vld [vmem:[#allocation2 + $0x70] sm:$0xff]
      %v2084 = vld [vmem:[#allocation2 + $0x78] sm:$0xff]
      %v2085 = vld [vmem:[#allocation2 + $0x80] sm:$0xff]
      %v2086 = vld [vmem:[#allocation2 + $0x88] sm:$0xff]
      %v2087 = vld [vmem:[#allocation2 + $0x90] sm:$0xff]
      %v2088 = vld [vmem:[#allocation2 + $0x98] sm:$0xff]
      %v2089 = vld [vmem:[#allocation2 + $0xa0] sm:$0xff]
      %v2090 = vld [vmem:[#allocation2 + $0xa8] sm:$0xff]
      %v2091 = vld [vmem:[#allocation2 + $0xb0] sm:$0xff]
      %v2092 = vld [vmem:[#allocation2 + $0xb8] sm:$0xff]
      %v2093 = vld [vmem:[#allocation2 + $0xc0] sm:$0xff]
      %v2094 = vld [vmem:[#allocation2 + $0xc8] sm:$0xff]
      %v2095 = vld [vmem:[#allocation2 + $0xd0] sm:$0xff]
      %v2096 = vld [vmem:[#allocation2 + $0xd8] sm:$0xff]
      %v2097 = vld [vmem:[#allocation2 + $0xe0] sm:$0xff]
      %v2098 = vld [vmem:[#allocation2 + $0xe8] sm:$0xff]
      %v2099 = vld [vmem:[#allocation2 + $0xf0] sm:$0xff]
      %v2100 = vld [vmem:[#allocation2 + $0xf8] sm:$0xff]
      %v2101 = vld [vmem:[#allocation2 + $0x100] sm:$0xff]
      %v2102 = vld [vmem:[#allocation2 + $0x108] sm:$0xff]
      %v2103 = vld [vmem:[#allocation2 + $0x110] sm:$0xff]
      %v2104 = vld [vmem:[#allocation2 + $0x118] sm:$0xff]
      %s2105 = scalar_lea.vmem %s294, 192
      %v2106 = vld [vmem:[%s2105] sm:$0xf]
      %v2107 = vld [vmem:[%s2105 + $0x4] sm:$0xf]
      %v2108 = vld [vmem:[%s2105 + $0x8] sm:$0xf]
      %v2109 = vld [vmem:[%s2105 + $0xc] sm:$0xf]
      %v2110 = vld [vmem:[%s2105 + $0x10] sm:$0xf]
      %v2111 = vld [vmem:[%s2105 + $0x14] sm:$0xf]
      %v2112 = vld [vmem:[%s2105 + $0x18] sm:$0xf]
      %v2113 = vld [vmem:[%s2105 + $0x1c] sm:$0xf]
      %v2114 = vld [vmem:[%s2105 + $0x20] sm:$0xf]
      %v2115 = vld [vmem:[%s2105 + $0x24] sm:$0xf]
      %v2116 = vld [vmem:[%s2105 + $0x28] sm:$0xf]
      %v2117 = vld [vmem:[%s2105 + $0x2c] sm:$0xf]
      %v2118 = vld [vmem:[%s2105 + $0x30] sm:$0xf]
      %v2119 = vld [vmem:[%s2105 + $0x34] sm:$0xf]
      %v2120 = vld [vmem:[%s2105 + $0x38] sm:$0xf]
      %v2121 = vld [vmem:[%s2105 + $0x3c] sm:$0xf]
      %v2159 = vunpack.c.l.b16 %v2032
      %v2160 = vunpack.c.l.b16 %v2033
      %v2161 = vunpack.c.l.b16 %v2034
      %v2162 = vunpack.c.l.b16 %v2035
      %v2163 = vunpack.c.l.b16 %v2036
      %v2164 = vunpack.c.l.b16 %v2037
      %v2165 = vunpack.c.l.b16 %v2038
      %v2166 = vunpack.c.l.b16 %v2039
      %v2167 = vunpack.c.l.b16 %v2040
      %v2168 = vunpack.c.l.b16 %v2041
      %v2169 = vunpack.c.l.b16 %v2042
      %v2170 = vunpack.c.l.b16 %v2043
      %v2171 = vunpack.c.l.b16 %v2044
      %v2172 = vunpack.c.l.b16 %v2045
      %v2173 = vunpack.c.l.b16 %v2046
      %v2174 = vunpack.c.l.b16 %v2047
      %v2175 = vunpack.c.l.b16 %v2048
      %v2176 = vunpack.c.l.b16 %v2049
      %v2177 = vunpack.c.l.b16 %v2050
      %v2178 = vunpack.c.l.b16 %v2051
      %v2179 = vunpack.c.l.b16 %v2052
      %v2180 = vunpack.c.l.b16 %v2053
      %v2181 = vunpack.c.l.b16 %v2054
      %v2182 = vunpack.c.l.b16 %v2055
      %v2183 = vunpack.c.l.b16 %v2056
      %v2184 = vunpack.c.l.b16 %v2057
      %v2185 = vunpack.c.l.b16 %v2058
      %v2186 = vunpack.c.l.b16 %v2059
      %v2187 = vunpack.c.l.b16 %v2060
      %v2188 = vunpack.c.l.b16 %v2061
      %v2189 = vunpack.c.l.b16 %v2062
      %v2190 = vunpack.c.l.b16 %v2063
      %v2191 = vunpack.c.l.b16 %v2064
      %v2192 = vunpack.c.l.b16 %v2065
      %v2193 = vunpack.c.l.b16 %v2066
      %v2194 = vunpack.c.l.b16 %v2067
      %v2195 = vunpack.c.l.b16 %v2068
      %v2196 = vpack.c.b16 %v2160, %v2159
      %v2197 = vpack.c.b16 %v2162, %v2161
      %v2198 = vpack.c.b16 %v2164, %v2163
      %v2199 = vpack.c.b16 %v2166, %v2165
      %v2200 = vpack.c.b16 %v2168, %v2167
      %v2201 = vpack.c.b16 %v2170, %v2169
      %v2202 = vpack.c.b16 %v2172, %v2171
      %v2203 = vpack.c.b16 %v2174, %v2173
      %v2204 = vpack.c.b16 %v2176, %v2175
      %v2205 = vpack.c.b16 %v2178, %v2177
      %v2206 = vpack.c.b16 %v2180, %v2179
      %v2207 = vpack.c.b16 %v2182, %v2181
      %v2208 = vpack.c.b16 %v2184, %v2183
      %v2209 = vpack.c.b16 %v2186, %v2185
      %v2210 = vpack.c.b16 %v2188, %v2187
      %v2211 = vpack.c.b16 %v2190, %v2189
      %v2212 = vpack.c.b16 %v2192, %v2191
      %v2213 = vpack.c.b16 %v2194, %v2193
      %v2214 = vpack.c.b16 %v2195, %v2195
      %v2215 = vrot.slane %v2196, 1
      %v2216 = vrot.slane %v2197, 1
      %v2217 = vsel %vm1679, %v2215, %v2216
      %v2218 = vrot.slane %v2198, 1
      %v2219 = vsel %vm1679, %v2216, %v2218
      %v2220 = vrot.slane %v2199, 1
      %v2221 = vsel %vm1679, %v2218, %v2220
      %v2222 = vrot.slane %v2200, 1
      %v2223 = vsel %vm1679, %v2220, %v2222
      %v2224 = vrot.slane %v2201, 1
      %v2225 = vsel %vm1679, %v2222, %v2224
      %v2226 = vrot.slane %v2202, 1
      %v2227 = vsel %vm1679, %v2224, %v2226
      %v2228 = vrot.slane %v2203, 1
      %v2229 = vsel %vm1679, %v2226, %v2228
      %v2230 = vrot.slane %v2204, 1
      %v2231 = vsel %vm1679, %v2228, %v2230
      %v2232 = vrot.slane %v2205, 1
      %v2233 = vsel %vm1679, %v2230, %v2232
      %v2234 = vrot.slane %v2206, 1
      %v2235 = vsel %vm1679, %v2232, %v2234
      %v2236 = vrot.slane %v2207, 1
      %v2237 = vsel %vm1679, %v2234, %v2236
      %v2238 = vrot.slane %v2208, 1
      %v2239 = vsel %vm1679, %v2236, %v2238
      %v2240 = vrot.slane %v2209, 1
      %v2241 = vsel %vm1679, %v2238, %v2240
      %v2242 = vrot.slane %v2210, 1
      %v2243 = vsel %vm1679, %v2240, %v2242
      %v2244 = vrot.slane %v2211, 1
      %v2245 = vsel %vm1679, %v2242, %v2244
      %v2246 = vrot.slane %v2212, 1
      %v2247 = vsel %vm1679, %v2244, %v2246
      %v2248 = vrot.slane %v2213, 1
      %v2249 = vsel %vm1679, %v2246, %v2248
      %v2250 = vrot.slane %v2214, 1
      %v2251 = vsel %vm1679, %v2248, %v2250
      %v2286 = vunpack.c.l.b16 %v2106
      %v2287 = vunpack.c.l.b16 %v2107
      %v2288 = vunpack.c.l.b16 %v2108
      %v2289 = vunpack.c.l.b16 %v2109
      %v2290 = vunpack.c.l.b16 %v2110
      %v2291 = vunpack.c.l.b16 %v2111
      %v2292 = vunpack.c.l.b16 %v2112
      %v2293 = vunpack.c.l.b16 %v2113
      %v2294 = vunpack.c.l.b16 %v2114
      %v2295 = vunpack.c.l.b16 %v2115
      %v2296 = vunpack.c.l.b16 %v2116
      %v2297 = vunpack.c.l.b16 %v2117
      %v2298 = vunpack.c.l.b16 %v2118
      %v2299 = vunpack.c.l.b16 %v2119
      %v2300 = vunpack.c.l.b16 %v2120
      %v2301 = vunpack.c.l.b16 %v2121
      %v2302 = vpack.c.b16 %v2287, %v2286
      %v2303 = vpack.c.b16 %v2289, %v2288
      %v2304 = vpack.c.b16 %v2291, %v2290
      %v2305 = vpack.c.b16 %v2293, %v2292
      %v2306 = vpack.c.b16 %v2295, %v2294
      %v2307 = vpack.c.b16 %v2297, %v2296
      %v2308 = vpack.c.b16 %v2299, %v2298
      %v2309 = vpack.c.b16 %v2301, %v2300
      %2318 = vmatprep.subr.bf16.mxu0 0
      %2319 = vmatpush1.bf16.msra.mxu0 %v2302
      %2320 = vmatprep.subr.bf16.mxu0 0
      %2321 = vmatpush1.bf16.msra.mxu0 %v2303
      %2322 = vmatprep.subr.bf16.mxu0 0
      %2323 = vmatpush1.bf16.msra.mxu0 %v2304
      %2324 = vmatprep.subr.bf16.mxu0 0
      %2325 = vmatpush1.bf16.msra.mxu0 %v2305
      %2326 = vmatprep.subr.bf16.mxu0 0
      %2327 = vmatpush1.bf16.msra.mxu0 %v2306
      %2328 = vmatprep.subr.bf16.mxu0 0
      %2329 = vmatpush1.bf16.msra.mxu0 %v2307
      %2330 = vmatprep.subr.bf16.mxu0 0
      %2331 = vmatpush1.bf16.msra.mxu0 %v2308
      %2332 = vmatprep.subr.bf16.mxu0 0
      %2333 = vmatpush1.bf16.msra.mxu0 %v2309
      %2334 = vmatprep.subr.bf16.mxu0 0
      %2335 = vmatpush1.bf16.msra.mxu0 0
      %2336 = vmatprep.subr.bf16.mxu0 0
      %2337 = vmatpush1.bf16.msra.mxu0 0
      %2338 = vmatprep.subr.bf16.mxu0 0
      %2339 = vmatpush1.bf16.msra.mxu0 0
      %2340 = vmatprep.subr.bf16.mxu0 0
      %2341 = vmatpush1.bf16.msra.mxu0 0
      %2342 = vmatprep.subr.bf16.mxu0 0
      %2343 = vmatpush1.bf16.msra.mxu0 0
      %2344 = vmatprep.subr.bf16.mxu0 0
      %2345 = vmatpush1.bf16.msra.mxu0 0
      %2346 = vmatprep.subr.bf16.mxu0 0
      %2347 = vmatpush1.bf16.msra.mxu0 0
      %2348 = vmatprep.subr.bf16.mxu0 0
      %2349 = vmatpush1.bf16.msra.mxu0 0
      %2350 = vmatprep.mubr.bf16.mxu0 0
      %2351 = vmatmul.mubr.bf16.gmra.mrb[0].mxu0 %v2217
      %v2352 = vpop.f32.mrb[0].mxu0
      %v2353 = vadd.f32 0.0, %v2352
      %v2354 = vpop.f32.mrb[0].mxu0
      %v2355 = vpop.f32.mrb[0].mxu0
      %v2356 = vadd.f32 0.0, %v2355
      %v2357 = vpop.f32.mrb[0].mxu0
      %2358 = vmatprep.mubr.bf16.mxu0 0
      %2359 = vmatmul.mubr.bf16.gmra.mrb[0].mxu0 %v2219
      %v2360 = vpop.f32.mrb[0].mxu0
      %v2361 = vadd.f32 0.0, %v2360
      %v2362 = vpop.f32.mrb[0].mxu0
      %v2363 = vpop.f32.mrb[0].mxu0
      %v2364 = vadd.f32 0.0, %v2363
      %v2365 = vpop.f32.mrb[0].mxu0
      %2366 = vmatprep.mubr.bf16.mxu0 0
      %2367 = vmatmul.mubr.bf16.gmra.mrb[0].mxu0 %v2221
      %v2368 = vpop.f32.mrb[0].mxu0
      %v2369 = vadd.f32 0.0, %v2368
      %v2370 = vpop.f32.mrb[0].mxu0
      %v2371 = vpop.f32.mrb[0].mxu0
      %v2372 = vadd.f32 0.0, %v2371
      %v2373 = vpop.f32.mrb[0].mxu0
      %2374 = vmatprep.mubr.bf16.mxu0 0
      %2375 = vmatmul.mubr.bf16.gmra.mrb[0].mxu0 %v2223
      %v2376 = vpop.f32.mrb[0].mxu0
      %v2377 = vadd.f32 0.0, %v2376
      %v2378 = vpop.f32.mrb[0].mxu0
      %v2379 = vpop.f32.mrb[0].mxu0
      %v2380 = vadd.f32 0.0, %v2379
      %v2381 = vpop.f32.mrb[0].mxu0
      %2382 = vmatprep.mubr.bf16.mxu0 0
      %2383 = vmatmul.mubr.bf16.gmra.mrb[0].mxu0 %v2225
      %v2384 = vpop.f32.mrb[0].mxu0
      %v2385 = vadd.f32 0.0, %v2384
      %v2386 = vpop.f32.mrb[0].mxu0
      %v2387 = vpop.f32.mrb[0].mxu0
      %v2388 = vadd.f32 0.0, %v2387
      %v2389 = vpop.f32.mrb[0].mxu0
      %2390 = vmatprep.mubr.bf16.mxu0 0
      %2391 = vmatmul.mubr.bf16.gmra.mrb[0].mxu0 %v2227
      %v2392 = vpop.f32.mrb[0].mxu0
      %v2393 = vadd.f32 0.0, %v2392
      %v2394 = vpop.f32.mrb[0].mxu0
      %v2395 = vpop.f32.mrb[0].mxu0
      %v2396 = vadd.f32 0.0, %v2395
      %v2397 = vpop.f32.mrb[0].mxu0
      %2398 = vmatprep.mubr.bf16.mxu0 0
      %2399 = vmatmul.mubr.bf16.gmra.mrb[0].mxu0 %v2229
      %v2400 = vpop.f32.mrb[0].mxu0
      %v2401 = vadd.f32 0.0, %v2400
      %v2402 = vpop.f32.mrb[0].mxu0
      %v2403 = vpop.f32.mrb[0].mxu0
      %v2404 = vadd.f32 0.0, %v2403
      %v2405 = vpop.f32.mrb[0].mxu0
      %2406 = vmatprep.mubr.bf16.mxu0 0
      %2407 = vmatmul.mubr.bf16.gmra.mrb[0].mxu0 %v2231
      %v2408 = vpop.f32.mrb[0].mxu0
      %v2409 = vadd.f32 0.0, %v2408
      %v2410 = vpop.f32.mrb[0].mxu0
      %v2411 = vpop.f32.mrb[0].mxu0
      %v2412 = vadd.f32 0.0, %v2411
      %v2413 = vpop.f32.mrb[0].mxu0
      %2414 = vmatprep.mubr.bf16.mxu0 0
      %2415 = vmatmul.mubr.bf16.gmra.mrb[0].mxu0 %v2233
      %v2416 = vpop.f32.mrb[0].mxu0
      %v2417 = vadd.f32 0.0, %v2416
      %v2418 = vpop.f32.mrb[0].mxu0
      %v2419 = vpop.f32.mrb[0].mxu0
      %v2420 = vadd.f32 0.0, %v2419
      %v2421 = vpop.f32.mrb[0].mxu0
      %2422 = vmatprep.mubr.bf16.mxu0 0
      %2423 = vmatmul.mubr.bf16.gmra.mrb[0].mxu0 %v2235
      %v2424 = vpop.f32.mrb[0].mxu0
      %v2425 = vadd.f32 0.0, %v2424
      %v2426 = vpop.f32.mrb[0].mxu0
      %v2427 = vpop.f32.mrb[0].mxu0
      %v2428 = vadd.f32 0.0, %v2427
      %v2429 = vpop.f32.mrb[0].mxu0
      %2430 = vmatprep.mubr.bf16.mxu0 0
      %2431 = vmatmul.mubr.bf16.gmra.mrb[0].mxu0 %v2237
      %v2432 = vpop.f32.mrb[0].mxu0
      %v2433 = vadd.f32 0.0, %v2432
      %v2434 = vpop.f32.mrb[0].mxu0
      %v2435 = vpop.f32.mrb[0].mxu0
      %v2436 = vadd.f32 0.0, %v2435
      %v2437 = vpop.f32.mrb[0].mxu0
      %2438 = vmatprep.mubr.bf16.mxu0 0
      %2439 = vmatmul.mubr.bf16.gmra.mrb[0].mxu0 %v2239
      %v2440 = vpop.f32.mrb[0].mxu0
      %v2441 = vadd.f32 0.0, %v2440
      %v2442 = vpop.f32.mrb[0].mxu0
      %v2443 = vpop.f32.mrb[0].mxu0
      %v2444 = vadd.f32 0.0, %v2443
      %v2445 = vpop.f32.mrb[0].mxu0
      %2446 = vmatprep.mubr.bf16.mxu0 0
      %2447 = vmatmul.mubr.bf16.gmra.mrb[0].mxu0 %v2241
      %v2448 = vpop.f32.mrb[0].mxu0
      %v2449 = vadd.f32 0.0, %v2448
      %v2450 = vpop.f32.mrb[0].mxu0
      %v2451 = vpop.f32.mrb[0].mxu0
      %v2452 = vadd.f32 0.0, %v2451
      %v2453 = vpop.f32.mrb[0].mxu0
      %2454 = vmatprep.mubr.bf16.mxu0 0
      %2455 = vmatmul.mubr.bf16.gmra.mrb[0].mxu0 %v2243
      %v2456 = vpop.f32.mrb[0].mxu0
      %v2457 = vadd.f32 0.0, %v2456
      %v2458 = vpop.f32.mrb[0].mxu0
      %v2459 = vpop.f32.mrb[0].mxu0
      %v2460 = vadd.f32 0.0, %v2459
      %v2461 = vpop.f32.mrb[0].mxu0
      %2462 = vmatprep.mubr.bf16.mxu0 0
      %2463 = vmatmul.mubr.bf16.gmra.mrb[0].mxu0 %v2245
      %v2464 = vpop.f32.mrb[0].mxu0
      %v2465 = vadd.f32 0.0, %v2464
      %v2466 = vpop.f32.mrb[0].mxu0
      %v2467 = vpop.f32.mrb[0].mxu0
      %v2468 = vadd.f32 0.0, %v2467
      %v2469 = vpop.f32.mrb[0].mxu0
      %2470 = vmatprep.mubr.bf16.mxu0 0
      %2471 = vmatmul.mubr.bf16.gmra.mrb[0].mxu0 %v2247
      %v2472 = vpop.f32.mrb[0].mxu0
      %v2473 = vadd.f32 0.0, %v2472
      %v2474 = vpop.f32.mrb[0].mxu0
      %v2475 = vpop.f32.mrb[0].mxu0
      %v2476 = vadd.f32 0.0, %v2475
      %v2477 = vpop.f32.mrb[0].mxu0
      %2478 = vmatprep.mubr.bf16.mxu0 0
      %2479 = vmatmul.mubr.bf16.gmra.mrb[0].mxu0 %v2249
      %v2480 = vpop.f32.mrb[0].mxu0
      %v2481 = vadd.f32 0.0, %v2480
      %v2482 = vpop.f32.mrb[0].mxu0
      %v2483 = vpop.f32.mrb[0].mxu0
      %v2484 = vadd.f32 0.0, %v2483
      %v2485 = vpop.f32.mrb[0].mxu0
      %2486 = vmatprep.mubr.bf16.mxu0 0
      %2487 = vmatmul.mubr.bf16.gmra.mrb[0].mxu0 %v2251
      %v2488 = vpop.f32.mrb[0].mxu0
      %v2489 = vadd.f32 0.0, %v2488
      %v2490 = vpop.f32.mrb[0].mxu0
      %v2491 = vpop.f32.mrb[0].mxu0
      %v2492 = vadd.f32 0.0, %v2491
      %v2493 = vpop.f32.mrb[0].mxu0
      %2494 = vdwg.mxu0
      %v2495 = vadd.f32 %v2069, %v2353
      %v2496 = vadd.f32 %v2070, %v2356
      %v2497 = vadd.f32 %v2071, %v2361
      %v2498 = vadd.f32 %v2072, %v2364
      %v2499 = vadd.f32 %v2073, %v2369
      %v2500 = vadd.f32 %v2074, %v2372
      %v2501 = vadd.f32 %v2075, %v2377
      %v2502 = vadd.f32 %v2076, %v2380
      %v2503 = vadd.f32 %v2077, %v2385
      %v2504 = vadd.f32 %v2078, %v2388
      %v2505 = vadd.f32 %v2079, %v2393
      %v2506 = vadd.f32 %v2080, %v2396
      %v2507 = vadd.f32 %v2081, %v2401
      %v2508 = vadd.f32 %v2082, %v2404
      %v2509 = vadd.f32 %v2083, %v2409
      %v2510 = vadd.f32 %v2084, %v2412
      %v2511 = vadd.f32 %v2085, %v2417
      %v2512 = vadd.f32 %v2086, %v2420
      %v2513 = vadd.f32 %v2087, %v2425
      %v2514 = vadd.f32 %v2088, %v2428
      %v2515 = vadd.f32 %v2089, %v2433
      %v2516 = vadd.f32 %v2090, %v2436
      %v2517 = vadd.f32 %v2091, %v2441
      %v2518 = vadd.f32 %v2092, %v2444
      %v2519 = vadd.f32 %v2093, %v2449
      %v2520 = vadd.f32 %v2094, %v2452
      %v2521 = vadd.f32 %v2095, %v2457
      %v2522 = vadd.f32 %v2096, %v2460
      %v2523 = vadd.f32 %v2097, %v2465
      %v2524 = vadd.f32 %v2098, %v2468
      %v2525 = vadd.f32 %v2099, %v2473
      %v2526 = vadd.f32 %v2100, %v2476
      %v2527 = vadd.f32 %v2101, %v2481
      %v2528 = vadd.f32 %v2102, %v2484
      %v2529 = vadd.f32 %v2103, %v2489
      %v2530 = vadd.f32 %v2104, %v2492
      %2531 = vst [vmem:[#allocation2] sm:$0xff] %v2495
      %2532 = vst [vmem:[#allocation2 + $0x8] sm:$0xff] %v2496
      %2533 = vst [vmem:[#allocation2 + $0x10] sm:$0xff] %v2497
      %2534 = vst [vmem:[#allocation2 + $0x18] sm:$0xff] %v2498
      %2535 = vst [vmem:[#allocation2 + $0x20] sm:$0xff] %v2499
      %2536 = vst [vmem:[#allocation2 + $0x28] sm:$0xff] %v2500
      %2537 = vst [vmem:[#allocation2 + $0x30] sm:$0xff] %v2501
      %2538 = vst [vmem:[#allocation2 + $0x38] sm:$0xff] %v2502
      %2539 = vst [vmem:[#allocation2 + $0x40] sm:$0xff] %v2503
      %2540 = vst [vmem:[#allocation2 + $0x48] sm:$0xff] %v2504
      %2541 = vst [vmem:[#allocation2 + $0x50] sm:$0xff] %v2505
      %2542 = vst [vmem:[#allocation2 + $0x58] sm:$0xff] %v2506
      %2543 = vst [vmem:[#allocation2 + $0x60] sm:$0xff] %v2507
      %2544 = vst [vmem:[#allocation2 + $0x68] sm:$0xff] %v2508
      %2545 = vst [vmem:[#allocation2 + $0x70] sm:$0xff] %v2509
      %2546 = vst [vmem:[#allocation2 + $0x78] sm:$0xff] %v2510
      %2547 = vst [vmem:[#allocation2 + $0x80] sm:$0xff] %v2511
      %2548 = vst [vmem:[#allocation2 + $0x88] sm:$0xff] %v2512
      %2549 = vst [vmem:[#allocation2 + $0x90] sm:$0xff] %v2513
      %2550 = vst [vmem:[#allocation2 + $0x98] sm:$0xff] %v2514
      %2551 = vst [vmem:[#allocation2 + $0xa0] sm:$0xff] %v2515
      %2552 = vst [vmem:[#allocation2 + $0xa8] sm:$0xff] %v2516
      %2553 = vst [vmem:[#allocation2 + $0xb0] sm:$0xff] %v2517
      %2554 = vst [vmem:[#allocation2 + $0xb8] sm:$0xff] %v2518
      %2555 = vst [vmem:[#allocation2 + $0xc0] sm:$0xff] %v2519
      %2556 = vst [vmem:[#allocation2 + $0xc8] sm:$0xff] %v2520
      %2557 = vst [vmem:[#allocation2 + $0xd0] sm:$0xff] %v2521
      %2558 = vst [vmem:[#allocation2 + $0xd8] sm:$0xff] %v2522
      %2559 = vst [vmem:[#allocation2 + $0xe0] sm:$0xff] %v2523
      %2560 = vst [vmem:[#allocation2 + $0xe8] sm:$0xff] %v2524
      %2561 = vst [vmem:[#allocation2 + $0xf0] sm:$0xff] %v2525
      %2562 = vst [vmem:[#allocation2 + $0xf8] sm:$0xff] %v2526
      %2563 = vst [vmem:[#allocation2 + $0x100] sm:$0xff] %v2527
      %2564 = vst [vmem:[#allocation2 + $0x108] sm:$0xff] %v2528
      %2565 = vst [vmem:[#allocation2 + $0x110] sm:$0xff] %v2529
      %2566 = vst [vmem:[#allocation2 + $0x118] sm:$0xff] %v2530
      %v2567 = vld [vmem:[%s286 + $0x8] sm:$0xe]
      %v2568 = vld [vmem:[%s286 + $0xc] sm:$0xf]
      %v2569 = vld [vmem:[%s286 + $0x10] sm:$0xf]
      %v2570 = vld [vmem:[%s286 + $0x14] sm:$0xf]
      %v2571 = vld [vmem:[%s286 + $0x18] sm:$0xf]
      %v2572 = vld [vmem:[%s286 + $0x1c] sm:$0xf]
      %v2573 = vld [vmem:[%s286 + $0x20] sm:$0xf]
      %v2574 = vld [vmem:[%s286 + $0x24] sm:$0xf]
      %v2575 = vld [vmem:[%s286 + $0x28] sm:$0xf]
      %v2576 = vld [vmem:[%s286 + $0x2c] sm:$0xf]
      %v2577 = vld [vmem:[%s286 + $0x30] sm:$0xf]
      %v2578 = vld [vmem:[%s286 + $0x34] sm:$0xf]
      %v2579 = vld [vmem:[%s286 + $0x38] sm:$0xf]
      %v2580 = vld [vmem:[%s286 + $0x3c] sm:$0xf]
      %v2581 = vld [vmem:[%s286 + $0x40] sm:$0xf]
      %v2582 = vld [vmem:[%s286 + $0x44] sm:$0xf]
      %v2583 = vld [vmem:[%s286 + $0x48] sm:$0xf]
      %v2584 = vld [vmem:[%s286 + $0x4c] sm:$0xf]
      %v2585 = vld [vmem:[%s286 + $0x50] sm:$0xf]
      %v2586 = vld [vmem:[%s286 + $0x54] sm:$0xf]
      %v2587 = vld [vmem:[%s286 + $0x58] sm:$0xf]
      %v2588 = vld [vmem:[%s286 + $0x5c] sm:$0xf]
      %v2589 = vld [vmem:[%s286 + $0x60] sm:$0xf]
      %v2590 = vld [vmem:[%s286 + $0x64] sm:$0xf]
      %v2591 = vld [vmem:[%s286 + $0x68] sm:$0xf]
      %v2592 = vld [vmem:[%s286 + $0x6c] sm:$0xf]
      %v2593 = vld [vmem:[%s286 + $0x70] sm:$0xf]
      %v2594 = vld [vmem:[%s286 + $0x74] sm:$0xf]
      %v2595 = vld [vmem:[%s286 + $0x78] sm:$0xf]
      %v2596 = vld [vmem:[%s286 + $0x7c] sm:$0xf]
      %v2597 = vld [vmem:[%s286 + $0x80] sm:$0xf]
      %v2598 = vld [vmem:[%s286 + $0x84] sm:$0xf]
      %v2599 = vld [vmem:[%s286 + $0x88] sm:$0xf]
      %v2600 = vld [vmem:[%s286 + $0x8c] sm:$0xf]
      %v2601 = vld [vmem:[%s286 + $0x90] sm:$0xf]
      %v2602 = vld [vmem:[%s286 + $0x94] sm:$0xf]
      %v2603 = vld [vmem:[%s286 + $0x98] sm:$0x3]
      %v2604 = vld [vmem:[#allocation2] sm:$0xff]
      %v2605 = vld [vmem:[#allocation2 + $0x8] sm:$0xff]
      %v2606 = vld [vmem:[#allocation2 + $0x10] sm:$0xff]
      %v2607 = vld [vmem:[#allocation2 + $0x18] sm:$0xff]
      %v2608 = vld [vmem:[#allocation2 + $0x20] sm:$0xff]
      %v2609 = vld [vmem:[#allocation2 + $0x28] sm:$0xff]
      %v2610 = vld [vmem:[#allocation2 + $0x30] sm:$0xff]
      %v2611 = vld [vmem:[#allocation2 + $0x38] sm:$0xff]
      %v2612 = vld [vmem:[#allocation2 + $0x40] sm:$0xff]
      %v2613 = vld [vmem:[#allocation2 + $0x48] sm:$0xff]
      %v2614 = vld [vmem:[#allocation2 + $0x50] sm:$0xff]
      %v2615 = vld [vmem:[#allocation2 + $0x58] sm:$0xff]
      %v2616 = vld [vmem:[#allocation2 + $0x60] sm:$0xff]
      %v2617 = vld [vmem:[#allocation2 + $0x68] sm:$0xff]
      %v2618 = vld [vmem:[#allocation2 + $0x70] sm:$0xff]
      %v2619 = vld [vmem:[#allocation2 + $0x78] sm:$0xff]
      %v2620 = vld [vmem:[#allocation2 + $0x80] sm:$0xff]
      %v2621 = vld [vmem:[#allocation2 + $0x88] sm:$0xff]
      %v2622 = vld [vmem:[#allocation2 + $0x90] sm:$0xff]
      %v2623 = vld [vmem:[#allocation2 + $0x98] sm:$0xff]
      %v2624 = vld [vmem:[#allocation2 + $0xa0] sm:$0xff]
      %v2625 = vld [vmem:[#allocation2 + $0xa8] sm:$0xff]
      %v2626 = vld [vmem:[#allocation2 + $0xb0] sm:$0xff]
      %v2627 = vld [vmem:[#allocation2 + $0xb8] sm:$0xff]
      %v2628 = vld [vmem:[#allocation2 + $0xc0] sm:$0xff]
      %v2629 = vld [vmem:[#allocation2 + $0xc8] sm:$0xff]
      %v2630 = vld [vmem:[#allocation2 + $0xd0] sm:$0xff]
      %v2631 = vld [vmem:[#allocation2 + $0xd8] sm:$0xff]
      %v2632 = vld [vmem:[#allocation2 + $0xe0] sm:$0xff]
      %v2633 = vld [vmem:[#allocation2 + $0xe8] sm:$0xff]
      %v2634 = vld [vmem:[#allocation2 + $0xf0] sm:$0xff]
      %v2635 = vld [vmem:[#allocation2 + $0xf8] sm:$0xff]
      %v2636 = vld [vmem:[#allocation2 + $0x100] sm:$0xff]
      %v2637 = vld [vmem:[#allocation2 + $0x108] sm:$0xff]
      %v2638 = vld [vmem:[#allocation2 + $0x110] sm:$0xff]
      %v2639 = vld [vmem:[#allocation2 + $0x118] sm:$0xff]
      %s2640 = scalar_lea.vmem %s294, 256
      %v2641 = vld [vmem:[%s2640] sm:$0xf]
      %v2642 = vld [vmem:[%s2640 + $0x4] sm:$0xf]
      %v2643 = vld [vmem:[%s2640 + $0x8] sm:$0xf]
      %v2644 = vld [vmem:[%s2640 + $0xc] sm:$0xf]
      %v2645 = vld [vmem:[%s2640 + $0x10] sm:$0xf]
      %v2646 = vld [vmem:[%s2640 + $0x14] sm:$0xf]
      %v2647 = vld [vmem:[%s2640 + $0x18] sm:$0xf]
      %v2648 = vld [vmem:[%s2640 + $0x1c] sm:$0xf]
      %v2649 = vld [vmem:[%s2640 + $0x20] sm:$0xf]
      %v2650 = vld [vmem:[%s2640 + $0x24] sm:$0xf]
      %v2651 = vld [vmem:[%s2640 + $0x28] sm:$0xf]
      %v2652 = vld [vmem:[%s2640 + $0x2c] sm:$0xf]
      %v2653 = vld [vmem:[%s2640 + $0x30] sm:$0xf]
      %v2654 = vld [vmem:[%s2640 + $0x34] sm:$0xf]
      %v2655 = vld [vmem:[%s2640 + $0x38] sm:$0xf]
      %v2656 = vld [vmem:[%s2640 + $0x3c] sm:$0xf]
      %v2694 = vunpack.c.l.b16 %v2567
      %v2695 = vunpack.c.l.b16 %v2568
      %v2696 = vunpack.c.l.b16 %v2569
      %v2697 = vunpack.c.l.b16 %v2570
      %v2698 = vunpack.c.l.b16 %v2571
      %v2699 = vunpack.c.l.b16 %v2572
      %v2700 = vunpack.c.l.b16 %v2573
      %v2701 = vunpack.c.l.b16 %v2574
      %v2702 = vunpack.c.l.b16 %v2575
      %v2703 = vunpack.c.l.b16 %v2576
      %v2704 = vunpack.c.l.b16 %v2577
      %v2705 = vunpack.c.l.b16 %v2578
      %v2706 = vunpack.c.l.b16 %v2579
      %v2707 = vunpack.c.l.b16 %v2580
      %v2708 = vunpack.c.l.b16 %v2581
      %v2709 = vunpack.c.l.b16 %v2582
      %v2710 = vunpack.c.l.b16 %v2583
      %v2711 = vunpack.c.l.b16 %v2584
      %v2712 = vunpack.c.l.b16 %v2585
      %v2713 = vunpack.c.l.b16 %v2586
      %v2714 = vunpack.c.l.b16 %v2587
      %v2715 = vunpack.c.l.b16 %v2588
      %v2716 = vunpack.c.l.b16 %v2589
      %v2717 = vunpack.c.l.b16 %v2590
      %v2718 = vunpack.c.l.b16 %v2591
      %v2719 = vunpack.c.l.b16 %v2592
      %v2720 = vunpack.c.l.b16 %v2593
      %v2721 = vunpack.c.l.b16 %v2594
      %v2722 = vunpack.c.l.b16 %v2595
      %v2723 = vunpack.c.l.b16 %v2596
      %v2724 = vunpack.c.l.b16 %v2597
      %v2725 = vunpack.c.l.b16 %v2598
      %v2726 = vunpack.c.l.b16 %v2599
      %v2727 = vunpack.c.l.b16 %v2600
      %v2728 = vunpack.c.l.b16 %v2601
      %v2729 = vunpack.c.l.b16 %v2602
      %v2730 = vunpack.c.l.b16 %v2603
      %v2731 = vpack.c.b16 %v2695, %v2694
      %v2732 = vpack.c.b16 %v2697, %v2696
      %v2733 = vpack.c.b16 %v2699, %v2698
      %v2734 = vpack.c.b16 %v2701, %v2700
      %v2735 = vpack.c.b16 %v2703, %v2702
      %v2736 = vpack.c.b16 %v2705, %v2704
      %v2737 = vpack.c.b16 %v2707, %v2706
      %v2738 = vpack.c.b16 %v2709, %v2708
      %v2739 = vpack.c.b16 %v2711, %v2710
      %v2740 = vpack.c.b16 %v2713, %v2712
      %v2741 = vpack.c.b16 %v2715, %v2714
      %v2742 = vpack.c.b16 %v2717, %v2716
      %v2743 = vpack.c.b16 %v2719, %v2718
      %v2744 = vpack.c.b16 %v2721, %v2720
      %v2745 = vpack.c.b16 %v2723, %v2722
      %v2746 = vpack.c.b16 %v2725, %v2724
      %v2747 = vpack.c.b16 %v2727, %v2726
      %v2748 = vpack.c.b16 %v2729, %v2728
      %v2749 = vpack.c.b16 %v2730, %v2730
      %vm2750 = vsmask.f32 6400
      %v2752 = vshrl.u32 %v2731, 16
      %v2754 = vrot.slane %v2752, 1
      %v2755 = vshll.u32 %v2731, 16
      %v2757 = vrot.slane %v2755, 2
      %v2758 = vor.u32 %v2754, %v2757
      %v2760 = vshrl.u32 %v2732, 16
      %v2762 = vrot.slane %v2760, 1
      %v2763 = vshll.u32 %v2732, 16
      %v2765 = vrot.slane %v2763, 2
      %v2766 = vor.u32 %v2762, %v2765
      %v2767 = vsel %vm2750, %v2758, %v2766
      %v2769 = vshrl.u32 %v2733, 16
      %v2771 = vrot.slane %v2769, 1
      %v2772 = vshll.u32 %v2733, 16
      %v2774 = vrot.slane %v2772, 2
      %v2775 = vor.u32 %v2771, %v2774
      %v2776 = vsel %vm2750, %v2766, %v2775
      %v2778 = vshrl.u32 %v2734, 16
      %v2780 = vrot.slane %v2778, 1
      %v2781 = vshll.u32 %v2734, 16
      %v2783 = vrot.slane %v2781, 2
      %v2784 = vor.u32 %v2780, %v2783
      %v2785 = vsel %vm2750, %v2775, %v2784
      %v2787 = vshrl.u32 %v2735, 16
      %v2789 = vrot.slane %v2787, 1
      %v2790 = vshll.u32 %v2735, 16
      %v2792 = vrot.slane %v2790, 2
      %v2793 = vor.u32 %v2789, %v2792
      %v2794 = vsel %vm2750, %v2784, %v2793
      %v2796 = vshrl.u32 %v2736, 16
      %v2798 = vrot.slane %v2796, 1
      %v2799 = vshll.u32 %v2736, 16
      %v2801 = vrot.slane %v2799, 2
      %v2802 = vor.u32 %v2798, %v2801
      %v2803 = vsel %vm2750, %v2793, %v2802
      %v2805 = vshrl.u32 %v2737, 16
      %v2807 = vrot.slane %v2805, 1
      %v2808 = vshll.u32 %v2737, 16
      %v2810 = vrot.slane %v2808, 2
      %v2811 = vor.u32 %v2807, %v2810
      %v2812 = vsel %vm2750, %v2802, %v2811
      %v2814 = vshrl.u32 %v2738, 16
      %v2816 = vrot.slane %v2814, 1
      %v2817 = vshll.u32 %v2738, 16
      %v2819 = vrot.slane %v2817, 2
      %v2820 = vor.u32 %v2816, %v2819
      %v2821 = vsel %vm2750, %v2811, %v2820
      %v2823 = vshrl.u32 %v2739, 16
      %v2825 = vrot.slane %v2823, 1
      %v2826 = vshll.u32 %v2739, 16
      %v2828 = vrot.slane %v2826, 2
      %v2829 = vor.u32 %v2825, %v2828
      %v2830 = vsel %vm2750, %v2820, %v2829
      %v2832 = vshrl.u32 %v2740, 16
      %v2834 = vrot.slane %v2832, 1
      %v2835 = vshll.u32 %v2740, 16
      %v2837 = vrot.slane %v2835, 2
      %v2838 = vor.u32 %v2834, %v2837
      %v2839 = vsel %vm2750, %v2829, %v2838
      %v2841 = vshrl.u32 %v2741, 16
      %v2843 = vrot.slane %v2841, 1
      %v2844 = vshll.u32 %v2741, 16
      %v2846 = vrot.slane %v2844, 2
      %v2847 = vor.u32 %v2843, %v2846
      %v2848 = vsel %vm2750, %v2838, %v2847
      %v2850 = vshrl.u32 %v2742, 16
      %v2852 = vrot.slane %v2850, 1
      %v2853 = vshll.u32 %v2742, 16
      %v2855 = vrot.slane %v2853, 2
      %v2856 = vor.u32 %v2852, %v2855
      %v2857 = vsel %vm2750, %v2847, %v2856
      %v2859 = vshrl.u32 %v2743, 16
      %v2861 = vrot.slane %v2859, 1
      %v2862 = vshll.u32 %v2743, 16
      %v2864 = vrot.slane %v2862, 2
      %v2865 = vor.u32 %v2861, %v2864
      %v2866 = vsel %vm2750, %v2856, %v2865
      %v2868 = vshrl.u32 %v2744, 16
      %v2870 = vrot.slane %v2868, 1
      %v2871 = vshll.u32 %v2744, 16
      %v2873 = vrot.slane %v2871, 2
      %v2874 = vor.u32 %v2870, %v2873
      %v2875 = vsel %vm2750, %v2865, %v2874
      %v2877 = vshrl.u32 %v2745, 16
      %v2879 = vrot.slane %v2877, 1
      %v2880 = vshll.u32 %v2745, 16
      %v2882 = vrot.slane %v2880, 2
      %v2883 = vor.u32 %v2879, %v2882
      %v2884 = vsel %vm2750, %v2874, %v2883
      %v2886 = vshrl.u32 %v2746, 16
      %v2888 = vrot.slane %v2886, 1
      %v2889 = vshll.u32 %v2746, 16
      %v2891 = vrot.slane %v2889, 2
      %v2892 = vor.u32 %v2888, %v2891
      %v2893 = vsel %vm2750, %v2883, %v2892
      %v2895 = vshrl.u32 %v2747, 16
      %v2897 = vrot.slane %v2895, 1
      %v2898 = vshll.u32 %v2747, 16
      %v2900 = vrot.slane %v2898, 2
      %v2901 = vor.u32 %v2897, %v2900
      %v2902 = vsel %vm2750, %v2892, %v2901
      %v2904 = vshrl.u32 %v2748, 16
      %v2906 = vrot.slane %v2904, 1
      %v2907 = vshll.u32 %v2748, 16
      %v2909 = vrot.slane %v2907, 2
      %v2910 = vor.u32 %v2906, %v2909
      %v2911 = vsel %vm2750, %v2901, %v2910
      %v2913 = vshrl.u32 %v2749, 16
      %v2915 = vrot.slane %v2913, 1
      %v2916 = vshll.u32 %v2749, 16
      %v2918 = vrot.slane %v2916, 2
      %v2919 = vor.u32 %v2915, %v2918
      %v2920 = vsel %vm2750, %v2910, %v2919
      %v2955 = vunpack.c.l.b16 %v2641
      %v2956 = vunpack.c.l.b16 %v2642
      %v2957 = vunpack.c.l.b16 %v2643
      %v2958 = vunpack.c.l.b16 %v2644
      %v2959 = vunpack.c.l.b16 %v2645
      %v2960 = vunpack.c.l.b16 %v2646
      %v2961 = vunpack.c.l.b16 %v2647
      %v2962 = vunpack.c.l.b16 %v2648
      %v2963 = vunpack.c.l.b16 %v2649
      %v2964 = vunpack.c.l.b16 %v2650
      %v2965 = vunpack.c.l.b16 %v2651
      %v2966 = vunpack.c.l.b16 %v2652
      %v2967 = vunpack.c.l.b16 %v2653
      %v2968 = vunpack.c.l.b16 %v2654
      %v2969 = vunpack.c.l.b16 %v2655
      %v2970 = vunpack.c.l.b16 %v2656
      %v2971 = vpack.c.b16 %v2956, %v2955
      %v2972 = vpack.c.b16 %v2958, %v2957
      %v2973 = vpack.c.b16 %v2960, %v2959
      %v2974 = vpack.c.b16 %v2962, %v2961
      %v2975 = vpack.c.b16 %v2964, %v2963
      %v2976 = vpack.c.b16 %v2966, %v2965
      %v2977 = vpack.c.b16 %v2968, %v2967
      %v2978 = vpack.c.b16 %v2970, %v2969
      %2987 = vmatprep.subr.bf16.mxu0 0
      %2988 = vmatpush1.bf16.msra.mxu0 %v2971
      %2989 = vmatprep.subr.bf16.mxu0 0
      %2990 = vmatpush1.bf16.msra.mxu0 %v2972
      %2991 = vmatprep.subr.bf16.mxu0 0
      %2992 = vmatpush1.bf16.msra.mxu0 %v2973
      %2993 = vmatprep.subr.bf16.mxu0 0
      %2994 = vmatpush1.bf16.msra.mxu0 %v2974
      %2995 = vmatprep.subr.bf16.mxu0 0
      %2996 = vmatpush1.bf16.msra.mxu0 %v2975
      %2997 = vmatprep.subr.bf16.mxu0 0
      %2998 = vmatpush1.bf16.msra.mxu0 %v2976
      %2999 = vmatprep.subr.bf16.mxu0 0
      %3000 = vmatpush1.bf16.msra.mxu0 %v2977
      %3001 = vmatprep.subr.bf16.mxu0 0
      %3002 = vmatpush1.bf16.msra.mxu0 %v2978
      %3003 = vmatprep.subr.bf16.mxu0 0
      %3004 = vmatpush1.bf16.msra.mxu0 0
      %3005 = vmatprep.subr.bf16.mxu0 0
      %3006 = vmatpush1.bf16.msra.mxu0 0
      %3007 = vmatprep.subr.bf16.mxu0 0
      %3008 = vmatpush1.bf16.msra.mxu0 0
      %3009 = vmatprep.subr.bf16.mxu0 0
      %3010 = vmatpush1.bf16.msra.mxu0 0
      %3011 = vmatprep.subr.bf16.mxu0 0
      %3012 = vmatpush1.bf16.msra.mxu0 0
      %3013 = vmatprep.subr.bf16.mxu0 0
      %3014 = vmatpush1.bf16.msra.mxu0 0
      %3015 = vmatprep.subr.bf16.mxu0 0
      %3016 = vmatpush1.bf16.msra.mxu0 0
      %3017 = vmatprep.subr.bf16.mxu0 0
      %3018 = vmatpush1.bf16.msra.mxu0 0
      %3019 = vmatprep.mubr.bf16.mxu0 0
      %3020 = vmatmul.mubr.bf16.gmra.mrb[0].mxu0 %v2767
      %v3021 = vpop.f32.mrb[0].mxu0
      %v3022 = vadd.f32 0.0, %v3021
      %v3023 = vpop.f32.mrb[0].mxu0
      %v3024 = vpop.f32.mrb[0].mxu0
      %v3025 = vadd.f32 0.0, %v3024
      %v3026 = vpop.f32.mrb[0].mxu0
      %3027 = vmatprep.mubr.bf16.mxu0 0
      %3028 = vmatmul.mubr.bf16.gmra.mrb[0].mxu0 %v2776
      %v3029 = vpop.f32.mrb[0].mxu0
      %v3030 = vadd.f32 0.0, %v3029
      %v3031 = vpop.f32.mrb[0].mxu0
      %v3032 = vpop.f32.mrb[0].mxu0
      %v3033 = vadd.f32 0.0, %v3032
      %v3034 = vpop.f32.mrb[0].mxu0
      %3035 = vmatprep.mubr.bf16.mxu0 0
      %3036 = vmatmul.mubr.bf16.gmra.mrb[0].mxu0 %v2785
      %v3037 = vpop.f32.mrb[0].mxu0
      %v3038 = vadd.f32 0.0, %v3037
      %v3039 = vpop.f32.mrb[0].mxu0
      %v3040 = vpop.f32.mrb[0].mxu0
      %v3041 = vadd.f32 0.0, %v3040
      %v3042 = vpop.f32.mrb[0].mxu0
      %3043 = vmatprep.mubr.bf16.mxu0 0
      %3044 = vmatmul.mubr.bf16.gmra.mrb[0].mxu0 %v2794
      %v3045 = vpop.f32.mrb[0].mxu0
      %v3046 = vadd.f32 0.0, %v3045
      %v3047 = vpop.f32.mrb[0].mxu0
      %v3048 = vpop.f32.mrb[0].mxu0
      %v3049 = vadd.f32 0.0, %v3048
      %v3050 = vpop.f32.mrb[0].mxu0
      %3051 = vmatprep.mubr.bf16.mxu0 0
      %3052 = vmatmul.mubr.bf16.gmra.mrb[0].mxu0 %v2803
      %v3053 = vpop.f32.mrb[0].mxu0
      %v3054 = vadd.f32 0.0, %v3053
      %v3055 = vpop.f32.mrb[0].mxu0
      %v3056 = vpop.f32.mrb[0].mxu0
      %v3057 = vadd.f32 0.0, %v3056
      %v3058 = vpop.f32.mrb[0].mxu0
      %3059 = vmatprep.mubr.bf16.mxu0 0
      %3060 = vmatmul.mubr.bf16.gmra.mrb[0].mxu0 %v2812
      %v3061 = vpop.f32.mrb[0].mxu0
      %v3062 = vadd.f32 0.0, %v3061
      %v3063 = vpop.f32.mrb[0].mxu0
      %v3064 = vpop.f32.mrb[0].mxu0
      %v3065 = vadd.f32 0.0, %v3064
      %v3066 = vpop.f32.mrb[0].mxu0
      %3067 = vmatprep.mubr.bf16.mxu0 0
      %3068 = vmatmul.mubr.bf16.gmra.mrb[0].mxu0 %v2821
      %v3069 = vpop.f32.mrb[0].mxu0
      %v3070 = vadd.f32 0.0, %v3069
      %v3071 = vpop.f32.mrb[0].mxu0
      %v3072 = vpop.f32.mrb[0].mxu0
      %v3073 = vadd.f32 0.0, %v3072
      %v3074 = vpop.f32.mrb[0].mxu0
      %3075 = vmatprep.mubr.bf16.mxu0 0
      %3076 = vmatmul.mubr.bf16.gmra.mrb[0].mxu0 %v2830
      %v3077 = vpop.f32.mrb[0].mxu0
      %v3078 = vadd.f32 0.0, %v3077
      %v3079 = vpop.f32.mrb[0].mxu0
      %v3080 = vpop.f32.mrb[0].mxu0
      %v3081 = vadd.f32 0.0, %v3080
      %v3082 = vpop.f32.mrb[0].mxu0
      %3083 = vmatprep.mubr.bf16.mxu0 0
      %3084 = vmatmul.mubr.bf16.gmra.mrb[0].mxu0 %v2839
      %v3085 = vpop.f32.mrb[0].mxu0
      %v3086 = vadd.f32 0.0, %v3085
      %v3087 = vpop.f32.mrb[0].mxu0
      %v3088 = vpop.f32.mrb[0].mxu0
      %v3089 = vadd.f32 0.0, %v3088
      %v3090 = vpop.f32.mrb[0].mxu0
      %3091 = vmatprep.mubr.bf16.mxu0 0
      %3092 = vmatmul.mubr.bf16.gmra.mrb[0].mxu0 %v2848
      %v3093 = vpop.f32.mrb[0].mxu0
      %v3094 = vadd.f32 0.0, %v3093
      %v3095 = vpop.f32.mrb[0].mxu0
      %v3096 = vpop.f32.mrb[0].mxu0
      %v3097 = vadd.f32 0.0, %v3096
      %v3098 = vpop.f32.mrb[0].mxu0
      %3099 = vmatprep.mubr.bf16.mxu0 0
      %3100 = vmatmul.mubr.bf16.gmra.mrb[0].mxu0 %v2857
      %v3101 = vpop.f32.mrb[0].mxu0
      %v3102 = vadd.f32 0.0, %v3101
      %v3103 = vpop.f32.mrb[0].mxu0
      %v3104 = vpop.f32.mrb[0].mxu0
      %v3105 = vadd.f32 0.0, %v3104
      %v3106 = vpop.f32.mrb[0].mxu0
      %3107 = vmatprep.mubr.bf16.mxu0 0
      %3108 = vmatmul.mubr.bf16.gmra.mrb[0].mxu0 %v2866
      %v3109 = vpop.f32.mrb[0].mxu0
      %v3110 = vadd.f32 0.0, %v3109
      %v3111 = vpop.f32.mrb[0].mxu0
      %v3112 = vpop.f32.mrb[0].mxu0
      %v3113 = vadd.f32 0.0, %v3112
      %v3114 = vpop.f32.mrb[0].mxu0
      %3115 = vmatprep.mubr.bf16.mxu0 0
      %3116 = vmatmul.mubr.bf16.gmra.mrb[0].mxu0 %v2875
      %v3117 = vpop.f32.mrb[0].mxu0
      %v3118 = vadd.f32 0.0, %v3117
      %v3119 = vpop.f32.mrb[0].mxu0
      %v3120 = vpop.f32.mrb[0].mxu0
      %v3121 = vadd.f32 0.0, %v3120
      %v3122 = vpop.f32.mrb[0].mxu0
      %3123 = vmatprep.mubr.bf16.mxu0 0
      %3124 = vmatmul.mubr.bf16.gmra.mrb[0].mxu0 %v2884
      %v3125 = vpop.f32.mrb[0].mxu0
      %v3126 = vadd.f32 0.0, %v3125
      %v3127 = vpop.f32.mrb[0].mxu0
      %v3128 = vpop.f32.mrb[0].mxu0
      %v3129 = vadd.f32 0.0, %v3128
      %v3130 = vpop.f32.mrb[0].mxu0
      %3131 = vmatprep.mubr.bf16.mxu0 0
      %3132 = vmatmul.mubr.bf16.gmra.mrb[0].mxu0 %v2893
      %v3133 = vpop.f32.mrb[0].mxu0
      %v3134 = vadd.f32 0.0, %v3133
      %v3135 = vpop.f32.mrb[0].mxu0
      %v3136 = vpop.f32.mrb[0].mxu0
      %v3137 = vadd.f32 0.0, %v3136
      %v3138 = vpop.f32.mrb[0].mxu0
      %3139 = vmatprep.mubr.bf16.mxu0 0
      %3140 = vmatmul.mubr.bf16.gmra.mrb[0].mxu0 %v2902
      %v3141 = vpop.f32.mrb[0].mxu0
      %v3142 = vadd.f32 0.0, %v3141
      %v3143 = vpop.f32.mrb[0].mxu0
      %v3144 = vpop.f32.mrb[0].mxu0
      %v3145 = vadd.f32 0.0, %v3144
      %v3146 = vpop.f32.mrb[0].mxu0
      %3147 = vmatprep.mubr.bf16.mxu0 0
      %3148 = vmatmul.mubr.bf16.gmra.mrb[0].mxu0 %v2911
      %v3149 = vpop.f32.mrb[0].mxu0
      %v3150 = vadd.f32 0.0, %v3149
      %v3151 = vpop.f32.mrb[0].mxu0
      %v3152 = vpop.f32.mrb[0].mxu0
      %v3153 = vadd.f32 0.0, %v3152
      %v3154 = vpop.f32.mrb[0].mxu0
      %3155 = vmatprep.mubr.bf16.mxu0 0
      %3156 = vmatmul.mubr.bf16.gmra.mrb[0].mxu0 %v2920
      %v3157 = vpop.f32.mrb[0].mxu0
      %v3158 = vadd.f32 0.0, %v3157
      %v3159 = vpop.f32.mrb[0].mxu0
      %v3160 = vpop.f32.mrb[0].mxu0
      %v3161 = vadd.f32 0.0, %v3160
      %v3162 = vpop.f32.mrb[0].mxu0
      %3163 = vdwg.mxu0
      %v3164 = vadd.f32 %v2604, %v3022
      %v3165 = vadd.f32 %v2605, %v3025
      %v3166 = vadd.f32 %v2606, %v3030
      %v3167 = vadd.f32 %v2607, %v3033
      %v3168 = vadd.f32 %v2608, %v3038
      %v3169 = vadd.f32 %v2609, %v3041
      %v3170 = vadd.f32 %v2610, %v3046
      %v3171 = vadd.f32 %v2611, %v3049
      %v3172 = vadd.f32 %v2612, %v3054
      %v3173 = vadd.f32 %v2613, %v3057
      %v3174 = vadd.f32 %v2614, %v3062
      %v3175 = vadd.f32 %v2615, %v3065
      %v3176 = vadd.f32 %v2616, %v3070
      %v3177 = vadd.f32 %v2617, %v3073
      %v3178 = vadd.f32 %v2618, %v3078
      %v3179 = vadd.f32 %v2619, %v3081
      %v3180 = vadd.f32 %v2620, %v3086
      %v3181 = vadd.f32 %v2621, %v3089
      %v3182 = vadd.f32 %v2622, %v3094
      %v3183 = vadd.f32 %v2623, %v3097
      %v3184 = vadd.f32 %v2624, %v3102
      %v3185 = vadd.f32 %v2625, %v3105
      %v3186 = vadd.f32 %v2626, %v3110
      %v3187 = vadd.f32 %v2627, %v3113
      %v3188 = vadd.f32 %v2628, %v3118
      %v3189 = vadd.f32 %v2629, %v3121
      %v3190 = vadd.f32 %v2630, %v3126
      %v3191 = vadd.f32 %v2631, %v3129
      %v3192 = vadd.f32 %v2632, %v3134
      %v3193 = vadd.f32 %v2633, %v3137
      %v3194 = vadd.f32 %v2634, %v3142
      %v3195 = vadd.f32 %v2635, %v3145
      %v3196 = vadd.f32 %v2636, %v3150
      %v3197 = vadd.f32 %v2637, %v3153
      %v3198 = vadd.f32 %v2638, %v3158
      %v3199 = vadd.f32 %v2639, %v3161
      %3200 = vst [vmem:[#allocation2] sm:$0xff] %v3164
      %3201 = vst [vmem:[#allocation2 + $0x8] sm:$0xff] %v3165
      %3202 = vst [vmem:[#allocation2 + $0x10] sm:$0xff] %v3166
      %3203 = vst [vmem:[#allocation2 + $0x18] sm:$0xff] %v3167
      %3204 = vst [vmem:[#allocation2 + $0x20] sm:$0xff] %v3168
      %3205 = vst [vmem:[#allocation2 + $0x28] sm:$0xff] %v3169
      %3206 = vst [vmem:[#allocation2 + $0x30] sm:$0xff] %v3170
      %3207 = vst [vmem:[#allocation2 + $0x38] sm:$0xff] %v3171
      %3208 = vst [vmem:[#allocation2 + $0x40] sm:$0xff] %v3172
      %3209 = vst [vmem:[#allocation2 + $0x48] sm:$0xff] %v3173
      %3210 = vst [vmem:[#allocation2 + $0x50] sm:$0xff] %v3174
      %3211 = vst [vmem:[#allocation2 + $0x58] sm:$0xff] %v3175
      %3212 = vst [vmem:[#allocation2 + $0x60] sm:$0xff] %v3176
      %3213 = vst [vmem:[#allocation2 + $0x68] sm:$0xff] %v3177
      %3214 = vst [vmem:[#allocation2 + $0x70] sm:$0xff] %v3178
      %3215 = vst [vmem:[#allocation2 + $0x78] sm:$0xff] %v3179
      %3216 = vst [vmem:[#allocation2 + $0x80] sm:$0xff] %v3180
      %3217 = vst [vmem:[#allocation2 + $0x88] sm:$0xff] %v3181
      %3218 = vst [vmem:[#allocation2 + $0x90] sm:$0xff] %v3182
      %3219 = vst [vmem:[#allocation2 + $0x98] sm:$0xff] %v3183
      %3220 = vst [vmem:[#allocation2 + $0xa0] sm:$0xff] %v3184
      %3221 = vst [vmem:[#allocation2 + $0xa8] sm:$0xff] %v3185
      %3222 = vst [vmem:[#allocation2 + $0xb0] sm:$0xff] %v3186
      %3223 = vst [vmem:[#allocation2 + $0xb8] sm:$0xff] %v3187
      %3224 = vst [vmem:[#allocation2 + $0xc0] sm:$0xff] %v3188
      %3225 = vst [vmem:[#allocation2 + $0xc8] sm:$0xff] %v3189
      %3226 = vst [vmem:[#allocation2 + $0xd0] sm:$0xff] %v3190
      %3227 = vst [vmem:[#allocation2 + $0xd8] sm:$0xff] %v3191
      %3228 = vst [vmem:[#allocation2 + $0xe0] sm:$0xff] %v3192
      %3229 = vst [vmem:[#allocation2 + $0xe8] sm:$0xff] %v3193
      %3230 = vst [vmem:[#allocation2 + $0xf0] sm:$0xff] %v3194
      %3231 = vst [vmem:[#allocation2 + $0xf8] sm:$0xff] %v3195
      %3232 = vst [vmem:[#allocation2 + $0x100] sm:$0xff] %v3196
      %3233 = vst [vmem:[#allocation2 + $0x108] sm:$0xff] %v3197
      %3234 = vst [vmem:[#allocation2 + $0x110] sm:$0xff] %v3198
      %3235 = vst [vmem:[#allocation2 + $0x118] sm:$0xff] %v3199
      %v3236 = vld [vmem:[%s286 + $0x8] sm:$0xc]
      %v3237 = vld [vmem:[%s286 + $0xc] sm:$0xf]
      %v3238 = vld [vmem:[%s286 + $0x10] sm:$0xf]
      %v3239 = vld [vmem:[%s286 + $0x14] sm:$0xf]
      %v3240 = vld [vmem:[%s286 + $0x18] sm:$0xf]
      %v3241 = vld [vmem:[%s286 + $0x1c] sm:$0xf]
      %v3242 = vld [vmem:[%s286 + $0x20] sm:$0xf]
      %v3243 = vld [vmem:[%s286 + $0x24] sm:$0xf]
      %v3244 = vld [vmem:[%s286 + $0x28] sm:$0xf]
      %v3245 = vld [vmem:[%s286 + $0x2c] sm:$0xf]
      %v3246 = vld [vmem:[%s286 + $0x30] sm:$0xf]
      %v3247 = vld [vmem:[%s286 + $0x34] sm:$0xf]
      %v3248 = vld [vmem:[%s286 + $0x38] sm:$0xf]
      %v3249 = vld [vmem:[%s286 + $0x3c] sm:$0xf]
      %v3250 = vld [vmem:[%s286 + $0x40] sm:$0xf]
      %v3251 = vld [vmem:[%s286 + $0x44] sm:$0xf]
      %v3252 = vld [vmem:[%s286 + $0x48] sm:$0xf]
      %v3253 = vld [vmem:[%s286 + $0x4c] sm:$0xf]
      %v3254 = vld [vmem:[%s286 + $0x50] sm:$0xf]
      %v3255 = vld [vmem:[%s286 + $0x54] sm:$0xf]
      %v3256 = vld [vmem:[%s286 + $0x58] sm:$0xf]
      %v3257 = vld [vmem:[%s286 + $0x5c] sm:$0xf]
      %v3258 = vld [vmem:[%s286 + $0x60] sm:$0xf]
      %v3259 = vld [vmem:[%s286 + $0x64] sm:$0xf]
      %v3260 = vld [vmem:[%s286 + $0x68] sm:$0xf]
      %v3261 = vld [vmem:[%s286 + $0x6c] sm:$0xf]
      %v3262 = vld [vmem:[%s286 + $0x70] sm:$0xf]
      %v3263 = vld [vmem:[%s286 + $0x74] sm:$0xf]
      %v3264 = vld [vmem:[%s286 + $0x78] sm:$0xf]
      %v3265 = vld [vmem:[%s286 + $0x7c] sm:$0xf]
      %v3266 = vld [vmem:[%s286 + $0x80] sm:$0xf]
      %v3267 = vld [vmem:[%s286 + $0x84] sm:$0xf]
      %v3268 = vld [vmem:[%s286 + $0x88] sm:$0xf]
      %v3269 = vld [vmem:[%s286 + $0x8c] sm:$0xf]
      %v3270 = vld [vmem:[%s286 + $0x90] sm:$0xf]
      %v3271 = vld [vmem:[%s286 + $0x94] sm:$0xf]
      %v3272 = vld [vmem:[%s286 + $0x98] sm:$0x3]
      %v3273 = vld [vmem:[#allocation2] sm:$0xff]
      %v3274 = vld [vmem:[#allocation2 + $0x8] sm:$0xff]
      %v3275 = vld [vmem:[#allocation2 + $0x10] sm:$0xff]
      %v3276 = vld [vmem:[#allocation2 + $0x18] sm:$0xff]
      %v3277 = vld [vmem:[#allocation2 + $0x20] sm:$0xff]
      %v3278 = vld [vmem:[#allocation2 + $0x28] sm:$0xff]
      %v3279 = vld [vmem:[#allocation2 + $0x30] sm:$0xff]
      %v3280 = vld [vmem:[#allocation2 + $0x38] sm:$0xff]
      %v3281 = vld [vmem:[#allocation2 + $0x40] sm:$0xff]
      %v3282 = vld [vmem:[#allocation2 + $0x48] sm:$0xff]
      %v3283 = vld [vmem:[#allocation2 + $0x50] sm:$0xff]
      %v3284 = vld [vmem:[#allocation2 + $0x58] sm:$0xff]
      %v3285 = vld [vmem:[#allocation2 + $0x60] sm:$0xff]
      %v3286 = vld [vmem:[#allocation2 + $0x68] sm:$0xff]
      %v3287 = vld [vmem:[#allocation2 + $0x70] sm:$0xff]
      %v3288 = vld [vmem:[#allocation2 + $0x78] sm:$0xff]
      %v3289 = vld [vmem:[#allocation2 + $0x80] sm:$0xff]
      %v3290 = vld [vmem:[#allocation2 + $0x88] sm:$0xff]
      %v3291 = vld [vmem:[#allocation2 + $0x90] sm:$0xff]
      %v3292 = vld [vmem:[#allocation2 + $0x98] sm:$0xff]
      %v3293 = vld [vmem:[#allocation2 + $0xa0] sm:$0xff]
      %v3294 = vld [vmem:[#allocation2 + $0xa8] sm:$0xff]
      %v3295 = vld [vmem:[#allocation2 + $0xb0] sm:$0xff]
      %v3296 = vld [vmem:[#allocation2 + $0xb8] sm:$0xff]
      %v3297 = vld [vmem:[#allocation2 + $0xc0] sm:$0xff]
      %v3298 = vld [vmem:[#allocation2 + $0xc8] sm:$0xff]
      %v3299 = vld [vmem:[#allocation2 + $0xd0] sm:$0xff]
      %v3300 = vld [vmem:[#allocation2 + $0xd8] sm:$0xff]
      %v3301 = vld [vmem:[#allocation2 + $0xe0] sm:$0xff]
      %v3302 = vld [vmem:[#allocation2 + $0xe8] sm:$0xff]
      %v3303 = vld [vmem:[#allocation2 + $0xf0] sm:$0xff]
      %v3304 = vld [vmem:[#allocation2 + $0xf8] sm:$0xff]
      %v3305 = vld [vmem:[#allocation2 + $0x100] sm:$0xff]
      %v3306 = vld [vmem:[#allocation2 + $0x108] sm:$0xff]
      %v3307 = vld [vmem:[#allocation2 + $0x110] sm:$0xff]
      %v3308 = vld [vmem:[#allocation2 + $0x118] sm:$0xff]
      %s3309 = scalar_lea.vmem %s294, 320
      %v3310 = vld [vmem:[%s3309] sm:$0xf]
      %v3311 = vld [vmem:[%s3309 + $0x4] sm:$0xf]
      %v3312 = vld [vmem:[%s3309 + $0x8] sm:$0xf]
      %v3313 = vld [vmem:[%s3309 + $0xc] sm:$0xf]
      %v3314 = vld [vmem:[%s3309 + $0x10] sm:$0xf]
      %v3315 = vld [vmem:[%s3309 + $0x14] sm:$0xf]
      %v3316 = vld [vmem:[%s3309 + $0x18] sm:$0xf]
      %v3317 = vld [vmem:[%s3309 + $0x1c] sm:$0xf]
      %v3318 = vld [vmem:[%s3309 + $0x20] sm:$0xf]
      %v3319 = vld [vmem:[%s3309 + $0x24] sm:$0xf]
      %v3320 = vld [vmem:[%s3309 + $0x28] sm:$0xf]
      %v3321 = vld [vmem:[%s3309 + $0x2c] sm:$0xf]
      %v3322 = vld [vmem:[%s3309 + $0x30] sm:$0xf]
      %v3323 = vld [vmem:[%s3309 + $0x34] sm:$0xf]
      %v3324 = vld [vmem:[%s3309 + $0x38] sm:$0xf]
      %v3325 = vld [vmem:[%s3309 + $0x3c] sm:$0xf]
      %v3363 = vunpack.c.l.b16 %v3236
      %v3364 = vunpack.c.l.b16 %v3237
      %v3365 = vunpack.c.l.b16 %v3238
      %v3366 = vunpack.c.l.b16 %v3239
      %v3367 = vunpack.c.l.b16 %v3240
      %v3368 = vunpack.c.l.b16 %v3241
      %v3369 = vunpack.c.l.b16 %v3242
      %v3370 = vunpack.c.l.b16 %v3243
      %v3371 = vunpack.c.l.b16 %v3244
      %v3372 = vunpack.c.l.b16 %v3245
      %v3373 = vunpack.c.l.b16 %v3246
      %v3374 = vunpack.c.l.b16 %v3247
      %v3375 = vunpack.c.l.b16 %v3248
      %v3376 = vunpack.c.l.b16 %v3249
      %v3377 = vunpack.c.l.b16 %v3250
      %v3378 = vunpack.c.l.b16 %v3251
      %v3379 = vunpack.c.l.b16 %v3252
      %v3380 = vunpack.c.l.b16 %v3253
      %v3381 = vunpack.c.l.b16 %v3254
      %v3382 = vunpack.c.l.b16 %v3255
      %v3383 = vunpack.c.l.b16 %v3256
      %v3384 = vunpack.c.l.b16 %v3257
      %v3385 = vunpack.c.l.b16 %v3258
      %v3386 = vunpack.c.l.b16 %v3259
      %v3387 = vunpack.c.l.b16 %v3260
      %v3388 = vunpack.c.l.b16 %v3261
      %v3389 = vunpack.c.l.b16 %v3262
      %v3390 = vunpack.c.l.b16 %v3263
      %v3391 = vunpack.c.l.b16 %v3264
      %v3392 = vunpack.c.l.b16 %v3265
      %v3393 = vunpack.c.l.b16 %v3266
      %v3394 = vunpack.c.l.b16 %v3267
      %v3395 = vunpack.c.l.b16 %v3268
      %v3396 = vunpack.c.l.b16 %v3269
      %v3397 = vunpack.c.l.b16 %v3270
      %v3398 = vunpack.c.l.b16 %v3271
      %v3399 = vunpack.c.l.b16 %v3272
      %v3400 = vpack.c.b16 %v3364, %v3363
      %v3401 = vpack.c.b16 %v3366, %v3365
      %v3402 = vpack.c.b16 %v3368, %v3367
      %v3403 = vpack.c.b16 %v3370, %v3369
      %v3404 = vpack.c.b16 %v3372, %v3371
      %v3405 = vpack.c.b16 %v3374, %v3373
      %v3406 = vpack.c.b16 %v3376, %v3375
      %v3407 = vpack.c.b16 %v3378, %v3377
      %v3408 = vpack.c.b16 %v3380, %v3379
      %v3409 = vpack.c.b16 %v3382, %v3381
      %v3410 = vpack.c.b16 %v3384, %v3383
      %v3411 = vpack.c.b16 %v3386, %v3385
      %v3412 = vpack.c.b16 %v3388, %v3387
      %v3413 = vpack.c.b16 %v3390, %v3389
      %v3414 = vpack.c.b16 %v3392, %v3391
      %v3415 = vpack.c.b16 %v3394, %v3393
      %v3416 = vpack.c.b16 %v3396, %v3395
      %v3417 = vpack.c.b16 %v3398, %v3397
      %v3418 = vpack.c.b16 %v3399, %v3399
      %vm3419 = vcmask 1045504
      %v3420 = vrot.slane %v3400, 2
      %v3421 = vrot.slane %v3401, 2
      %v3422 = vsel %vm3419, %v3420, %v3421
      %v3423 = vrot.slane %v3402, 2
      %v3424 = vsel %vm3419, %v3421, %v3423
      %v3425 = vrot.slane %v3403, 2
      %v3426 = vsel %vm3419, %v3423, %v3425
      %v3427 = vrot.slane %v3404, 2
      %v3428 = vsel %vm3419, %v3425, %v3427
      %v3429 = vrot.slane %v3405, 2
      %v3430 = vsel %vm3419, %v3427, %v3429
      %v3431 = vrot.slane %v3406, 2
      %v3432 = vsel %vm3419, %v3429, %v3431
      %v3433 = vrot.slane %v3407, 2
      %v3434 = vsel %vm3419, %v3431, %v3433
      %v3435 = vrot.slane %v3408, 2
      %v3436 = vsel %vm3419, %v3433, %v3435
      %v3437 = vrot.slane %v3409, 2
      %v3438 = vsel %vm3419, %v3435, %v3437
      %v3439 = vrot.slane %v3410, 2
      %v3440 = vsel %vm3419, %v3437, %v3439
      %v3441 = vrot.slane %v3411, 2
      %v3442 = vsel %vm3419, %v3439, %v3441
      %v3443 = vrot.slane %v3412, 2
      %v3444 = vsel %vm3419, %v3441, %v3443
      %v3445 = vrot.slane %v3413, 2
      %v3446 = vsel %vm3419, %v3443, %v3445
      %v3447 = vrot.slane %v3414, 2
      %v3448 = vsel %vm3419, %v3445, %v3447
      %v3449 = vrot.slane %v3415, 2
      %v3450 = vsel %vm3419, %v3447, %v3449
      %v3451 = vrot.slane %v3416, 2
      %v3452 = vsel %vm3419, %v3449, %v3451
      %v3453 = vrot.slane %v3417, 2
      %v3454 = vsel %vm3419, %v3451, %v3453
      %v3455 = vrot.slane %v3418, 2
      %v3456 = vsel %vm3419, %v3453, %v3455
      %v3491 = vunpack.c.l.b16 %v3310
      %v3492 = vunpack.c.l.b16 %v3311
      %v3493 = vunpack.c.l.b16 %v3312
      %v3494 = vunpack.c.l.b16 %v3313
      %v3495 = vunpack.c.l.b16 %v3314
      %v3496 = vunpack.c.l.b16 %v3315
      %v3497 = vunpack.c.l.b16 %v3316
      %v3498 = vunpack.c.l.b16 %v3317
      %v3499 = vunpack.c.l.b16 %v3318
      %v3500 = vunpack.c.l.b16 %v3319
      %v3501 = vunpack.c.l.b16 %v3320
      %v3502 = vunpack.c.l.b16 %v3321
      %v3503 = vunpack.c.l.b16 %v3322
      %v3504 = vunpack.c.l.b16 %v3323
      %v3505 = vunpack.c.l.b16 %v3324
      %v3506 = vunpack.c.l.b16 %v3325
      %v3507 = vpack.c.b16 %v3492, %v3491
      %v3508 = vpack.c.b16 %v3494, %v3493
      %v3509 = vpack.c.b16 %v3496, %v3495
      %v3510 = vpack.c.b16 %v3498, %v3497
      %v3511 = vpack.c.b16 %v3500, %v3499
      %v3512 = vpack.c.b16 %v3502, %v3501
      %v3513 = vpack.c.b16 %v3504, %v3503
      %v3514 = vpack.c.b16 %v3506, %v3505
      %3523 = vmatprep.subr.bf16.mxu0 0
      %3524 = vmatpush1.bf16.msra.mxu0 %v3507
      %3525 = vmatprep.subr.bf16.mxu0 0
      %3526 = vmatpush1.bf16.msra.mxu0 %v3508
      %3527 = vmatprep.subr.bf16.mxu0 0
      %3528 = vmatpush1.bf16.msra.mxu0 %v3509
      %3529 = vmatprep.subr.bf16.mxu0 0
      %3530 = vmatpush1.bf16.msra.mxu0 %v3510
      %3531 = vmatprep.subr.bf16.mxu0 0
      %3532 = vmatpush1.bf16.msra.mxu0 %v3511
      %3533 = vmatprep.subr.bf16.mxu0 0
      %3534 = vmatpush1.bf16.msra.mxu0 %v3512
      %3535 = vmatprep.subr.bf16.mxu0 0
      %3536 = vmatpush1.bf16.msra.mxu0 %v3513
      %3537 = vmatprep.subr.bf16.mxu0 0
      %3538 = vmatpush1.bf16.msra.mxu0 %v3514
      %3539 = vmatprep.subr.bf16.mxu0 0
      %3540 = vmatpush1.bf16.msra.mxu0 0
      %3541 = vmatprep.subr.bf16.mxu0 0
      %3542 = vmatpush1.bf16.msra.mxu0 0
      %3543 = vmatprep.subr.bf16.mxu0 0
      %3544 = vmatpush1.bf16.msra.mxu0 0
      %3545 = vmatprep.subr.bf16.mxu0 0
      %3546 = vmatpush1.bf16.msra.mxu0 0
      %3547 = vmatprep.subr.bf16.mxu0 0
      %3548 = vmatpush1.bf16.msra.mxu0 0
      %3549 = vmatprep.subr.bf16.mxu0 0
      %3550 = vmatpush1.bf16.msra.mxu0 0
      %3551 = vmatprep.subr.bf16.mxu0 0
      %3552 = vmatpush1.bf16.msra.mxu0 0
      %3553 = vmatprep.subr.bf16.mxu0 0
      %3554 = vmatpush1.bf16.msra.mxu0 0
      %3555 = vmatprep.mubr.bf16.mxu0 0
      %3556 = vmatmul.mubr.bf16.gmra.mrb[0].mxu0 %v3422
      %v3557 = vpop.f32.mrb[0].mxu0
      %v3558 = vadd.f32 0.0, %v3557
      %v3559 = vpop.f32.mrb[0].mxu0
      %v3560 = vpop.f32.mrb[0].mxu0
      %v3561 = vadd.f32 0.0, %v3560
      %v3562 = vpop.f32.mrb[0].mxu0
      %3563 = vmatprep.mubr.bf16.mxu0 0
      %3564 = vmatmul.mubr.bf16.gmra.mrb[0].mxu0 %v3424
      %v3565 = vpop.f32.mrb[0].mxu0
      %v3566 = vadd.f32 0.0, %v3565
      %v3567 = vpop.f32.mrb[0].mxu0
      %v3568 = vpop.f32.mrb[0].mxu0
      %v3569 = vadd.f32 0.0, %v3568
      %v3570 = vpop.f32.mrb[0].mxu0
      %3571 = vmatprep.mubr.bf16.mxu0 0
      %3572 = vmatmul.mubr.bf16.gmra.mrb[0].mxu0 %v3426
      %v3573 = vpop.f32.mrb[0].mxu0
      %v3574 = vadd.f32 0.0, %v3573
      %v3575 = vpop.f32.mrb[0].mxu0
      %v3576 = vpop.f32.mrb[0].mxu0
      %v3577 = vadd.f32 0.0, %v3576
      %v3578 = vpop.f32.mrb[0].mxu0
      %3579 = vmatprep.mubr.bf16.mxu0 0
      %3580 = vmatmul.mubr.bf16.gmra.mrb[0].mxu0 %v3428
      %v3581 = vpop.f32.mrb[0].mxu0
      %v3582 = vadd.f32 0.0, %v3581
      %v3583 = vpop.f32.mrb[0].mxu0
      %v3584 = vpop.f32.mrb[0].mxu0
      %v3585 = vadd.f32 0.0, %v3584
      %v3586 = vpop.f32.mrb[0].mxu0
      %3587 = vmatprep.mubr.bf16.mxu0 0
      %3588 = vmatmul.mubr.bf16.gmra.mrb[0].mxu0 %v3430
      %v3589 = vpop.f32.mrb[0].mxu0
      %v3590 = vadd.f32 0.0, %v3589
      %v3591 = vpop.f32.mrb[0].mxu0
      %v3592 = vpop.f32.mrb[0].mxu0
      %v3593 = vadd.f32 0.0, %v3592
      %v3594 = vpop.f32.mrb[0].mxu0
      %3595 = vmatprep.mubr.bf16.mxu0 0
      %3596 = vmatmul.mubr.bf16.gmra.mrb[0].mxu0 %v3432
      %v3597 = vpop.f32.mrb[0].mxu0
      %v3598 = vadd.f32 0.0, %v3597
      %v3599 = vpop.f32.mrb[0].mxu0
      %v3600 = vpop.f32.mrb[0].mxu0
      %v3601 = vadd.f32 0.0, %v3600
      %v3602 = vpop.f32.mrb[0].mxu0
      %3603 = vmatprep.mubr.bf16.mxu0 0
      %3604 = vmatmul.mubr.bf16.gmra.mrb[0].mxu0 %v3434
      %v3605 = vpop.f32.mrb[0].mxu0
      %v3606 = vadd.f32 0.0, %v3605
      %v3607 = vpop.f32.mrb[0].mxu0
      %v3608 = vpop.f32.mrb[0].mxu0
      %v3609 = vadd.f32 0.0, %v3608
      %v3610 = vpop.f32.mrb[0].mxu0
      %3611 = vmatprep.mubr.bf16.mxu0 0
      %3612 = vmatmul.mubr.bf16.gmra.mrb[0].mxu0 %v3436
      %v3613 = vpop.f32.mrb[0].mxu0
      %v3614 = vadd.f32 0.0, %v3613
      %v3615 = vpop.f32.mrb[0].mxu0
      %v3616 = vpop.f32.mrb[0].mxu0
      %v3617 = vadd.f32 0.0, %v3616
      %v3618 = vpop.f32.mrb[0].mxu0
      %3619 = vmatprep.mubr.bf16.mxu0 0
      %3620 = vmatmul.mubr.bf16.gmra.mrb[0].mxu0 %v3438
      %v3621 = vpop.f32.mrb[0].mxu0
      %v3622 = vadd.f32 0.0, %v3621
      %v3623 = vpop.f32.mrb[0].mxu0
      %v3624 = vpop.f32.mrb[0].mxu0
      %v3625 = vadd.f32 0.0, %v3624
      %v3626 = vpop.f32.mrb[0].mxu0
      %3627 = vmatprep.mubr.bf16.mxu0 0
      %3628 = vmatmul.mubr.bf16.gmra.mrb[0].mxu0 %v3440
      %v3629 = vpop.f32.mrb[0].mxu0
      %v3630 = vadd.f32 0.0, %v3629
      %v3631 = vpop.f32.mrb[0].mxu0
      %v3632 = vpop.f32.mrb[0].mxu0
      %v3633 = vadd.f32 0.0, %v3632
      %v3634 = vpop.f32.mrb[0].mxu0
      %3635 = vmatprep.mubr.bf16.mxu0 0
      %3636 = vmatmul.mubr.bf16.gmra.mrb[0].mxu0 %v3442
      %v3637 = vpop.f32.mrb[0].mxu0
      %v3638 = vadd.f32 0.0, %v3637
      %v3639 = vpop.f32.mrb[0].mxu0
      %v3640 = vpop.f32.mrb[0].mxu0
      %v3641 = vadd.f32 0.0, %v3640
      %v3642 = vpop.f32.mrb[0].mxu0
      %3643 = vmatprep.mubr.bf16.mxu0 0
      %3644 = vmatmul.mubr.bf16.gmra.mrb[0].mxu0 %v3444
      %v3645 = vpop.f32.mrb[0].mxu0
      %v3646 = vadd.f32 0.0, %v3645
      %v3647 = vpop.f32.mrb[0].mxu0
      %v3648 = vpop.f32.mrb[0].mxu0
      %v3649 = vadd.f32 0.0, %v3648
      %v3650 = vpop.f32.mrb[0].mxu0
      %3651 = vmatprep.mubr.bf16.mxu0 0
      %3652 = vmatmul.mubr.bf16.gmra.mrb[0].mxu0 %v3446
      %v3653 = vpop.f32.mrb[0].mxu0
      %v3654 = vadd.f32 0.0, %v3653
      %v3655 = vpop.f32.mrb[0].mxu0
      %v3656 = vpop.f32.mrb[0].mxu0
      %v3657 = vadd.f32 0.0, %v3656
      %v3658 = vpop.f32.mrb[0].mxu0
      %3659 = vmatprep.mubr.bf16.mxu0 0
      %3660 = vmatmul.mubr.bf16.gmra.mrb[0].mxu0 %v3448
      %v3661 = vpop.f32.mrb[0].mxu0
      %v3662 = vadd.f32 0.0, %v3661
      %v3663 = vpop.f32.mrb[0].mxu0
      %v3664 = vpop.f32.mrb[0].mxu0
      %v3665 = vadd.f32 0.0, %v3664
      %v3666 = vpop.f32.mrb[0].mxu0
      %3667 = vmatprep.mubr.bf16.mxu0 0
      %3668 = vmatmul.mubr.bf16.gmra.mrb[0].mxu0 %v3450
      %v3669 = vpop.f32.mrb[0].mxu0
      %v3670 = vadd.f32 0.0, %v3669
      %v3671 = vpop.f32.mrb[0].mxu0
      %v3672 = vpop.f32.mrb[0].mxu0
      %v3673 = vadd.f32 0.0, %v3672
      %v3674 = vpop.f32.mrb[0].mxu0
      %3675 = vmatprep.mubr.bf16.mxu0 0
      %3676 = vmatmul.mubr.bf16.gmra.mrb[0].mxu0 %v3452
      %v3677 = vpop.f32.mrb[0].mxu0
      %v3678 = vadd.f32 0.0, %v3677
      %v3679 = vpop.f32.mrb[0].mxu0
      %v3680 = vpop.f32.mrb[0].mxu0
      %v3681 = vadd.f32 0.0, %v3680
      %v3682 = vpop.f32.mrb[0].mxu0
      %3683 = vmatprep.mubr.bf16.mxu0 0
      %3684 = vmatmul.mubr.bf16.gmra.mrb[0].mxu0 %v3454
      %v3685 = vpop.f32.mrb[0].mxu0
      %v3686 = vadd.f32 0.0, %v3685
      %v3687 = vpop.f32.mrb[0].mxu0
      %v3688 = vpop.f32.mrb[0].mxu0
      %v3689 = vadd.f32 0.0, %v3688
      %v3690 = vpop.f32.mrb[0].mxu0
      %3691 = vmatprep.mubr.bf16.mxu0 0
      %3692 = vmatmul.mubr.bf16.gmra.mrb[0].mxu0 %v3456
      %v3693 = vpop.f32.mrb[0].mxu0
      %v3694 = vadd.f32 0.0, %v3693
      %v3695 = vpop.f32.mrb[0].mxu0
      %v3696 = vpop.f32.mrb[0].mxu0
      %v3697 = vadd.f32 0.0, %v3696
      %v3698 = vpop.f32.mrb[0].mxu0
      %3699 = vdwg.mxu0
      %v3700 = vadd.f32 %v3273, %v3558
      %v3701 = vadd.f32 %v3274, %v3561
      %v3702 = vadd.f32 %v3275, %v3566
      %v3703 = vadd.f32 %v3276, %v3569
      %v3704 = vadd.f32 %v3277, %v3574
      %v3705 = vadd.f32 %v3278, %v3577
      %v3706 = vadd.f32 %v3279, %v3582
      %v3707 = vadd.f32 %v3280, %v3585
      %v3708 = vadd.f32 %v3281, %v3590
      %v3709 = vadd.f32 %v3282, %v3593
      %v3710 = vadd.f32 %v3283, %v3598
      %v3711 = vadd.f32 %v3284, %v3601
      %v3712 = vadd.f32 %v3285, %v3606
      %v3713 = vadd.f32 %v3286, %v3609
      %v3714 = vadd.f32 %v3287, %v3614
      %v3715 = vadd.f32 %v3288, %v3617
      %v3716 = vadd.f32 %v3289, %v3622
      %v3717 = vadd.f32 %v3290, %v3625
      %v3718 = vadd.f32 %v3291, %v3630
      %v3719 = vadd.f32 %v3292, %v3633
      %v3720 = vadd.f32 %v3293, %v3638
      %v3721 = vadd.f32 %v3294, %v3641
      %v3722 = vadd.f32 %v3295, %v3646
      %v3723 = vadd.f32 %v3296, %v3649
      %v3724 = vadd.f32 %v3297, %v3654
      %v3725 = vadd.f32 %v3298, %v3657
      %v3726 = vadd.f32 %v3299, %v3662
      %v3727 = vadd.f32 %v3300, %v3665
      %v3728 = vadd.f32 %v3301, %v3670
      %v3729 = vadd.f32 %v3302, %v3673
      %v3730 = vadd.f32 %v3303, %v3678
      %v3731 = vadd.f32 %v3304, %v3681
      %v3732 = vadd.f32 %v3305, %v3686
      %v3733 = vadd.f32 %v3306, %v3689
      %v3734 = vadd.f32 %v3307, %v3694
      %v3735 = vadd.f32 %v3308, %v3697
      %3736 = vst [vmem:[#allocation2] sm:$0xff] %v3700
      %3737 = vst [vmem:[#allocation2 + $0x8] sm:$0xff] %v3701
      %3738 = vst [vmem:[#allocation2 + $0x10] sm:$0xff] %v3702
      %3739 = vst [vmem:[#allocation2 + $0x18] sm:$0xff] %v3703
      %3740 = vst [vmem:[#allocation2 + $0x20] sm:$0xff] %v3704
      %3741 = vst [vmem:[#allocation2 + $0x28] sm:$0xff] %v3705
      %3742 = vst [vmem:[#allocation2 + $0x30] sm:$0xff] %v3706
      %3743 = vst [vmem:[#allocation2 + $0x38] sm:$0xff] %v3707
      %3744 = vst [vmem:[#allocation2 + $0x40] sm:$0xff] %v3708
      %3745 = vst [vmem:[#allocation2 + $0x48] sm:$0xff] %v3709
      %3746 = vst [vmem:[#allocation2 + $0x50] sm:$0xff] %v3710
      %3747 = vst [vmem:[#allocation2 + $0x58] sm:$0xff] %v3711
      %3748 = vst [vmem:[#allocation2 + $0x60] sm:$0xff] %v3712
      %3749 = vst [vmem:[#allocation2 + $0x68] sm:$0xff] %v3713
      %3750 = vst [vmem:[#allocation2 + $0x70] sm:$0xff] %v3714
      %3751 = vst [vmem:[#allocation2 + $0x78] sm:$0xff] %v3715
      %3752 = vst [vmem:[#allocation2 + $0x80] sm:$0xff] %v3716
      %3753 = vst [vmem:[#allocation2 + $0x88] sm:$0xff] %v3717
      %3754 = vst [vmem:[#allocation2 + $0x90] sm:$0xff] %v3718
      %3755 = vst [vmem:[#allocation2 + $0x98] sm:$0xff] %v3719
      %3756 = vst [vmem:[#allocation2 + $0xa0] sm:$0xff] %v3720
      %3757 = vst [vmem:[#allocation2 + $0xa8] sm:$0xff] %v3721
      %3758 = vst [vmem:[#allocation2 + $0xb0] sm:$0xff] %v3722
      %3759 = vst [vmem:[#allocation2 + $0xb8] sm:$0xff] %v3723
      %3760 = vst [vmem:[#allocation2 + $0xc0] sm:$0xff] %v3724
      %3761 = vst [vmem:[#allocation2 + $0xc8] sm:$0xff] %v3725
      %3762 = vst [vmem:[#allocation2 + $0xd0] sm:$0xff] %v3726
      %3763 = vst [vmem:[#allocation2 + $0xd8] sm:$0xff] %v3727
      %3764 = vst [vmem:[#allocation2 + $0xe0] sm:$0xff] %v3728
      %3765 = vst [vmem:[#allocation2 + $0xe8] sm:$0xff] %v3729
      %3766 = vst [vmem:[#allocation2 + $0xf0] sm:$0xff] %v3730
      %3767 = vst [vmem:[#allocation2 + $0xf8] sm:$0xff] %v3731
      %3768 = vst [vmem:[#allocation2 + $0x100] sm:$0xff] %v3732
      %3769 = vst [vmem:[#allocation2 + $0x108] sm:$0xff] %v3733
      %3770 = vst [vmem:[#allocation2 + $0x110] sm:$0xff] %v3734
      %3771 = vst [vmem:[#allocation2 + $0x118] sm:$0xff] %v3735
      %v3772 = vld [vmem:[%s286 + $0x10] sm:$0xc]
      %v3773 = vld [vmem:[%s286 + $0x14] sm:$0xf]
      %v3774 = vld [vmem:[%s286 + $0x18] sm:$0xf]
      %v3775 = vld [vmem:[%s286 + $0x1c] sm:$0xf]
      %v3776 = vld [vmem:[%s286 + $0x20] sm:$0xf]
      %v3777 = vld [vmem:[%s286 + $0x24] sm:$0xf]
      %v3778 = vld [vmem:[%s286 + $0x28] sm:$0xf]
      %v3779 = vld [vmem:[%s286 + $0x2c] sm:$0xf]
      %v3780 = vld [vmem:[%s286 + $0x30] sm:$0xf]
      %v3781 = vld [vmem:[%s286 + $0x34] sm:$0xf]
      %v3782 = vld [vmem:[%s286 + $0x38] sm:$0xf]
      %v3783 = vld [vmem:[%s286 + $0x3c] sm:$0xf]
      %v3784 = vld [vmem:[%s286 + $0x40] sm:$0xf]
      %v3785 = vld [vmem:[%s286 + $0x44] sm:$0xf]
      %v3786 = vld [vmem:[%s286 + $0x48] sm:$0xf]
      %v3787 = vld [vmem:[%s286 + $0x4c] sm:$0xf]
      %v3788 = vld [vmem:[%s286 + $0x50] sm:$0xf]
      %v3789 = vld [vmem:[%s286 + $0x54] sm:$0xf]
      %v3790 = vld [vmem:[%s286 + $0x58] sm:$0xf]
      %v3791 = vld [vmem:[%s286 + $0x5c] sm:$0xf]
      %v3792 = vld [vmem:[%s286 + $0x60] sm:$0xf]
      %v3793 = vld [vmem:[%s286 + $0x64] sm:$0xf]
      %v3794 = vld [vmem:[%s286 + $0x68] sm:$0xf]
      %v3795 = vld [vmem:[%s286 + $0x6c] sm:$0xf]
      %v3796 = vld [vmem:[%s286 + $0x70] sm:$0xf]
      %v3797 = vld [vmem:[%s286 + $0x74] sm:$0xf]
      %v3798 = vld [vmem:[%s286 + $0x78] sm:$0xf]
      %v3799 = vld [vmem:[%s286 + $0x7c] sm:$0xf]
      %v3800 = vld [vmem:[%s286 + $0x80] sm:$0xf]
      %v3801 = vld [vmem:[%s286 + $0x84] sm:$0xf]
      %v3802 = vld [vmem:[%s286 + $0x88] sm:$0xf]
      %v3803 = vld [vmem:[%s286 + $0x8c] sm:$0xf]
      %v3804 = vld [vmem:[%s286 + $0x90] sm:$0xf]
      %v3805 = vld [vmem:[%s286 + $0x94] sm:$0xf]
      %v3806 = vld [vmem:[%s286 + $0x98] sm:$0xf]
      %v3807 = vld [vmem:[%s286 + $0x9c] sm:$0xf]
      %v3808 = vld [vmem:[%s286 + $0xa0] sm:$0x3]
      %v3809 = vld [vmem:[#allocation2] sm:$0xff]
      %v3810 = vld [vmem:[#allocation2 + $0x8] sm:$0xff]
      %v3811 = vld [vmem:[#allocation2 + $0x10] sm:$0xff]
      %v3812 = vld [vmem:[#allocation2 + $0x18] sm:$0xff]
      %v3813 = vld [vmem:[#allocation2 + $0x20] sm:$0xff]
      %v3814 = vld [vmem:[#allocation2 + $0x28] sm:$0xff]
      %v3815 = vld [vmem:[#allocation2 + $0x30] sm:$0xff]
      %v3816 = vld [vmem:[#allocation2 + $0x38] sm:$0xff]
      %v3817 = vld [vmem:[#allocation2 + $0x40] sm:$0xff]
      %v3818 = vld [vmem:[#allocation2 + $0x48] sm:$0xff]
      %v3819 = vld [vmem:[#allocation2 + $0x50] sm:$0xff]
      %v3820 = vld [vmem:[#allocation2 + $0x58] sm:$0xff]
      %v3821 = vld [vmem:[#allocation2 + $0x60] sm:$0xff]
      %v3822 = vld [vmem:[#allocation2 + $0x68] sm:$0xff]
      %v3823 = vld [vmem:[#allocation2 + $0x70] sm:$0xff]
      %v3824 = vld [vmem:[#allocation2 + $0x78] sm:$0xff]
      %v3825 = vld [vmem:[#allocation2 + $0x80] sm:$0xff]
      %v3826 = vld [vmem:[#allocation2 + $0x88] sm:$0xff]
      %v3827 = vld [vmem:[#allocation2 + $0x90] sm:$0xff]
      %v3828 = vld [vmem:[#allocation2 + $0x98] sm:$0xff]
      %v3829 = vld [vmem:[#allocation2 + $0xa0] sm:$0xff]
      %v3830 = vld [vmem:[#allocation2 + $0xa8] sm:$0xff]
      %v3831 = vld [vmem:[#allocation2 + $0xb0] sm:$0xff]
      %v3832 = vld [vmem:[#allocation2 + $0xb8] sm:$0xff]
      %v3833 = vld [vmem:[#allocation2 + $0xc0] sm:$0xff]
      %v3834 = vld [vmem:[#allocation2 + $0xc8] sm:$0xff]
      %v3835 = vld [vmem:[#allocation2 + $0xd0] sm:$0xff]
      %v3836 = vld [vmem:[#allocation2 + $0xd8] sm:$0xff]
      %v3837 = vld [vmem:[#allocation2 + $0xe0] sm:$0xff]
      %v3838 = vld [vmem:[#allocation2 + $0xe8] sm:$0xff]
      %v3839 = vld [vmem:[#allocation2 + $0xf0] sm:$0xff]
      %v3840 = vld [vmem:[#allocation2 + $0xf8] sm:$0xff]
      %v3841 = vld [vmem:[#allocation2 + $0x100] sm:$0xff]
      %v3842 = vld [vmem:[#allocation2 + $0x108] sm:$0xff]
      %v3843 = vld [vmem:[#allocation2 + $0x110] sm:$0xff]
      %v3844 = vld [vmem:[#allocation2 + $0x118] sm:$0xff]
      %s3845 = scalar_lea.vmem %s294, 384
      %v3846 = vld [vmem:[%s3845] sm:$0xf]
      %v3847 = vld [vmem:[%s3845 + $0x4] sm:$0xf]
      %v3848 = vld [vmem:[%s3845 + $0x8] sm:$0xf]
      %v3849 = vld [vmem:[%s3845 + $0xc] sm:$0xf]
      %v3850 = vld [vmem:[%s3845 + $0x10] sm:$0xf]
      %v3851 = vld [vmem:[%s3845 + $0x14] sm:$0xf]
      %v3852 = vld [vmem:[%s3845 + $0x18] sm:$0xf]
      %v3853 = vld [vmem:[%s3845 + $0x1c] sm:$0xf]
      %v3854 = vld [vmem:[%s3845 + $0x20] sm:$0xf]
      %v3855 = vld [vmem:[%s3845 + $0x24] sm:$0xf]
      %v3856 = vld [vmem:[%s3845 + $0x28] sm:$0xf]
      %v3857 = vld [vmem:[%s3845 + $0x2c] sm:$0xf]
      %v3858 = vld [vmem:[%s3845 + $0x30] sm:$0xf]
      %v3859 = vld [vmem:[%s3845 + $0x34] sm:$0xf]
      %v3860 = vld [vmem:[%s3845 + $0x38] sm:$0xf]
      %v3861 = vld [vmem:[%s3845 + $0x3c] sm:$0xf]
      %v3899 = vunpack.c.l.b16 %v3772
      %v3900 = vunpack.c.l.b16 %v3773
      %v3901 = vunpack.c.l.b16 %v3774
      %v3902 = vunpack.c.l.b16 %v3775
      %v3903 = vunpack.c.l.b16 %v3776
      %v3904 = vunpack.c.l.b16 %v3777
      %v3905 = vunpack.c.l.b16 %v3778
      %v3906 = vunpack.c.l.b16 %v3779
      %v3907 = vunpack.c.l.b16 %v3780
      %v3908 = vunpack.c.l.b16 %v3781
      %v3909 = vunpack.c.l.b16 %v3782
      %v3910 = vunpack.c.l.b16 %v3783
      %v3911 = vunpack.c.l.b16 %v3784
      %v3912 = vunpack.c.l.b16 %v3785
      %v3913 = vunpack.c.l.b16 %v3786
      %v3914 = vunpack.c.l.b16 %v3787
      %v3915 = vunpack.c.l.b16 %v3788
      %v3916 = vunpack.c.l.b16 %v3789
      %v3917 = vunpack.c.l.b16 %v3790
      %v3918 = vunpack.c.l.b16 %v3791
      %v3919 = vunpack.c.l.b16 %v3792
      %v3920 = vunpack.c.l.b16 %v3793
      %v3921 = vunpack.c.l.b16 %v3794
      %v3922 = vunpack.c.l.b16 %v3795
      %v3923 = vunpack.c.l.b16 %v3796
      %v3924 = vunpack.c.l.b16 %v3797
      %v3925 = vunpack.c.l.b16 %v3798
      %v3926 = vunpack.c.l.b16 %v3799
      %v3927 = vunpack.c.l.b16 %v3800
      %v3928 = vunpack.c.l.b16 %v3801
      %v3929 = vunpack.c.l.b16 %v3802
      %v3930 = vunpack.c.l.b16 %v3803
      %v3931 = vunpack.c.l.b16 %v3804
      %v3932 = vunpack.c.l.b16 %v3805
      %v3933 = vunpack.c.l.b16 %v3806
      %v3934 = vunpack.c.l.b16 %v3807
      %v3935 = vunpack.c.l.b16 %v3808
      %v3936 = vpack.c.b16 %v3900, %v3899
      %v3937 = vpack.c.b16 %v3902, %v3901
      %v3938 = vpack.c.b16 %v3904, %v3903
      %v3939 = vpack.c.b16 %v3906, %v3905
      %v3940 = vpack.c.b16 %v3908, %v3907
      %v3941 = vpack.c.b16 %v3910, %v3909
      %v3942 = vpack.c.b16 %v3912, %v3911
      %v3943 = vpack.c.b16 %v3914, %v3913
      %v3944 = vpack.c.b16 %v3916, %v3915
      %v3945 = vpack.c.b16 %v3918, %v3917
      %v3946 = vpack.c.b16 %v3920, %v3919
      %v3947 = vpack.c.b16 %v3922, %v3921
      %v3948 = vpack.c.b16 %v3924, %v3923
      %v3949 = vpack.c.b16 %v3926, %v3925
      %v3950 = vpack.c.b16 %v3928, %v3927
      %v3951 = vpack.c.b16 %v3930, %v3929
      %v3952 = vpack.c.b16 %v3932, %v3931
      %v3953 = vpack.c.b16 %v3934, %v3933
      %v3954 = vpack.c.b16 %v3935, %v3935
      %v3955 = vrot.slane %v3936, 2
      %v3956 = vrot.slane %v3937, 2
      %v3957 = vsel %vm3419, %v3955, %v3956
      %v3958 = vrot.slane %v3938, 2
      %v3959 = vsel %vm3419, %v3956, %v3958
      %v3960 = vrot.slane %v3939, 2
      %v3961 = vsel %vm3419, %v3958, %v3960
      %v3962 = vrot.slane %v3940, 2
      %v3963 = vsel %vm3419, %v3960, %v3962
      %v3964 = vrot.slane %v3941, 2
      %v3965 = vsel %vm3419, %v3962, %v3964
      %v3966 = vrot.slane %v3942, 2
      %v3967 = vsel %vm3419, %v3964, %v3966
      %v3968 = vrot.slane %v3943, 2
      %v3969 = vsel %vm3419, %v3966, %v3968
      %v3970 = vrot.slane %v3944, 2
      %v3971 = vsel %vm3419, %v3968, %v3970
      %v3972 = vrot.slane %v3945, 2
      %v3973 = vsel %vm3419, %v3970, %v3972
      %v3974 = vrot.slane %v3946, 2
      %v3975 = vsel %vm3419, %v3972, %v3974
      %v3976 = vrot.slane %v3947, 2
      %v3977 = vsel %vm3419, %v3974, %v3976
      %v3978 = vrot.slane %v3948, 2
      %v3979 = vsel %vm3419, %v3976, %v3978
      %v3980 = vrot.slane %v3949, 2
      %v3981 = vsel %vm3419, %v3978, %v3980
      %v3982 = vrot.slane %v3950, 2
      %v3983 = vsel %vm3419, %v3980, %v3982
      %v3984 = vrot.slane %v3951, 2
      %v3985 = vsel %vm3419, %v3982, %v3984
      %v3986 = vrot.slane %v3952, 2
      %v3987 = vsel %vm3419, %v3984, %v3986
      %v3988 = vrot.slane %v3953, 2
      %v3989 = vsel %vm3419, %v3986, %v3988
      %v3990 = vrot.slane %v3954, 2
      %v3991 = vsel %vm3419, %v3988, %v3990
      %v4026 = vunpack.c.l.b16 %v3846
      %v4027 = vunpack.c.l.b16 %v3847
      %v4028 = vunpack.c.l.b16 %v3848
      %v4029 = vunpack.c.l.b16 %v3849
      %v4030 = vunpack.c.l.b16 %v3850
      %v4031 = vunpack.c.l.b16 %v3851
      %v4032 = vunpack.c.l.b16 %v3852
      %v4033 = vunpack.c.l.b16 %v3853
      %v4034 = vunpack.c.l.b16 %v3854
      %v4035 = vunpack.c.l.b16 %v3855
      %v4036 = vunpack.c.l.b16 %v3856
      %v4037 = vunpack.c.l.b16 %v3857
      %v4038 = vunpack.c.l.b16 %v3858
      %v4039 = vunpack.c.l.b16 %v3859
      %v4040 = vunpack.c.l.b16 %v3860
      %v4041 = vunpack.c.l.b16 %v3861
      %v4042 = vpack.c.b16 %v4027, %v4026
      %v4043 = vpack.c.b16 %v4029, %v4028
      %v4044 = vpack.c.b16 %v4031, %v4030
      %v4045 = vpack.c.b16 %v4033, %v4032
      %v4046 = vpack.c.b16 %v4035, %v4034
      %v4047 = vpack.c.b16 %v4037, %v4036
      %v4048 = vpack.c.b16 %v4039, %v4038
      %v4049 = vpack.c.b16 %v4041, %v4040
      %4058 = vmatprep.subr.bf16.mxu0 0
      %4059 = vmatpush1.bf16.msra.mxu0 %v4042
      %4060 = vmatprep.subr.bf16.mxu0 0
      %4061 = vmatpush1.bf16.msra.mxu0 %v4043
      %4062 = vmatprep.subr.bf16.mxu0 0
      %4063 = vmatpush1.bf16.msra.mxu0 %v4044
      %4064 = vmatprep.subr.bf16.mxu0 0
      %4065 = vmatpush1.bf16.msra.mxu0 %v4045
      %4066 = vmatprep.subr.bf16.mxu0 0
      %4067 = vmatpush1.bf16.msra.mxu0 %v4046
      %4068 = vmatprep.subr.bf16.mxu0 0
      %4069 = vmatpush1.bf16.msra.mxu0 %v4047
      %4070 = vmatprep.subr.bf16.mxu0 0
      %4071 = vmatpush1.bf16.msra.mxu0 %v4048
      %4072 = vmatprep.subr.bf16.mxu0 0
      %4073 = vmatpush1.bf16.msra.mxu0 %v4049
      %4074 = vmatprep.subr.bf16.mxu0 0
      %4075 = vmatpush1.bf16.msra.mxu0 0
      %4076 = vmatprep.subr.bf16.mxu0 0
      %4077 = vmatpush1.bf16.msra.mxu0 0
      %4078 = vmatprep.subr.bf16.mxu0 0
      %4079 = vmatpush1.bf16.msra.mxu0 0
      %4080 = vmatprep.subr.bf16.mxu0 0
      %4081 = vmatpush1.bf16.msra.mxu0 0
      %4082 = vmatprep.subr.bf16.mxu0 0
      %4083 = vmatpush1.bf16.msra.mxu0 0
      %4084 = vmatprep.subr.bf16.mxu0 0
      %4085 = vmatpush1.bf16.msra.mxu0 0
      %4086 = vmatprep.subr.bf16.mxu0 0
      %4087 = vmatpush1.bf16.msra.mxu0 0
      %4088 = vmatprep.subr.bf16.mxu0 0
      %4089 = vmatpush1.bf16.msra.mxu0 0
      %4090 = vmatprep.mubr.bf16.mxu0 0
      %4091 = vmatmul.mubr.bf16.gmra.mrb[0].mxu0 %v3957
      %v4092 = vpop.f32.mrb[0].mxu0
      %v4093 = vadd.f32 0.0, %v4092
      %v4094 = vpop.f32.mrb[0].mxu0
      %v4095 = vpop.f32.mrb[0].mxu0
      %v4096 = vadd.f32 0.0, %v4095
      %v4097 = vpop.f32.mrb[0].mxu0
      %4098 = vmatprep.mubr.bf16.mxu0 0
      %4099 = vmatmul.mubr.bf16.gmra.mrb[0].mxu0 %v3959
      %v4100 = vpop.f32.mrb[0].mxu0
      %v4101 = vadd.f32 0.0, %v4100
      %v4102 = vpop.f32.mrb[0].mxu0
      %v4103 = vpop.f32.mrb[0].mxu0
      %v4104 = vadd.f32 0.0, %v4103
      %v4105 = vpop.f32.mrb[0].mxu0
      %4106 = vmatprep.mubr.bf16.mxu0 0
      %4107 = vmatmul.mubr.bf16.gmra.mrb[0].mxu0 %v3961
      %v4108 = vpop.f32.mrb[0].mxu0
      %v4109 = vadd.f32 0.0, %v4108
      %v4110 = vpop.f32.mrb[0].mxu0
      %v4111 = vpop.f32.mrb[0].mxu0
      %v4112 = vadd.f32 0.0, %v4111
      %v4113 = vpop.f32.mrb[0].mxu0
      %4114 = vmatprep.mubr.bf16.mxu0 0
      %4115 = vmatmul.mubr.bf16.gmra.mrb[0].mxu0 %v3963
      %v4116 = vpop.f32.mrb[0].mxu0
      %v4117 = vadd.f32 0.0, %v4116
      %v4118 = vpop.f32.mrb[0].mxu0
      %v4119 = vpop.f32.mrb[0].mxu0
      %v4120 = vadd.f32 0.0, %v4119
      %v4121 = vpop.f32.mrb[0].mxu0
      %4122 = vmatprep.mubr.bf16.mxu0 0
      %4123 = vmatmul.mubr.bf16.gmra.mrb[0].mxu0 %v3965
      %v4124 = vpop.f32.mrb[0].mxu0
      %v4125 = vadd.f32 0.0, %v4124
      %v4126 = vpop.f32.mrb[0].mxu0
      %v4127 = vpop.f32.mrb[0].mxu0
      %v4128 = vadd.f32 0.0, %v4127
      %v4129 = vpop.f32.mrb[0].mxu0
      %4130 = vmatprep.mubr.bf16.mxu0 0
      %4131 = vmatmul.mubr.bf16.gmra.mrb[0].mxu0 %v3967
      %v4132 = vpop.f32.mrb[0].mxu0
      %v4133 = vadd.f32 0.0, %v4132
      %v4134 = vpop.f32.mrb[0].mxu0
      %v4135 = vpop.f32.mrb[0].mxu0
      %v4136 = vadd.f32 0.0, %v4135
      %v4137 = vpop.f32.mrb[0].mxu0
      %4138 = vmatprep.mubr.bf16.mxu0 0
      %4139 = vmatmul.mubr.bf16.gmra.mrb[0].mxu0 %v3969
      %v4140 = vpop.f32.mrb[0].mxu0
      %v4141 = vadd.f32 0.0, %v4140
      %v4142 = vpop.f32.mrb[0].mxu0
      %v4143 = vpop.f32.mrb[0].mxu0
      %v4144 = vadd.f32 0.0, %v4143
      %v4145 = vpop.f32.mrb[0].mxu0
      %4146 = vmatprep.mubr.bf16.mxu0 0
      %4147 = vmatmul.mubr.bf16.gmra.mrb[0].mxu0 %v3971
      %v4148 = vpop.f32.mrb[0].mxu0
      %v4149 = vadd.f32 0.0, %v4148
      %v4150 = vpop.f32.mrb[0].mxu0
      %v4151 = vpop.f32.mrb[0].mxu0
      %v4152 = vadd.f32 0.0, %v4151
      %v4153 = vpop.f32.mrb[0].mxu0
      %4154 = vmatprep.mubr.bf16.mxu0 0
      %4155 = vmatmul.mubr.bf16.gmra.mrb[0].mxu0 %v3973
      %v4156 = vpop.f32.mrb[0].mxu0
      %v4157 = vadd.f32 0.0, %v4156
      %v4158 = vpop.f32.mrb[0].mxu0
      %v4159 = vpop.f32.mrb[0].mxu0
      %v4160 = vadd.f32 0.0, %v4159
      %v4161 = vpop.f32.mrb[0].mxu0
      %4162 = vmatprep.mubr.bf16.mxu0 0
      %4163 = vmatmul.mubr.bf16.gmra.mrb[0].mxu0 %v3975
      %v4164 = vpop.f32.mrb[0].mxu0
      %v4165 = vadd.f32 0.0, %v4164
      %v4166 = vpop.f32.mrb[0].mxu0
      %v4167 = vpop.f32.mrb[0].mxu0
      %v4168 = vadd.f32 0.0, %v4167
      %v4169 = vpop.f32.mrb[0].mxu0
      %4170 = vmatprep.mubr.bf16.mxu0 0
      %4171 = vmatmul.mubr.bf16.gmra.mrb[0].mxu0 %v3977
      %v4172 = vpop.f32.mrb[0].mxu0
      %v4173 = vadd.f32 0.0, %v4172
      %v4174 = vpop.f32.mrb[0].mxu0
      %v4175 = vpop.f32.mrb[0].mxu0
      %v4176 = vadd.f32 0.0, %v4175
      %v4177 = vpop.f32.mrb[0].mxu0
      %4178 = vmatprep.mubr.bf16.mxu0 0
      %4179 = vmatmul.mubr.bf16.gmra.mrb[0].mxu0 %v3979
      %v4180 = vpop.f32.mrb[0].mxu0
      %v4181 = vadd.f32 0.0, %v4180
      %v4182 = vpop.f32.mrb[0].mxu0
      %v4183 = vpop.f32.mrb[0].mxu0
      %v4184 = vadd.f32 0.0, %v4183
      %v4185 = vpop.f32.mrb[0].mxu0
      %4186 = vmatprep.mubr.bf16.mxu0 0
      %4187 = vmatmul.mubr.bf16.gmra.mrb[0].mxu0 %v3981
      %v4188 = vpop.f32.mrb[0].mxu0
      %v4189 = vadd.f32 0.0, %v4188
      %v4190 = vpop.f32.mrb[0].mxu0
      %v4191 = vpop.f32.mrb[0].mxu0
      %v4192 = vadd.f32 0.0, %v4191
      %v4193 = vpop.f32.mrb[0].mxu0
      %4194 = vmatprep.mubr.bf16.mxu0 0
      %4195 = vmatmul.mubr.bf16.gmra.mrb[0].mxu0 %v3983
      %v4196 = vpop.f32.mrb[0].mxu0
      %v4197 = vadd.f32 0.0, %v4196
      %v4198 = vpop.f32.mrb[0].mxu0
      %v4199 = vpop.f32.mrb[0].mxu0
      %v4200 = vadd.f32 0.0, %v4199
      %v4201 = vpop.f32.mrb[0].mxu0
      %4202 = vmatprep.mubr.bf16.mxu0 0
      %4203 = vmatmul.mubr.bf16.gmra.mrb[0].mxu0 %v3985
      %v4204 = vpop.f32.mrb[0].mxu0
      %v4205 = vadd.f32 0.0, %v4204
      %v4206 = vpop.f32.mrb[0].mxu0
      %v4207 = vpop.f32.mrb[0].mxu0
      %v4208 = vadd.f32 0.0, %v4207
      %v4209 = vpop.f32.mrb[0].mxu0
      %4210 = vmatprep.mubr.bf16.mxu0 0
      %4211 = vmatmul.mubr.bf16.gmra.mrb[0].mxu0 %v3987
      %v4212 = vpop.f32.mrb[0].mxu0
      %v4213 = vadd.f32 0.0, %v4212
      %v4214 = vpop.f32.mrb[0].mxu0
      %v4215 = vpop.f32.mrb[0].mxu0
      %v4216 = vadd.f32 0.0, %v4215
      %v4217 = vpop.f32.mrb[0].mxu0
      %4218 = vmatprep.mubr.bf16.mxu0 0
      %4219 = vmatmul.mubr.bf16.gmra.mrb[0].mxu0 %v3989
      %v4220 = vpop.f32.mrb[0].mxu0
      %v4221 = vadd.f32 0.0, %v4220
      %v4222 = vpop.f32.mrb[0].mxu0
      %v4223 = vpop.f32.mrb[0].mxu0
      %v4224 = vadd.f32 0.0, %v4223
      %v4225 = vpop.f32.mrb[0].mxu0
      %4226 = vmatprep.mubr.bf16.mxu0 0
      %4227 = vmatmul.mubr.bf16.gmra.mrb[0].mxu0 %v3991
      %v4228 = vpop.f32.mrb[0].mxu0
      %v4229 = vadd.f32 0.0, %v4228
      %v4230 = vpop.f32.mrb[0].mxu0
      %v4231 = vpop.f32.mrb[0].mxu0
      %v4232 = vadd.f32 0.0, %v4231
      %v4233 = vpop.f32.mrb[0].mxu0
      %4234 = vdwg.mxu0
      %v4235 = vadd.f32 %v3809, %v4093
      %v4236 = vadd.f32 %v3810, %v4096
      %v4237 = vadd.f32 %v3811, %v4101
      %v4238 = vadd.f32 %v3812, %v4104
      %v4239 = vadd.f32 %v3813, %v4109
      %v4240 = vadd.f32 %v3814, %v4112
      %v4241 = vadd.f32 %v3815, %v4117
      %v4242 = vadd.f32 %v3816, %v4120
      %v4243 = vadd.f32 %v3817, %v4125
      %v4244 = vadd.f32 %v3818, %v4128
      %v4245 = vadd.f32 %v3819, %v4133
      %v4246 = vadd.f32 %v3820, %v4136
      %v4247 = vadd.f32 %v3821, %v4141
      %v4248 = vadd.f32 %v3822, %v4144
      %v4249 = vadd.f32 %v3823, %v4149
      %v4250 = vadd.f32 %v3824, %v4152
      %v4251 = vadd.f32 %v3825, %v4157
      %v4252 = vadd.f32 %v3826, %v4160
      %v4253 = vadd.f32 %v3827, %v4165
      %v4254 = vadd.f32 %v3828, %v4168
      %v4255 = vadd.f32 %v3829, %v4173
      %v4256 = vadd.f32 %v3830, %v4176
      %v4257 = vadd.f32 %v3831, %v4181
      %v4258 = vadd.f32 %v3832, %v4184
      %v4259 = vadd.f32 %v3833, %v4189
      %v4260 = vadd.f32 %v3834, %v4192
      %v4261 = vadd.f32 %v3835, %v4197
      %v4262 = vadd.f32 %v3836, %v4200
      %v4263 = vadd.f32 %v3837, %v4205
      %v4264 = vadd.f32 %v3838, %v4208
      %v4265 = vadd.f32 %v3839, %v4213
      %v4266 = vadd.f32 %v3840, %v4216
      %v4267 = vadd.f32 %v3841, %v4221
      %v4268 = vadd.f32 %v3842, %v4224
      %v4269 = vadd.f32 %v3843, %v4229
      %v4270 = vadd.f32 %v3844, %v4232
      %4271 = vst [vmem:[#allocation2] sm:$0xff] %v4235
      %4272 = vst [vmem:[#allocation2 + $0x8] sm:$0xff] %v4236
      %4273 = vst [vmem:[#allocation2 + $0x10] sm:$0xff] %v4237
      %4274 = vst [vmem:[#allocation2 + $0x18] sm:$0xff] %v4238
      %4275 = vst [vmem:[#allocation2 + $0x20] sm:$0xff] %v4239
      %4276 = vst [vmem:[#allocation2 + $0x28] sm:$0xff] %v4240
      %4277 = vst [vmem:[#allocation2 + $0x30] sm:$0xff] %v4241
      %4278 = vst [vmem:[#allocation2 + $0x38] sm:$0xff] %v4242
      %4279 = vst [vmem:[#allocation2 + $0x40] sm:$0xff] %v4243
      %4280 = vst [vmem:[#allocation2 + $0x48] sm:$0xff] %v4244
      %4281 = vst [vmem:[#allocation2 + $0x50] sm:$0xff] %v4245
      %4282 = vst [vmem:[#allocation2 + $0x58] sm:$0xff] %v4246
      %4283 = vst [vmem:[#allocation2 + $0x60] sm:$0xff] %v4247
      %4284 = vst [vmem:[#allocation2 + $0x68] sm:$0xff] %v4248
      %4285 = vst [vmem:[#allocation2 + $0x70] sm:$0xff] %v4249
      %4286 = vst [vmem:[#allocation2 + $0x78] sm:$0xff] %v4250
      %4287 = vst [vmem:[#allocation2 + $0x80] sm:$0xff] %v4251
      %4288 = vst [vmem:[#allocation2 + $0x88] sm:$0xff] %v4252
      %4289 = vst [vmem:[#allocation2 + $0x90] sm:$0xff] %v4253
      %4290 = vst [vmem:[#allocation2 + $0x98] sm:$0xff] %v4254
      %4291 = vst [vmem:[#allocation2 + $0xa0] sm:$0xff] %v4255
      %4292 = vst [vmem:[#allocation2 + $0xa8] sm:$0xff] %v4256
      %4293 = vst [vmem:[#allocation2 + $0xb0] sm:$0xff] %v4257
      %4294 = vst [vmem:[#allocation2 + $0xb8] sm:$0xff] %v4258
      %4295 = vst [vmem:[#allocation2 + $0xc0] sm:$0xff] %v4259
      %4296 = vst [vmem:[#allocation2 + $0xc8] sm:$0xff] %v4260
      %4297 = vst [vmem:[#allocation2 + $0xd0] sm:$0xff] %v4261
      %4298 = vst [vmem:[#allocation2 + $0xd8] sm:$0xff] %v4262
      %4299 = vst [vmem:[#allocation2 + $0xe0] sm:$0xff] %v4263
      %4300 = vst [vmem:[#allocation2 + $0xe8] sm:$0xff] %v4264
      %4301 = vst [vmem:[#allocation2 + $0xf0] sm:$0xff] %v4265
      %4302 = vst [vmem:[#allocation2 + $0xf8] sm:$0xff] %v4266
      %4303 = vst [vmem:[#allocation2 + $0x100] sm:$0xff] %v4267
      %4304 = vst [vmem:[#allocation2 + $0x108] sm:$0xff] %v4268
      %4305 = vst [vmem:[#allocation2 + $0x110] sm:$0xff] %v4269
      %4306 = vst [vmem:[#allocation2 + $0x118] sm:$0xff] %v4270
      %v4307 = vld [vmem:[%s286 + $0x10] sm:$0xc]
      %v4308 = vld [vmem:[%s286 + $0x14] sm:$0xf]
      %v4309 = vld [vmem:[%s286 + $0x18] sm:$0xf]
      %v4310 = vld [vmem:[%s286 + $0x1c] sm:$0xf]
      %v4311 = vld [vmem:[%s286 + $0x20] sm:$0xf]
      %v4312 = vld [vmem:[%s286 + $0x24] sm:$0xf]
      %v4313 = vld [vmem:[%s286 + $0x28] sm:$0xf]
      %v4314 = vld [vmem:[%s286 + $0x2c] sm:$0xf]
      %v4315 = vld [vmem:[%s286 + $0x30] sm:$0xf]
      %v4316 = vld [vmem:[%s286 + $0x34] sm:$0xf]
      %v4317 = vld [vmem:[%s286 + $0x38] sm:$0xf]
      %v4318 = vld [vmem:[%s286 + $0x3c] sm:$0xf]
      %v4319 = vld [vmem:[%s286 + $0x40] sm:$0xf]
      %v4320 = vld [vmem:[%s286 + $0x44] sm:$0xf]
      %v4321 = vld [vmem:[%s286 + $0x48] sm:$0xf]
      %v4322 = vld [vmem:[%s286 + $0x4c] sm:$0xf]
      %v4323 = vld [vmem:[%s286 + $0x50] sm:$0xf]
      %v4324 = vld [vmem:[%s286 + $0x54] sm:$0xf]
      %v4325 = vld [vmem:[%s286 + $0x58] sm:$0xf]
      %v4326 = vld [vmem:[%s286 + $0x5c] sm:$0xf]
      %v4327 = vld [vmem:[%s286 + $0x60] sm:$0xf]
      %v4328 = vld [vmem:[%s286 + $0x64] sm:$0xf]
      %v4329 = vld [vmem:[%s286 + $0x68] sm:$0xf]
      %v4330 = vld [vmem:[%s286 + $0x6c] sm:$0xf]
      %v4331 = vld [vmem:[%s286 + $0x70] sm:$0xf]
      %v4332 = vld [vmem:[%s286 + $0x74] sm:$0xf]
      %v4333 = vld [vmem:[%s286 + $0x78] sm:$0xf]
      %v4334 = vld [vmem:[%s286 + $0x7c] sm:$0xf]
      %v4335 = vld [vmem:[%s286 + $0x80] sm:$0xf]
      %v4336 = vld [vmem:[%s286 + $0x84] sm:$0xf]
      %v4337 = vld [vmem:[%s286 + $0x88] sm:$0xf]
      %v4338 = vld [vmem:[%s286 + $0x8c] sm:$0xf]
      %v4339 = vld [vmem:[%s286 + $0x90] sm:$0xf]
      %v4340 = vld [vmem:[%s286 + $0x94] sm:$0xf]
      %v4341 = vld [vmem:[%s286 + $0x98] sm:$0xf]
      %v4342 = vld [vmem:[%s286 + $0x9c] sm:$0xf]
      %v4343 = vld [vmem:[%s286 + $0xa0] sm:$0x7]
      %v4344 = vld [vmem:[#allocation2] sm:$0xff]
      %v4345 = vld [vmem:[#allocation2 + $0x8] sm:$0xff]
      %v4346 = vld [vmem:[#allocation2 + $0x10] sm:$0xff]
      %v4347 = vld [vmem:[#allocation2 + $0x18] sm:$0xff]
      %v4348 = vld [vmem:[#allocation2 + $0x20] sm:$0xff]
      %v4349 = vld [vmem:[#allocation2 + $0x28] sm:$0xff]
      %v4350 = vld [vmem:[#allocation2 + $0x30] sm:$0xff]
      %v4351 = vld [vmem:[#allocation2 + $0x38] sm:$0xff]
      %v4352 = vld [vmem:[#allocation2 + $0x40] sm:$0xff]
      %v4353 = vld [vmem:[#allocation2 + $0x48] sm:$0xff]
      %v4354 = vld [vmem:[#allocation2 + $0x50] sm:$0xff]
      %v4355 = vld [vmem:[#allocation2 + $0x58] sm:$0xff]
      %v4356 = vld [vmem:[#allocation2 + $0x60] sm:$0xff]
      %v4357 = vld [vmem:[#allocation2 + $0x68] sm:$0xff]
      %v4358 = vld [vmem:[#allocation2 + $0x70] sm:$0xff]
      %v4359 = vld [vmem:[#allocation2 + $0x78] sm:$0xff]
      %v4360 = vld [vmem:[#allocation2 + $0x80] sm:$0xff]
      %v4361 = vld [vmem:[#allocation2 + $0x88] sm:$0xff]
      %v4362 = vld [vmem:[#allocation2 + $0x90] sm:$0xff]
      %v4363 = vld [vmem:[#allocation2 + $0x98] sm:$0xff]
      %v4364 = vld [vmem:[#allocation2 + $0xa0] sm:$0xff]
      %v4365 = vld [vmem:[#allocation2 + $0xa8] sm:$0xff]
      %v4366 = vld [vmem:[#allocation2 + $0xb0] sm:$0xff]
      %v4367 = vld [vmem:[#allocation2 + $0xb8] sm:$0xff]
      %v4368 = vld [vmem:[#allocation2 + $0xc0] sm:$0xff]
      %v4369 = vld [vmem:[#allocation2 + $0xc8] sm:$0xff]
      %v4370 = vld [vmem:[#allocation2 + $0xd0] sm:$0xff]
      %v4371 = vld [vmem:[#allocation2 + $0xd8] sm:$0xff]
      %v4372 = vld [vmem:[#allocation2 + $0xe0] sm:$0xff]
      %v4373 = vld [vmem:[#allocation2 + $0xe8] sm:$0xff]
      %v4374 = vld [vmem:[#allocation2 + $0xf0] sm:$0xff]
      %v4375 = vld [vmem:[#allocation2 + $0xf8] sm:$0xff]
      %v4376 = vld [vmem:[#allocation2 + $0x100] sm:$0xff]
      %v4377 = vld [vmem:[#allocation2 + $0x108] sm:$0xff]
      %v4378 = vld [vmem:[#allocation2 + $0x110] sm:$0xff]
      %v4379 = vld [vmem:[#allocation2 + $0x118] sm:$0xff]
      %s4380 = scalar_lea.vmem %s294, 448
      %v4381 = vld [vmem:[%s4380] sm:$0xf]
      %v4382 = vld [vmem:[%s4380 + $0x4] sm:$0xf]
      %v4383 = vld [vmem:[%s4380 + $0x8] sm:$0xf]
      %v4384 = vld [vmem:[%s4380 + $0xc] sm:$0xf]
      %v4385 = vld [vmem:[%s4380 + $0x10] sm:$0xf]
      %v4386 = vld [vmem:[%s4380 + $0x14] sm:$0xf]
      %v4387 = vld [vmem:[%s4380 + $0x18] sm:$0xf]
      %v4388 = vld [vmem:[%s4380 + $0x1c] sm:$0xf]
      %v4389 = vld [vmem:[%s4380 + $0x20] sm:$0xf]
      %v4390 = vld [vmem:[%s4380 + $0x24] sm:$0xf]
      %v4391 = vld [vmem:[%s4380 + $0x28] sm:$0xf]
      %v4392 = vld [vmem:[%s4380 + $0x2c] sm:$0xf]
      %v4393 = vld [vmem:[%s4380 + $0x30] sm:$0xf]
      %v4394 = vld [vmem:[%s4380 + $0x34] sm:$0xf]
      %v4395 = vld [vmem:[%s4380 + $0x38] sm:$0xf]
      %v4396 = vld [vmem:[%s4380 + $0x3c] sm:$0xf]
      %v4434 = vunpack.c.l.b16 %v4307
      %v4435 = vunpack.c.l.b16 %v4308
      %v4436 = vunpack.c.l.b16 %v4309
      %v4437 = vunpack.c.l.b16 %v4310
      %v4438 = vunpack.c.l.b16 %v4311
      %v4439 = vunpack.c.l.b16 %v4312
      %v4440 = vunpack.c.l.b16 %v4313
      %v4441 = vunpack.c.l.b16 %v4314
      %v4442 = vunpack.c.l.b16 %v4315
      %v4443 = vunpack.c.l.b16 %v4316
      %v4444 = vunpack.c.l.b16 %v4317
      %v4445 = vunpack.c.l.b16 %v4318
      %v4446 = vunpack.c.l.b16 %v4319
      %v4447 = vunpack.c.l.b16 %v4320
      %v4448 = vunpack.c.l.b16 %v4321
      %v4449 = vunpack.c.l.b16 %v4322
      %v4450 = vunpack.c.l.b16 %v4323
      %v4451 = vunpack.c.l.b16 %v4324
      %v4452 = vunpack.c.l.b16 %v4325
      %v4453 = vunpack.c.l.b16 %v4326
      %v4454 = vunpack.c.l.b16 %v4327
      %v4455 = vunpack.c.l.b16 %v4328
      %v4456 = vunpack.c.l.b16 %v4329
      %v4457 = vunpack.c.l.b16 %v4330
      %v4458 = vunpack.c.l.b16 %v4331
      %v4459 = vunpack.c.l.b16 %v4332
      %v4460 = vunpack.c.l.b16 %v4333
      %v4461 = vunpack.c.l.b16 %v4334
      %v4462 = vunpack.c.l.b16 %v4335
      %v4463 = vunpack.c.l.b16 %v4336
      %v4464 = vunpack.c.l.b16 %v4337
      %v4465 = vunpack.c.l.b16 %v4338
      %v4466 = vunpack.c.l.b16 %v4339
      %v4467 = vunpack.c.l.b16 %v4340
      %v4468 = vunpack.c.l.b16 %v4341
      %v4469 = vunpack.c.l.b16 %v4342
      %v4470 = vunpack.c.l.b16 %v4343
      %v4471 = vpack.c.b16 %v4435, %v4434
      %v4472 = vpack.c.b16 %v4437, %v4436
      %v4473 = vpack.c.b16 %v4439, %v4438
      %v4474 = vpack.c.b16 %v4441, %v4440
      %v4475 = vpack.c.b16 %v4443, %v4442
      %v4476 = vpack.c.b16 %v4445, %v4444
      %v4477 = vpack.c.b16 %v4447, %v4446
      %v4478 = vpack.c.b16 %v4449, %v4448
      %v4479 = vpack.c.b16 %v4451, %v4450
      %v4480 = vpack.c.b16 %v4453, %v4452
      %v4481 = vpack.c.b16 %v4455, %v4454
      %v4482 = vpack.c.b16 %v4457, %v4456
      %v4483 = vpack.c.b16 %v4459, %v4458
      %v4484 = vpack.c.b16 %v4461, %v4460
      %v4485 = vpack.c.b16 %v4463, %v4462
      %v4486 = vpack.c.b16 %v4465, %v4464
      %v4487 = vpack.c.b16 %v4467, %v4466
      %v4488 = vpack.c.b16 %v4469, %v4468
      %v4489 = vpack.c.b16 %v4470, %v4470
      %vm4490 = vsmask.f32 5376
      %v4492 = vshrl.u32 %v4471, 16
      %v4494 = vrot.slane %v4492, 2
      %v4495 = vshll.u32 %v4471, 16
      %v4497 = vrot.slane %v4495, 3
      %v4498 = vor.u32 %v4494, %v4497
      %v4500 = vshrl.u32 %v4472, 16
      %v4502 = vrot.slane %v4500, 2
      %v4503 = vshll.u32 %v4472, 16
      %v4505 = vrot.slane %v4503, 3
      %v4506 = vor.u32 %v4502, %v4505
      %v4507 = vsel %vm4490, %v4498, %v4506
      %v4509 = vshrl.u32 %v4473, 16
      %v4511 = vrot.slane %v4509, 2
      %v4512 = vshll.u32 %v4473, 16
      %v4514 = vrot.slane %v4512, 3
      %v4515 = vor.u32 %v4511, %v4514
      %v4516 = vsel %vm4490, %v4506, %v4515
      %v4518 = vshrl.u32 %v4474, 16
      %v4520 = vrot.slane %v4518, 2
      %v4521 = vshll.u32 %v4474, 16
      %v4523 = vrot.slane %v4521, 3
      %v4524 = vor.u32 %v4520, %v4523
      %v4525 = vsel %vm4490, %v4515, %v4524
      %v4527 = vshrl.u32 %v4475, 16
      %v4529 = vrot.slane %v4527, 2
      %v4530 = vshll.u32 %v4475, 16
      %v4532 = vrot.slane %v4530, 3
      %v4533 = vor.u32 %v4529, %v4532
      %v4534 = vsel %vm4490, %v4524, %v4533
      %v4536 = vshrl.u32 %v4476, 16
      %v4538 = vrot.slane %v4536, 2
      %v4539 = vshll.u32 %v4476, 16
      %v4541 = vrot.slane %v4539, 3
      %v4542 = vor.u32 %v4538, %v4541
      %v4543 = vsel %vm4490, %v4533, %v4542
      %v4545 = vshrl.u32 %v4477, 16
      %v4547 = vrot.slane %v4545, 2
      %v4548 = vshll.u32 %v4477, 16
      %v4550 = vrot.slane %v4548, 3
      %v4551 = vor.u32 %v4547, %v4550
      %v4552 = vsel %vm4490, %v4542, %v4551
      %v4554 = vshrl.u32 %v4478, 16
      %v4556 = vrot.slane %v4554, 2
      %v4557 = vshll.u32 %v4478, 16
      %v4559 = vrot.slane %v4557, 3
      %v4560 = vor.u32 %v4556, %v4559
      %v4561 = vsel %vm4490, %v4551, %v4560
      %v4563 = vshrl.u32 %v4479, 16
      %v4565 = vrot.slane %v4563, 2
      %v4566 = vshll.u32 %v4479, 16
      %v4568 = vrot.slane %v4566, 3
      %v4569 = vor.u32 %v4565, %v4568
      %v4570 = vsel %vm4490, %v4560, %v4569
      %v4572 = vshrl.u32 %v4480, 16
      %v4574 = vrot.slane %v4572, 2
      %v4575 = vshll.u32 %v4480, 16
      %v4577 = vrot.slane %v4575, 3
      %v4578 = vor.u32 %v4574, %v4577
      %v4579 = vsel %vm4490, %v4569, %v4578
      %v4581 = vshrl.u32 %v4481, 16
      %v4583 = vrot.slane %v4581, 2
      %v4584 = vshll.u32 %v4481, 16
      %v4586 = vrot.slane %v4584, 3
      %v4587 = vor.u32 %v4583, %v4586
      %v4588 = vsel %vm4490, %v4578, %v4587
      %v4590 = vshrl.u32 %v4482, 16
      %v4592 = vrot.slane %v4590, 2
      %v4593 = vshll.u32 %v4482, 16
      %v4595 = vrot.slane %v4593, 3
      %v4596 = vor.u32 %v4592, %v4595
      %v4597 = vsel %vm4490, %v4587, %v4596
      %v4599 = vshrl.u32 %v4483, 16
      %v4601 = vrot.slane %v4599, 2
      %v4602 = vshll.u32 %v4483, 16
      %v4604 = vrot.slane %v4602, 3
      %v4605 = vor.u32 %v4601, %v4604
      %v4606 = vsel %vm4490, %v4596, %v4605
      %v4608 = vshrl.u32 %v4484, 16
      %v4610 = vrot.slane %v4608, 2
      %v4611 = vshll.u32 %v4484, 16
      %v4613 = vrot.slane %v4611, 3
      %v4614 = vor.u32 %v4610, %v4613
      %v4615 = vsel %vm4490, %v4605, %v4614
      %v4617 = vshrl.u32 %v4485, 16
      %v4619 = vrot.slane %v4617, 2
      %v4620 = vshll.u32 %v4485, 16
      %v4622 = vrot.slane %v4620, 3
      %v4623 = vor.u32 %v4619, %v4622
      %v4624 = vsel %vm4490, %v4614, %v4623
      %v4626 = vshrl.u32 %v4486, 16
      %v4628 = vrot.slane %v4626, 2
      %v4629 = vshll.u32 %v4486, 16
      %v4631 = vrot.slane %v4629, 3
      %v4632 = vor.u32 %v4628, %v4631
      %v4633 = vsel %vm4490, %v4623, %v4632
      %v4635 = vshrl.u32 %v4487, 16
      %v4637 = vrot.slane %v4635, 2
      %v4638 = vshll.u32 %v4487, 16
      %v4640 = vrot.slane %v4638, 3
      %v4641 = vor.u32 %v4637, %v4640
      %v4642 = vsel %vm4490, %v4632, %v4641
      %v4644 = vshrl.u32 %v4488, 16
      %v4646 = vrot.slane %v4644, 2
      %v4647 = vshll.u32 %v4488, 16
      %v4649 = vrot.slane %v4647, 3
      %v4650 = vor.u32 %v4646, %v4649
      %v4651 = vsel %vm4490, %v4641, %v4650
      %v4653 = vshrl.u32 %v4489, 16
      %v4655 = vrot.slane %v4653, 2
      %v4656 = vshll.u32 %v4489, 16
      %v4658 = vrot.slane %v4656, 3
      %v4659 = vor.u32 %v4655, %v4658
      %v4660 = vsel %vm4490, %v4650, %v4659
      %v4695 = vunpack.c.l.b16 %v4381
      %v4696 = vunpack.c.l.b16 %v4382
      %v4697 = vunpack.c.l.b16 %v4383
      %v4698 = vunpack.c.l.b16 %v4384
      %v4699 = vunpack.c.l.b16 %v4385
      %v4700 = vunpack.c.l.b16 %v4386
      %v4701 = vunpack.c.l.b16 %v4387
      %v4702 = vunpack.c.l.b16 %v4388
      %v4703 = vunpack.c.l.b16 %v4389
      %v4704 = vunpack.c.l.b16 %v4390
      %v4705 = vunpack.c.l.b16 %v4391
      %v4706 = vunpack.c.l.b16 %v4392
      %v4707 = vunpack.c.l.b16 %v4393
      %v4708 = vunpack.c.l.b16 %v4394
      %v4709 = vunpack.c.l.b16 %v4395
      %v4710 = vunpack.c.l.b16 %v4396
      %v4711 = vpack.c.b16 %v4696, %v4695
      %v4712 = vpack.c.b16 %v4698, %v4697
      %v4713 = vpack.c.b16 %v4700, %v4699
      %v4714 = vpack.c.b16 %v4702, %v4701
      %v4715 = vpack.c.b16 %v4704, %v4703
      %v4716 = vpack.c.b16 %v4706, %v4705
      %v4717 = vpack.c.b16 %v4708, %v4707
      %v4718 = vpack.c.b16 %v4710, %v4709
      %4727 = vmatprep.subr.bf16.mxu0 0
      %4728 = vmatpush1.bf16.msra.mxu0 %v4711
      %4729 = vmatprep.subr.bf16.mxu0 0
      %4730 = vmatpush1.bf16.msra.mxu0 %v4712
      %4731 = vmatprep.subr.bf16.mxu0 0
      %4732 = vmatpush1.bf16.msra.mxu0 %v4713
      %4733 = vmatprep.subr.bf16.mxu0 0
      %4734 = vmatpush1.bf16.msra.mxu0 %v4714
      %4735 = vmatprep.subr.bf16.mxu0 0
      %4736 = vmatpush1.bf16.msra.mxu0 %v4715
      %4737 = vmatprep.subr.bf16.mxu0 0
      %4738 = vmatpush1.bf16.msra.mxu0 %v4716
      %4739 = vmatprep.subr.bf16.mxu0 0
      %4740 = vmatpush1.bf16.msra.mxu0 %v4717
      %4741 = vmatprep.subr.bf16.mxu0 0
      %4742 = vmatpush1.bf16.msra.mxu0 %v4718
      %4743 = vmatprep.subr.bf16.mxu0 0
      %4744 = vmatpush1.bf16.msra.mxu0 0
      %4745 = vmatprep.subr.bf16.mxu0 0
      %4746 = vmatpush1.bf16.msra.mxu0 0
      %4747 = vmatprep.subr.bf16.mxu0 0
      %4748 = vmatpush1.bf16.msra.mxu0 0
      %4749 = vmatprep.subr.bf16.mxu0 0
      %4750 = vmatpush1.bf16.msra.mxu0 0
      %4751 = vmatprep.subr.bf16.mxu0 0
      %4752 = vmatpush1.bf16.msra.mxu0 0
      %4753 = vmatprep.subr.bf16.mxu0 0
      %4754 = vmatpush1.bf16.msra.mxu0 0
      %4755 = vmatprep.subr.bf16.mxu0 0
      %4756 = vmatpush1.bf16.msra.mxu0 0
      %4757 = vmatprep.subr.bf16.mxu0 0
      %4758 = vmatpush1.bf16.msra.mxu0 0
      %4759 = vmatprep.mubr.bf16.mxu0 0
      %4760 = vmatmul.mubr.bf16.gmra.mrb[0].mxu0 %v4507
      %v4761 = vpop.f32.mrb[0].mxu0
      %v4762 = vadd.f32 0.0, %v4761
      %v4763 = vpop.f32.mrb[0].mxu0
      %v4764 = vpop.f32.mrb[0].mxu0
      %v4765 = vadd.f32 0.0, %v4764
      %v4766 = vpop.f32.mrb[0].mxu0
      %4767 = vmatprep.mubr.bf16.mxu0 0
      %4768 = vmatmul.mubr.bf16.gmra.mrb[0].mxu0 %v4516
      %v4769 = vpop.f32.mrb[0].mxu0
      %v4770 = vadd.f32 0.0, %v4769
      %v4771 = vpop.f32.mrb[0].mxu0
      %v4772 = vpop.f32.mrb[0].mxu0
      %v4773 = vadd.f32 0.0, %v4772
      %v4774 = vpop.f32.mrb[0].mxu0
      %4775 = vmatprep.mubr.bf16.mxu0 0
      %4776 = vmatmul.mubr.bf16.gmra.mrb[0].mxu0 %v4525
      %v4777 = vpop.f32.mrb[0].mxu0
      %v4778 = vadd.f32 0.0, %v4777
      %v4779 = vpop.f32.mrb[0].mxu0
      %v4780 = vpop.f32.mrb[0].mxu0
      %v4781 = vadd.f32 0.0, %v4780
      %v4782 = vpop.f32.mrb[0].mxu0
      %4783 = vmatprep.mubr.bf16.mxu0 0
      %4784 = vmatmul.mubr.bf16.gmra.mrb[0].mxu0 %v4534
      %v4785 = vpop.f32.mrb[0].mxu0
      %v4786 = vadd.f32 0.0, %v4785
      %v4787 = vpop.f32.mrb[0].mxu0
      %v4788 = vpop.f32.mrb[0].mxu0
      %v4789 = vadd.f32 0.0, %v4788
      %v4790 = vpop.f32.mrb[0].mxu0
      %4791 = vmatprep.mubr.bf16.mxu0 0
      %4792 = vmatmul.mubr.bf16.gmra.mrb[0].mxu0 %v4543
      %v4793 = vpop.f32.mrb[0].mxu0
      %v4794 = vadd.f32 0.0, %v4793
      %v4795 = vpop.f32.mrb[0].mxu0
      %v4796 = vpop.f32.mrb[0].mxu0
      %v4797 = vadd.f32 0.0, %v4796
      %v4798 = vpop.f32.mrb[0].mxu0
      %4799 = vmatprep.mubr.bf16.mxu0 0
      %4800 = vmatmul.mubr.bf16.gmra.mrb[0].mxu0 %v4552
      %v4801 = vpop.f32.mrb[0].mxu0
      %v4802 = vadd.f32 0.0, %v4801
      %v4803 = vpop.f32.mrb[0].mxu0
      %v4804 = vpop.f32.mrb[0].mxu0
      %v4805 = vadd.f32 0.0, %v4804
      %v4806 = vpop.f32.mrb[0].mxu0
      %4807 = vmatprep.mubr.bf16.mxu0 0
      %4808 = vmatmul.mubr.bf16.gmra.mrb[0].mxu0 %v4561
      %v4809 = vpop.f32.mrb[0].mxu0
      %v4810 = vadd.f32 0.0, %v4809
      %v4811 = vpop.f32.mrb[0].mxu0
      %v4812 = vpop.f32.mrb[0].mxu0
      %v4813 = vadd.f32 0.0, %v4812
      %v4814 = vpop.f32.mrb[0].mxu0
      %4815 = vmatprep.mubr.bf16.mxu0 0
      %4816 = vmatmul.mubr.bf16.gmra.mrb[0].mxu0 %v4570
      %v4817 = vpop.f32.mrb[0].mxu0
      %v4818 = vadd.f32 0.0, %v4817
      %v4819 = vpop.f32.mrb[0].mxu0
      %v4820 = vpop.f32.mrb[0].mxu0
      %v4821 = vadd.f32 0.0, %v4820
      %v4822 = vpop.f32.mrb[0].mxu0
      %4823 = vmatprep.mubr.bf16.mxu0 0
      %4824 = vmatmul.mubr.bf16.gmra.mrb[0].mxu0 %v4579
      %v4825 = vpop.f32.mrb[0].mxu0
      %v4826 = vadd.f32 0.0, %v4825
      %v4827 = vpop.f32.mrb[0].mxu0
      %v4828 = vpop.f32.mrb[0].mxu0
      %v4829 = vadd.f32 0.0, %v4828
      %v4830 = vpop.f32.mrb[0].mxu0
      %4831 = vmatprep.mubr.bf16.mxu0 0
      %4832 = vmatmul.mubr.bf16.gmra.mrb[0].mxu0 %v4588
      %v4833 = vpop.f32.mrb[0].mxu0
      %v4834 = vadd.f32 0.0, %v4833
      %v4835 = vpop.f32.mrb[0].mxu0
      %v4836 = vpop.f32.mrb[0].mxu0
      %v4837 = vadd.f32 0.0, %v4836
      %v4838 = vpop.f32.mrb[0].mxu0
      %4839 = vmatprep.mubr.bf16.mxu0 0
      %4840 = vmatmul.mubr.bf16.gmra.mrb[0].mxu0 %v4597
      %v4841 = vpop.f32.mrb[0].mxu0
      %v4842 = vadd.f32 0.0, %v4841
      %v4843 = vpop.f32.mrb[0].mxu0
      %v4844 = vpop.f32.mrb[0].mxu0
      %v4845 = vadd.f32 0.0, %v4844
      %v4846 = vpop.f32.mrb[0].mxu0
      %4847 = vmatprep.mubr.bf16.mxu0 0
      %4848 = vmatmul.mubr.bf16.gmra.mrb[0].mxu0 %v4606
      %v4849 = vpop.f32.mrb[0].mxu0
      %v4850 = vadd.f32 0.0, %v4849
      %v4851 = vpop.f32.mrb[0].mxu0
      %v4852 = vpop.f32.mrb[0].mxu0
      %v4853 = vadd.f32 0.0, %v4852
      %v4854 = vpop.f32.mrb[0].mxu0
      %4855 = vmatprep.mubr.bf16.mxu0 0
      %4856 = vmatmul.mubr.bf16.gmra.mrb[0].mxu0 %v4615
      %v4857 = vpop.f32.mrb[0].mxu0
      %v4858 = vadd.f32 0.0, %v4857
      %v4859 = vpop.f32.mrb[0].mxu0
      %v4860 = vpop.f32.mrb[0].mxu0
      %v4861 = vadd.f32 0.0, %v4860
      %v4862 = vpop.f32.mrb[0].mxu0
      %4863 = vmatprep.mubr.bf16.mxu0 0
      %4864 = vmatmul.mubr.bf16.gmra.mrb[0].mxu0 %v4624
      %v4865 = vpop.f32.mrb[0].mxu0
      %v4866 = vadd.f32 0.0, %v4865
      %v4867 = vpop.f32.mrb[0].mxu0
      %v4868 = vpop.f32.mrb[0].mxu0
      %v4869 = vadd.f32 0.0, %v4868
      %v4870 = vpop.f32.mrb[0].mxu0
      %4871 = vmatprep.mubr.bf16.mxu0 0
      %4872 = vmatmul.mubr.bf16.gmra.mrb[0].mxu0 %v4633
      %v4873 = vpop.f32.mrb[0].mxu0
      %v4874 = vadd.f32 0.0, %v4873
      %v4875 = vpop.f32.mrb[0].mxu0
      %v4876 = vpop.f32.mrb[0].mxu0
      %v4877 = vadd.f32 0.0, %v4876
      %v4878 = vpop.f32.mrb[0].mxu0
      %4879 = vmatprep.mubr.bf16.mxu0 0
      %4880 = vmatmul.mubr.bf16.gmra.mrb[0].mxu0 %v4642
      %v4881 = vpop.f32.mrb[0].mxu0
      %v4882 = vadd.f32 0.0, %v4881
      %v4883 = vpop.f32.mrb[0].mxu0
      %v4884 = vpop.f32.mrb[0].mxu0
      %v4885 = vadd.f32 0.0, %v4884
      %v4886 = vpop.f32.mrb[0].mxu0
      %4887 = vmatprep.mubr.bf16.mxu0 0
      %4888 = vmatmul.mubr.bf16.gmra.mrb[0].mxu0 %v4651
      %v4889 = vpop.f32.mrb[0].mxu0
      %v4890 = vadd.f32 0.0, %v4889
      %v4891 = vpop.f32.mrb[0].mxu0
      %v4892 = vpop.f32.mrb[0].mxu0
      %v4893 = vadd.f32 0.0, %v4892
      %v4894 = vpop.f32.mrb[0].mxu0
      %4895 = vmatprep.mubr.bf16.mxu0 0
      %4896 = vmatmul.mubr.bf16.gmra.mrb[0].mxu0 %v4660
      %v4897 = vpop.f32.mrb[0].mxu0
      %v4898 = vadd.f32 0.0, %v4897
      %v4899 = vpop.f32.mrb[0].mxu0
      %v4900 = vpop.f32.mrb[0].mxu0
      %v4901 = vadd.f32 0.0, %v4900
      %v4902 = vpop.f32.mrb[0].mxu0
      %4903 = vdwg.mxu0
      %v4904 = vadd.f32 %v4344, %v4762
      %v4905 = vadd.f32 %v4345, %v4765
      %v4906 = vadd.f32 %v4346, %v4770
      %v4907 = vadd.f32 %v4347, %v4773
      %v4908 = vadd.f32 %v4348, %v4778
      %v4909 = vadd.f32 %v4349, %v4781
      %v4910 = vadd.f32 %v4350, %v4786
      %v4911 = vadd.f32 %v4351, %v4789
      %v4912 = vadd.f32 %v4352, %v4794
      %v4913 = vadd.f32 %v4353, %v4797
      %v4914 = vadd.f32 %v4354, %v4802
      %v4915 = vadd.f32 %v4355, %v4805
      %v4916 = vadd.f32 %v4356, %v4810
      %v4917 = vadd.f32 %v4357, %v4813
      %v4918 = vadd.f32 %v4358, %v4818
      %v4919 = vadd.f32 %v4359, %v4821
      %v4920 = vadd.f32 %v4360, %v4826
      %v4921 = vadd.f32 %v4361, %v4829
      %v4922 = vadd.f32 %v4362, %v4834
      %v4923 = vadd.f32 %v4363, %v4837
      %v4924 = vadd.f32 %v4364, %v4842
      %v4925 = vadd.f32 %v4365, %v4845
      %v4926 = vadd.f32 %v4366, %v4850
      %v4927 = vadd.f32 %v4367, %v4853
      %v4928 = vadd.f32 %v4368, %v4858
      %v4929 = vadd.f32 %v4369, %v4861
      %v4930 = vadd.f32 %v4370, %v4866
      %v4931 = vadd.f32 %v4371, %v4869
      %v4932 = vadd.f32 %v4372, %v4874
      %v4933 = vadd.f32 %v4373, %v4877
      %v4934 = vadd.f32 %v4374, %v4882
      %v4935 = vadd.f32 %v4375, %v4885
      %v4936 = vadd.f32 %v4376, %v4890
      %v4937 = vadd.f32 %v4377, %v4893
      %v4938 = vadd.f32 %v4378, %v4898
      %v4939 = vadd.f32 %v4379, %v4901
      %4940 = vst [vmem:[#allocation2] sm:$0xff] %v4904
      %4941 = vst [vmem:[#allocation2 + $0x8] sm:$0xff] %v4905
      %4942 = vst [vmem:[#allocation2 + $0x10] sm:$0xff] %v4906
      %4943 = vst [vmem:[#allocation2 + $0x18] sm:$0xff] %v4907
      %4944 = vst [vmem:[#allocation2 + $0x20] sm:$0xff] %v4908
      %4945 = vst [vmem:[#allocation2 + $0x28] sm:$0xff] %v4909
      %4946 = vst [vmem:[#allocation2 + $0x30] sm:$0xff] %v4910
      %4947 = vst [vmem:[#allocation2 + $0x38] sm:$0xff] %v4911
      %4948 = vst [vmem:[#allocation2 + $0x40] sm:$0xff] %v4912
      %4949 = vst [vmem:[#allocation2 + $0x48] sm:$0xff] %v4913
      %4950 = vst [vmem:[#allocation2 + $0x50] sm:$0xff] %v4914
      %4951 = vst [vmem:[#allocation2 + $0x58] sm:$0xff] %v4915
      %4952 = vst [vmem:[#allocation2 + $0x60] sm:$0xff] %v4916
      %4953 = vst [vmem:[#allocation2 + $0x68] sm:$0xff] %v4917
      %4954 = vst [vmem:[#allocation2 + $0x70] sm:$0xff] %v4918
      %4955 = vst [vmem:[#allocation2 + $0x78] sm:$0xff] %v4919
      %4956 = vst [vmem:[#allocation2 + $0x80] sm:$0xff] %v4920
      %4957 = vst [vmem:[#allocation2 + $0x88] sm:$0xff] %v4921
      %4958 = vst [vmem:[#allocation2 + $0x90] sm:$0xff] %v4922
      %4959 = vst [vmem:[#allocation2 + $0x98] sm:$0xff] %v4923
      %4960 = vst [vmem:[#allocation2 + $0xa0] sm:$0xff] %v4924
      %4961 = vst [vmem:[#allocation2 + $0xa8] sm:$0xff] %v4925
      %4962 = vst [vmem:[#allocation2 + $0xb0] sm:$0xff] %v4926
      %4963 = vst [vmem:[#allocation2 + $0xb8] sm:$0xff] %v4927
      %4964 = vst [vmem:[#allocation2 + $0xc0] sm:$0xff] %v4928
      %4965 = vst [vmem:[#allocation2 + $0xc8] sm:$0xff] %v4929
      %4966 = vst [vmem:[#allocation2 + $0xd0] sm:$0xff] %v4930
      %4967 = vst [vmem:[#allocation2 + $0xd8] sm:$0xff] %v4931
      %4968 = vst [vmem:[#allocation2 + $0xe0] sm:$0xff] %v4932
      %4969 = vst [vmem:[#allocation2 + $0xe8] sm:$0xff] %v4933
      %4970 = vst [vmem:[#allocation2 + $0xf0] sm:$0xff] %v4934
      %4971 = vst [vmem:[#allocation2 + $0xf8] sm:$0xff] %v4935
      %4972 = vst [vmem:[#allocation2 + $0x100] sm:$0xff] %v4936
      %4973 = vst [vmem:[#allocation2 + $0x108] sm:$0xff] %v4937
      %4974 = vst [vmem:[#allocation2 + $0x110] sm:$0xff] %v4938
      %4975 = vst [vmem:[#allocation2 + $0x118] sm:$0xff] %v4939
      %v4976 = vld [vmem:[%s286 + $0x10] sm:$0x8]
      %v4977 = vld [vmem:[%s286 + $0x14] sm:$0xf]
      %v4978 = vld [vmem:[%s286 + $0x18] sm:$0xf]
      %v4979 = vld [vmem:[%s286 + $0x1c] sm:$0xf]
      %v4980 = vld [vmem:[%s286 + $0x20] sm:$0xf]
      %v4981 = vld [vmem:[%s286 + $0x24] sm:$0xf]
      %v4982 = vld [vmem:[%s286 + $0x28] sm:$0xf]
      %v4983 = vld [vmem:[%s286 + $0x2c] sm:$0xf]
      %v4984 = vld [vmem:[%s286 + $0x30] sm:$0xf]
      %v4985 = vld [vmem:[%s286 + $0x34] sm:$0xf]
      %v4986 = vld [vmem:[%s286 + $0x38] sm:$0xf]
      %v4987 = vld [vmem:[%s286 + $0x3c] sm:$0xf]
      %v4988 = vld [vmem:[%s286 + $0x40] sm:$0xf]
      %v4989 = vld [vmem:[%s286 + $0x44] sm:$0xf]
      %v4990 = vld [vmem:[%s286 + $0x48] sm:$0xf]
      %v4991 = vld [vmem:[%s286 + $0x4c] sm:$0xf]
      %v4992 = vld [vmem:[%s286 + $0x50] sm:$0xf]
      %v4993 = vld [vmem:[%s286 + $0x54] sm:$0xf]
      %v4994 = vld [vmem:[%s286 + $0x58] sm:$0xf]
      %v4995 = vld [vmem:[%s286 + $0x5c] sm:$0xf]
      %v4996 = vld [vmem:[%s286 + $0x60] sm:$0xf]
      %v4997 = vld [vmem:[%s286 + $0x64] sm:$0xf]
      %v4998 = vld [vmem:[%s286 + $0x68] sm:$0xf]
      %v4999 = vld [vmem:[%s286 + $0x6c] sm:$0xf]
      %v5000 = vld [vmem:[%s286 + $0x70] sm:$0xf]
      %v5001 = vld [vmem:[%s286 + $0x74] sm:$0xf]
      %v5002 = vld [vmem:[%s286 + $0x78] sm:$0xf]
      %v5003 = vld [vmem:[%s286 + $0x7c] sm:$0xf]
      %v5004 = vld [vmem:[%s286 + $0x80] sm:$0xf]
      %v5005 = vld [vmem:[%s286 + $0x84] sm:$0xf]
      %v5006 = vld [vmem:[%s286 + $0x88] sm:$0xf]
      %v5007 = vld [vmem:[%s286 + $0x8c] sm:$0xf]
      %v5008 = vld [vmem:[%s286 + $0x90] sm:$0xf]
      %v5009 = vld [vmem:[%s286 + $0x94] sm:$0xf]
      %v5010 = vld [vmem:[%s286 + $0x98] sm:$0xf]
      %v5011 = vld [vmem:[%s286 + $0x9c] sm:$0xf]
      %v5012 = vld [vmem:[%s286 + $0xa0] sm:$0x7]
      %v5013 = vld [vmem:[#allocation2] sm:$0xff]
      %v5014 = vld [vmem:[#allocation2 + $0x8] sm:$0xff]
      %v5015 = vld [vmem:[#allocation2 + $0x10] sm:$0xff]
      %v5016 = vld [vmem:[#allocation2 + $0x18] sm:$0xff]
      %v5017 = vld [vmem:[#allocation2 + $0x20] sm:$0xff]
      %v5018 = vld [vmem:[#allocation2 + $0x28] sm:$0xff]
      %v5019 = vld [vmem:[#allocation2 + $0x30] sm:$0xff]
      %v5020 = vld [vmem:[#allocation2 + $0x38] sm:$0xff]
      %v5021 = vld [vmem:[#allocation2 + $0x40] sm:$0xff]
      %v5022 = vld [vmem:[#allocation2 + $0x48] sm:$0xff]
      %v5023 = vld [vmem:[#allocation2 + $0x50] sm:$0xff]
      %v5024 = vld [vmem:[#allocation2 + $0x58] sm:$0xff]
      %v5025 = vld [vmem:[#allocation2 + $0x60] sm:$0xff]
      %v5026 = vld [vmem:[#allocation2 + $0x68] sm:$0xff]
      %v5027 = vld [vmem:[#allocation2 + $0x70] sm:$0xff]
      %v5028 = vld [vmem:[#allocation2 + $0x78] sm:$0xff]
      %v5029 = vld [vmem:[#allocation2 + $0x80] sm:$0xff]
      %v5030 = vld [vmem:[#allocation2 + $0x88] sm:$0xff]
      %v5031 = vld [vmem:[#allocation2 + $0x90] sm:$0xff]
      %v5032 = vld [vmem:[#allocation2 + $0x98] sm:$0xff]
      %v5033 = vld [vmem:[#allocation2 + $0xa0] sm:$0xff]
      %v5034 = vld [vmem:[#allocation2 + $0xa8] sm:$0xff]
      %v5035 = vld [vmem:[#allocation2 + $0xb0] sm:$0xff]
      %v5036 = vld [vmem:[#allocation2 + $0xb8] sm:$0xff]
      %v5037 = vld [vmem:[#allocation2 + $0xc0] sm:$0xff]
      %v5038 = vld [vmem:[#allocation2 + $0xc8] sm:$0xff]
      %v5039 = vld [vmem:[#allocation2 + $0xd0] sm:$0xff]
      %v5040 = vld [vmem:[#allocation2 + $0xd8] sm:$0xff]
      %v5041 = vld [vmem:[#allocation2 + $0xe0] sm:$0xff]
      %v5042 = vld [vmem:[#allocation2 + $0xe8] sm:$0xff]
      %v5043 = vld [vmem:[#allocation2 + $0xf0] sm:$0xff]
      %v5044 = vld [vmem:[#allocation2 + $0xf8] sm:$0xff]
      %v5045 = vld [vmem:[#allocation2 + $0x100] sm:$0xff]
      %v5046 = vld [vmem:[#allocation2 + $0x108] sm:$0xff]
      %v5047 = vld [vmem:[#allocation2 + $0x110] sm:$0xff]
      %v5048 = vld [vmem:[#allocation2 + $0x118] sm:$0xff]
      %s5049 = scalar_lea.vmem %s294, 512
      %v5050 = vld [vmem:[%s5049] sm:$0xf]
      %v5051 = vld [vmem:[%s5049 + $0x4] sm:$0xf]
      %v5052 = vld [vmem:[%s5049 + $0x8] sm:$0xf]
      %v5053 = vld [vmem:[%s5049 + $0xc] sm:$0xf]
      %v5054 = vld [vmem:[%s5049 + $0x10] sm:$0xf]
      %v5055 = vld [vmem:[%s5049 + $0x14] sm:$0xf]
      %v5056 = vld [vmem:[%s5049 + $0x18] sm:$0xf]
      %v5057 = vld [vmem:[%s5049 + $0x1c] sm:$0xf]
      %v5058 = vld [vmem:[%s5049 + $0x20] sm:$0xf]
      %v5059 = vld [vmem:[%s5049 + $0x24] sm:$0xf]
      %v5060 = vld [vmem:[%s5049 + $0x28] sm:$0xf]
      %v5061 = vld [vmem:[%s5049 + $0x2c] sm:$0xf]
      %v5062 = vld [vmem:[%s5049 + $0x30] sm:$0xf]
      %v5063 = vld [vmem:[%s5049 + $0x34] sm:$0xf]
      %v5064 = vld [vmem:[%s5049 + $0x38] sm:$0xf]
      %v5065 = vld [vmem:[%s5049 + $0x3c] sm:$0xf]
      %v5103 = vunpack.c.l.b16 %v4976
      %v5104 = vunpack.c.l.b16 %v4977
      %v5105 = vunpack.c.l.b16 %v4978
      %v5106 = vunpack.c.l.b16 %v4979
      %v5107 = vunpack.c.l.b16 %v4980
      %v5108 = vunpack.c.l.b16 %v4981
      %v5109 = vunpack.c.l.b16 %v4982
      %v5110 = vunpack.c.l.b16 %v4983
      %v5111 = vunpack.c.l.b16 %v4984
      %v5112 = vunpack.c.l.b16 %v4985
      %v5113 = vunpack.c.l.b16 %v4986
      %v5114 = vunpack.c.l.b16 %v4987
      %v5115 = vunpack.c.l.b16 %v4988
      %v5116 = vunpack.c.l.b16 %v4989
      %v5117 = vunpack.c.l.b16 %v4990
      %v5118 = vunpack.c.l.b16 %v4991
      %v5119 = vunpack.c.l.b16 %v4992
      %v5120 = vunpack.c.l.b16 %v4993
      %v5121 = vunpack.c.l.b16 %v4994
      %v5122 = vunpack.c.l.b16 %v4995
      %v5123 = vunpack.c.l.b16 %v4996
      %v5124 = vunpack.c.l.b16 %v4997
      %v5125 = vunpack.c.l.b16 %v4998
      %v5126 = vunpack.c.l.b16 %v4999
      %v5127 = vunpack.c.l.b16 %v5000
      %v5128 = vunpack.c.l.b16 %v5001
      %v5129 = vunpack.c.l.b16 %v5002
      %v5130 = vunpack.c.l.b16 %v5003
      %v5131 = vunpack.c.l.b16 %v5004
      %v5132 = vunpack.c.l.b16 %v5005
      %v5133 = vunpack.c.l.b16 %v5006
      %v5134 = vunpack.c.l.b16 %v5007
      %v5135 = vunpack.c.l.b16 %v5008
      %v5136 = vunpack.c.l.b16 %v5009
      %v5137 = vunpack.c.l.b16 %v5010
      %v5138 = vunpack.c.l.b16 %v5011
      %v5139 = vunpack.c.l.b16 %v5012
      %v5140 = vpack.c.b16 %v5104, %v5103
      %v5141 = vpack.c.b16 %v5106, %v5105
      %v5142 = vpack.c.b16 %v5108, %v5107
      %v5143 = vpack.c.b16 %v5110, %v5109
      %v5144 = vpack.c.b16 %v5112, %v5111
      %v5145 = vpack.c.b16 %v5114, %v5113
      %v5146 = vpack.c.b16 %v5116, %v5115
      %v5147 = vpack.c.b16 %v5118, %v5117
      %v5148 = vpack.c.b16 %v5120, %v5119
      %v5149 = vpack.c.b16 %v5122, %v5121
      %v5150 = vpack.c.b16 %v5124, %v5123
      %v5151 = vpack.c.b16 %v5126, %v5125
      %v5152 = vpack.c.b16 %v5128, %v5127
      %v5153 = vpack.c.b16 %v5130, %v5129
      %v5154 = vpack.c.b16 %v5132, %v5131
      %v5155 = vpack.c.b16 %v5134, %v5133
      %v5156 = vpack.c.b16 %v5136, %v5135
      %v5157 = vpack.c.b16 %v5138, %v5137
      %v5158 = vpack.c.b16 %v5139, %v5139
      %vm5159 = vcmask 1044480
      %v5160 = vrot.slane %v5140, 3
      %v5161 = vrot.slane %v5141, 3
      %v5162 = vsel %vm5159, %v5160, %v5161
      %v5163 = vrot.slane %v5142, 3
      %v5164 = vsel %vm5159, %v5161, %v5163
      %v5165 = vrot.slane %v5143, 3
      %v5166 = vsel %vm5159, %v5163, %v5165
      %v5167 = vrot.slane %v5144, 3
      %v5168 = vsel %vm5159, %v5165, %v5167
      %v5169 = vrot.slane %v5145, 3
      %v5170 = vsel %vm5159, %v5167, %v5169
      %v5171 = vrot.slane %v5146, 3
      %v5172 = vsel %vm5159, %v5169, %v5171
      %v5173 = vrot.slane %v5147, 3
      %v5174 = vsel %vm5159, %v5171, %v5173
      %v5175 = vrot.slane %v5148, 3
      %v5176 = vsel %vm5159, %v5173, %v5175
      %v5177 = vrot.slane %v5149, 3
      %v5178 = vsel %vm5159, %v5175, %v5177
      %v5179 = vrot.slane %v5150, 3
      %v5180 = vsel %vm5159, %v5177, %v5179
      %v5181 = vrot.slane %v5151, 3
      %v5182 = vsel %vm5159, %v5179, %v5181
      %v5183 = vrot.slane %v5152, 3
      %v5184 = vsel %vm5159, %v5181, %v5183
      %v5185 = vrot.slane %v5153, 3
      %v5186 = vsel %vm5159, %v5183, %v5185
      %v5187 = vrot.slane %v5154, 3
      %v5188 = vsel %vm5159, %v5185, %v5187
      %v5189 = vrot.slane %v5155, 3
      %v5190 = vsel %vm5159, %v5187, %v5189
      %v5191 = vrot.slane %v5156, 3
      %v5192 = vsel %vm5159, %v5189, %v5191
      %v5193 = vrot.slane %v5157, 3
      %v5194 = vsel %vm5159, %v5191, %v5193
      %v5195 = vrot.slane %v5158, 3
      %v5196 = vsel %vm5159, %v5193, %v5195
      %v5231 = vunpack.c.l.b16 %v5050
      %v5232 = vunpack.c.l.b16 %v5051
      %v5233 = vunpack.c.l.b16 %v5052
      %v5234 = vunpack.c.l.b16 %v5053
      %v5235 = vunpack.c.l.b16 %v5054
      %v5236 = vunpack.c.l.b16 %v5055
      %v5237 = vunpack.c.l.b16 %v5056
      %v5238 = vunpack.c.l.b16 %v5057
      %v5239 = vunpack.c.l.b16 %v5058
      %v5240 = vunpack.c.l.b16 %v5059
      %v5241 = vunpack.c.l.b16 %v5060
      %v5242 = vunpack.c.l.b16 %v5061
      %v5243 = vunpack.c.l.b16 %v5062
      %v5244 = vunpack.c.l.b16 %v5063
      %v5245 = vunpack.c.l.b16 %v5064
      %v5246 = vunpack.c.l.b16 %v5065
      %v5247 = vpack.c.b16 %v5232, %v5231
      %v5248 = vpack.c.b16 %v5234, %v5233
      %v5249 = vpack.c.b16 %v5236, %v5235
      %v5250 = vpack.c.b16 %v5238, %v5237
      %v5251 = vpack.c.b16 %v5240, %v5239
      %v5252 = vpack.c.b16 %v5242, %v5241
      %v5253 = vpack.c.b16 %v5244, %v5243
      %v5254 = vpack.c.b16 %v5246, %v5245
      %5263 = vmatprep.subr.bf16.mxu0 0
      %5264 = vmatpush1.bf16.msra.mxu0 %v5247
      %5265 = vmatprep.subr.bf16.mxu0 0
      %5266 = vmatpush1.bf16.msra.mxu0 %v5248
      %5267 = vmatprep.subr.bf16.mxu0 0
      %5268 = vmatpush1.bf16.msra.mxu0 %v5249
      %5269 = vmatprep.subr.bf16.mxu0 0
      %5270 = vmatpush1.bf16.msra.mxu0 %v5250
      %5271 = vmatprep.subr.bf16.mxu0 0
      %5272 = vmatpush1.bf16.msra.mxu0 %v5251
      %5273 = vmatprep.subr.bf16.mxu0 0
      %5274 = vmatpush1.bf16.msra.mxu0 %v5252
      %5275 = vmatprep.subr.bf16.mxu0 0
      %5276 = vmatpush1.bf16.msra.mxu0 %v5253
      %5277 = vmatprep.subr.bf16.mxu0 0
      %5278 = vmatpush1.bf16.msra.mxu0 %v5254
      %5279 = vmatprep.subr.bf16.mxu0 0
      %5280 = vmatpush1.bf16.msra.mxu0 0
      %5281 = vmatprep.subr.bf16.mxu0 0
      %5282 = vmatpush1.bf16.msra.mxu0 0
      %5283 = vmatprep.subr.bf16.mxu0 0
      %5284 = vmatpush1.bf16.msra.mxu0 0
      %5285 = vmatprep.subr.bf16.mxu0 0
      %5286 = vmatpush1.bf16.msra.mxu0 0
      %5287 = vmatprep.subr.bf16.mxu0 0
      %5288 = vmatpush1.bf16.msra.mxu0 0
      %5289 = vmatprep.subr.bf16.mxu0 0
      %5290 = vmatpush1.bf16.msra.mxu0 0
      %5291 = vmatprep.subr.bf16.mxu0 0
      %5292 = vmatpush1.bf16.msra.mxu0 0
      %5293 = vmatprep.subr.bf16.mxu0 0
      %5294 = vmatpush1.bf16.msra.mxu0 0
      %5295 = vmatprep.mubr.bf16.mxu0 0
      %5296 = vmatmul.mubr.bf16.gmra.mrb[0].mxu0 %v5162
      %v5297 = vpop.f32.mrb[0].mxu0
      %v5298 = vadd.f32 0.0, %v5297
      %v5299 = vpop.f32.mrb[0].mxu0
      %v5300 = vpop.f32.mrb[0].mxu0
      %v5301 = vadd.f32 0.0, %v5300
      %v5302 = vpop.f32.mrb[0].mxu0
      %5303 = vmatprep.mubr.bf16.mxu0 0
      %5304 = vmatmul.mubr.bf16.gmra.mrb[0].mxu0 %v5164
      %v5305 = vpop.f32.mrb[0].mxu0
      %v5306 = vadd.f32 0.0, %v5305
      %v5307 = vpop.f32.mrb[0].mxu0
      %v5308 = vpop.f32.mrb[0].mxu0
      %v5309 = vadd.f32 0.0, %v5308
      %v5310 = vpop.f32.mrb[0].mxu0
      %5311 = vmatprep.mubr.bf16.mxu0 0
      %5312 = vmatmul.mubr.bf16.gmra.mrb[0].mxu0 %v5166
      %v5313 = vpop.f32.mrb[0].mxu0
      %v5314 = vadd.f32 0.0, %v5313
      %v5315 = vpop.f32.mrb[0].mxu0
      %v5316 = vpop.f32.mrb[0].mxu0
      %v5317 = vadd.f32 0.0, %v5316
      %v5318 = vpop.f32.mrb[0].mxu0
      %5319 = vmatprep.mubr.bf16.mxu0 0
      %5320 = vmatmul.mubr.bf16.gmra.mrb[0].mxu0 %v5168
      %v5321 = vpop.f32.mrb[0].mxu0
      %v5322 = vadd.f32 0.0, %v5321
      %v5323 = vpop.f32.mrb[0].mxu0
      %v5324 = vpop.f32.mrb[0].mxu0
      %v5325 = vadd.f32 0.0, %v5324
      %v5326 = vpop.f32.mrb[0].mxu0
      %5327 = vmatprep.mubr.bf16.mxu0 0
      %5328 = vmatmul.mubr.bf16.gmra.mrb[0].mxu0 %v5170
      %v5329 = vpop.f32.mrb[0].mxu0
      %v5330 = vadd.f32 0.0, %v5329
      %v5331 = vpop.f32.mrb[0].mxu0
      %v5332 = vpop.f32.mrb[0].mxu0
      %v5333 = vadd.f32 0.0, %v5332
      %v5334 = vpop.f32.mrb[0].mxu0
      %5335 = vmatprep.mubr.bf16.mxu0 0
      %5336 = vmatmul.mubr.bf16.gmra.mrb[0].mxu0 %v5172
      %v5337 = vpop.f32.mrb[0].mxu0
      %v5338 = vadd.f32 0.0, %v5337
      %v5339 = vpop.f32.mrb[0].mxu0
      %v5340 = vpop.f32.mrb[0].mxu0
      %v5341 = vadd.f32 0.0, %v5340
      %v5342 = vpop.f32.mrb[0].mxu0
      %5343 = vmatprep.mubr.bf16.mxu0 0
      %5344 = vmatmul.mubr.bf16.gmra.mrb[0].mxu0 %v5174
      %v5345 = vpop.f32.mrb[0].mxu0
      %v5346 = vadd.f32 0.0, %v5345
      %v5347 = vpop.f32.mrb[0].mxu0
      %v5348 = vpop.f32.mrb[0].mxu0
      %v5349 = vadd.f32 0.0, %v5348
      %v5350 = vpop.f32.mrb[0].mxu0
      %5351 = vmatprep.mubr.bf16.mxu0 0
      %5352 = vmatmul.mubr.bf16.gmra.mrb[0].mxu0 %v5176
      %v5353 = vpop.f32.mrb[0].mxu0
      %v5354 = vadd.f32 0.0, %v5353
      %v5355 = vpop.f32.mrb[0].mxu0
      %v5356 = vpop.f32.mrb[0].mxu0
      %v5357 = vadd.f32 0.0, %v5356
      %v5358 = vpop.f32.mrb[0].mxu0
      %5359 = vmatprep.mubr.bf16.mxu0 0
      %5360 = vmatmul.mubr.bf16.gmra.mrb[0].mxu0 %v5178
      %v5361 = vpop.f32.mrb[0].mxu0
      %v5362 = vadd.f32 0.0, %v5361
      %v5363 = vpop.f32.mrb[0].mxu0
      %v5364 = vpop.f32.mrb[0].mxu0
      %v5365 = vadd.f32 0.0, %v5364
      %v5366 = vpop.f32.mrb[0].mxu0
      %5367 = vmatprep.mubr.bf16.mxu0 0
      %5368 = vmatmul.mubr.bf16.gmra.mrb[0].mxu0 %v5180
      %v5369 = vpop.f32.mrb[0].mxu0
      %v5370 = vadd.f32 0.0, %v5369
      %v5371 = vpop.f32.mrb[0].mxu0
      %v5372 = vpop.f32.mrb[0].mxu0
      %v5373 = vadd.f32 0.0, %v5372
      %v5374 = vpop.f32.mrb[0].mxu0
      %5375 = vmatprep.mubr.bf16.mxu0 0
      %5376 = vmatmul.mubr.bf16.gmra.mrb[0].mxu0 %v5182
      %v5377 = vpop.f32.mrb[0].mxu0
      %v5378 = vadd.f32 0.0, %v5377
      %v5379 = vpop.f32.mrb[0].mxu0
      %v5380 = vpop.f32.mrb[0].mxu0
      %v5381 = vadd.f32 0.0, %v5380
      %v5382 = vpop.f32.mrb[0].mxu0
      %5383 = vmatprep.mubr.bf16.mxu0 0
      %5384 = vmatmul.mubr.bf16.gmra.mrb[0].mxu0 %v5184
      %v5385 = vpop.f32.mrb[0].mxu0
      %v5386 = vadd.f32 0.0, %v5385
      %v5387 = vpop.f32.mrb[0].mxu0
      %v5388 = vpop.f32.mrb[0].mxu0
      %v5389 = vadd.f32 0.0, %v5388
      %v5390 = vpop.f32.mrb[0].mxu0
      %5391 = vmatprep.mubr.bf16.mxu0 0
      %5392 = vmatmul.mubr.bf16.gmra.mrb[0].mxu0 %v5186
      %v5393 = vpop.f32.mrb[0].mxu0
      %v5394 = vadd.f32 0.0, %v5393
      %v5395 = vpop.f32.mrb[0].mxu0
      %v5396 = vpop.f32.mrb[0].mxu0
      %v5397 = vadd.f32 0.0, %v5396
      %v5398 = vpop.f32.mrb[0].mxu0
      %5399 = vmatprep.mubr.bf16.mxu0 0
      %5400 = vmatmul.mubr.bf16.gmra.mrb[0].mxu0 %v5188
      %v5401 = vpop.f32.mrb[0].mxu0
      %v5402 = vadd.f32 0.0, %v5401
      %v5403 = vpop.f32.mrb[0].mxu0
      %v5404 = vpop.f32.mrb[0].mxu0
      %v5405 = vadd.f32 0.0, %v5404
      %v5406 = vpop.f32.mrb[0].mxu0
      %5407 = vmatprep.mubr.bf16.mxu0 0
      %5408 = vmatmul.mubr.bf16.gmra.mrb[0].mxu0 %v5190
      %v5409 = vpop.f32.mrb[0].mxu0
      %v5410 = vadd.f32 0.0, %v5409
      %v5411 = vpop.f32.mrb[0].mxu0
      %v5412 = vpop.f32.mrb[0].mxu0
      %v5413 = vadd.f32 0.0, %v5412
      %v5414 = vpop.f32.mrb[0].mxu0
      %5415 = vmatprep.mubr.bf16.mxu0 0
      %5416 = vmatmul.mubr.bf16.gmra.mrb[0].mxu0 %v5192
      %v5417 = vpop.f32.mrb[0].mxu0
      %v5418 = vadd.f32 0.0, %v5417
      %v5419 = vpop.f32.mrb[0].mxu0
      %v5420 = vpop.f32.mrb[0].mxu0
      %v5421 = vadd.f32 0.0, %v5420
      %v5422 = vpop.f32.mrb[0].mxu0
      %5423 = vmatprep.mubr.bf16.mxu0 0
      %5424 = vmatmul.mubr.bf16.gmra.mrb[0].mxu0 %v5194
      %v5425 = vpop.f32.mrb[0].mxu0
      %v5426 = vadd.f32 0.0, %v5425
      %v5427 = vpop.f32.mrb[0].mxu0
      %v5428 = vpop.f32.mrb[0].mxu0
      %v5429 = vadd.f32 0.0, %v5428
      %v5430 = vpop.f32.mrb[0].mxu0
      %5431 = vmatprep.mubr.bf16.mxu0 0
      %5432 = vmatmul.mubr.bf16.gmra.mrb[0].mxu0 %v5196
      %v5433 = vpop.f32.mrb[0].mxu0
      %v5434 = vadd.f32 0.0, %v5433
      %v5435 = vpop.f32.mrb[0].mxu0
      %v5436 = vpop.f32.mrb[0].mxu0
      %v5437 = vadd.f32 0.0, %v5436
      %v5438 = vpop.f32.mrb[0].mxu0
      %5439 = vdwg.mxu0
      %v5440 = vadd.f32 %v5013, %v5298
      %v5441 = vadd.f32 %v5014, %v5301
      %v5442 = vadd.f32 %v5015, %v5306
      %v5443 = vadd.f32 %v5016, %v5309
      %v5444 = vadd.f32 %v5017, %v5314
      %v5445 = vadd.f32 %v5018, %v5317
      %v5446 = vadd.f32 %v5019, %v5322
      %v5447 = vadd.f32 %v5020, %v5325
      %v5448 = vadd.f32 %v5021, %v5330
      %v5449 = vadd.f32 %v5022, %v5333
      %v5450 = vadd.f32 %v5023, %v5338
      %v5451 = vadd.f32 %v5024, %v5341
      %v5452 = vadd.f32 %v5025, %v5346
      %v5453 = vadd.f32 %v5026, %v5349
      %v5454 = vadd.f32 %v5027, %v5354
      %v5455 = vadd.f32 %v5028, %v5357
      %v5456 = vadd.f32 %v5029, %v5362
      %v5457 = vadd.f32 %v5030, %v5365
      %v5458 = vadd.f32 %v5031, %v5370
      %v5459 = vadd.f32 %v5032, %v5373
      %v5460 = vadd.f32 %v5033, %v5378
      %v5461 = vadd.f32 %v5034, %v5381
      %v5462 = vadd.f32 %v5035, %v5386
      %v5463 = vadd.f32 %v5036, %v5389
      %v5464 = vadd.f32 %v5037, %v5394
      %v5465 = vadd.f32 %v5038, %v5397
      %v5466 = vadd.f32 %v5039, %v5402
      %v5467 = vadd.f32 %v5040, %v5405
      %v5468 = vadd.f32 %v5041, %v5410
      %v5469 = vadd.f32 %v5042, %v5413
      %v5470 = vadd.f32 %v5043, %v5418
      %v5471 = vadd.f32 %v5044, %v5421
      %v5472 = vadd.f32 %v5045, %v5426
      %v5473 = vadd.f32 %v5046, %v5429
      %v5474 = vadd.f32 %v5047, %v5434
      %v5475 = vadd.f32 %v5048, %v5437
      %5476 = vst [vmem:[#allocation2] sm:$0xff] %v5440
      %5477 = vst [vmem:[#allocation2 + $0x8] sm:$0xff] %v5441
      %5478 = vst [vmem:[#allocation2 + $0x10] sm:$0xff] %v5442
      %5479 = vst [vmem:[#allocation2 + $0x18] sm:$0xff] %v5443
      %5480 = vst [vmem:[#allocation2 + $0x20] sm:$0xff] %v5444
      %5481 = vst [vmem:[#allocation2 + $0x28] sm:$0xff] %v5445
      %5482 = vst [vmem:[#allocation2 + $0x30] sm:$0xff] %v5446
      %5483 = vst [vmem:[#allocation2 + $0x38] sm:$0xff] %v5447
      %5484 = vst [vmem:[#allocation2 + $0x40] sm:$0xff] %v5448
      %5485 = vst [vmem:[#allocation2 + $0x48] sm:$0xff] %v5449
      %5486 = vst [vmem:[#allocation2 + $0x50] sm:$0xff] %v5450
      %5487 = vst [vmem:[#allocation2 + $0x58] sm:$0xff] %v5451
      %5488 = vst [vmem:[#allocation2 + $0x60] sm:$0xff] %v5452
      %5489 = vst [vmem:[#allocation2 + $0x68] sm:$0xff] %v5453
      %5490 = vst [vmem:[#allocation2 + $0x70] sm:$0xff] %v5454
      %5491 = vst [vmem:[#allocation2 + $0x78] sm:$0xff] %v5455
      %5492 = vst [vmem:[#allocation2 + $0x80] sm:$0xff] %v5456
      %5493 = vst [vmem:[#allocation2 + $0x88] sm:$0xff] %v5457
      %5494 = vst [vmem:[#allocation2 + $0x90] sm:$0xff] %v5458
      %5495 = vst [vmem:[#allocation2 + $0x98] sm:$0xff] %v5459
      %5496 = vst [vmem:[#allocation2 + $0xa0] sm:$0xff] %v5460
      %5497 = vst [vmem:[#allocation2 + $0xa8] sm:$0xff] %v5461
      %5498 = vst [vmem:[#allocation2 + $0xb0] sm:$0xff] %v5462
      %5499 = vst [vmem:[#allocation2 + $0xb8] sm:$0xff] %v5463
      %5500 = vst [vmem:[#allocation2 + $0xc0] sm:$0xff] %v5464
      %5501 = vst [vmem:[#allocation2 + $0xc8] sm:$0xff] %v5465
      %5502 = vst [vmem:[#allocation2 + $0xd0] sm:$0xff] %v5466
      %5503 = vst [vmem:[#allocation2 + $0xd8] sm:$0xff] %v5467
      %5504 = vst [vmem:[#allocation2 + $0xe0] sm:$0xff] %v5468
      %5505 = vst [vmem:[#allocation2 + $0xe8] sm:$0xff] %v5469
      %5506 = vst [vmem:[#allocation2 + $0xf0] sm:$0xff] %v5470
      %5507 = vst [vmem:[#allocation2 + $0xf8] sm:$0xff] %v5471
      %5508 = vst [vmem:[#allocation2 + $0x100] sm:$0xff] %v5472
      %5509 = vst [vmem:[#allocation2 + $0x108] sm:$0xff] %v5473
      %5510 = vst [vmem:[#allocation2 + $0x110] sm:$0xff] %v5474
      %5511 = vst [vmem:[#allocation2 + $0x118] sm:$0xff] %v5475
      // Predicated region
      $region41: #{psp_forward.3} parent=35 // pred_check
        %p5512 = pneg %p316
      $region42: #{psp_forward.3} parent=35 // pred_check_branch
        %5514 = sbr.rel (%p5512) target = $region44
      $region43: #{psp_forward.3} parent=35 // pred_region
        %v5515 = vld [vmem:[#allocation2] sm:$0xff]
        %v5516 = vld [vmem:[#allocation2 + $0x8] sm:$0xff]
        %v5517 = vld [vmem:[#allocation2 + $0x10] sm:$0xff]
        %v5518 = vld [vmem:[#allocation2 + $0x18] sm:$0xff]
        %v5519 = vld [vmem:[#allocation2 + $0x20] sm:$0xff]
        %v5520 = vld [vmem:[#allocation2 + $0x28] sm:$0xff]
        %v5521 = vld [vmem:[#allocation2 + $0x30] sm:$0xff]
        %v5522 = vld [vmem:[#allocation2 + $0x38] sm:$0xff]
        %v5523 = vld [vmem:[#allocation2 + $0x40] sm:$0xff]
        %v5524 = vld [vmem:[#allocation2 + $0x48] sm:$0xff]
        %v5525 = vld [vmem:[#allocation2 + $0x50] sm:$0xff]
        %v5526 = vld [vmem:[#allocation2 + $0x58] sm:$0xff]
        %v5527 = vld [vmem:[#allocation2 + $0x60] sm:$0xff]
        %v5528 = vld [vmem:[#allocation2 + $0x68] sm:$0xff]
        %v5529 = vld [vmem:[#allocation2 + $0x70] sm:$0xff]
        %v5530 = vld [vmem:[#allocation2 + $0x78] sm:$0xff]
        %v5531 = vld [vmem:[#allocation2 + $0x80] sm:$0xff]
        %v5532 = vld [vmem:[#allocation2 + $0x88] sm:$0xff]
        %v5533 = vld [vmem:[#allocation2 + $0x90] sm:$0xff]
        %v5534 = vld [vmem:[#allocation2 + $0x98] sm:$0xff]
        %v5535 = vld [vmem:[#allocation2 + $0xa0] sm:$0xff]
        %v5536 = vld [vmem:[#allocation2 + $0xa8] sm:$0xff]
        %v5537 = vld [vmem:[#allocation2 + $0xb0] sm:$0xff]
        %v5538 = vld [vmem:[#allocation2 + $0xb8] sm:$0xff]
        %v5539 = vld [vmem:[#allocation2 + $0xc0] sm:$0xff]
        %v5540 = vld [vmem:[#allocation2 + $0xc8] sm:$0xff]
        %v5541 = vld [vmem:[#allocation2 + $0xd0] sm:$0xff]
        %v5542 = vld [vmem:[#allocation2 + $0xd8] sm:$0xff]
        %v5543 = vld [vmem:[#allocation2 + $0xe0] sm:$0xff]
        %v5544 = vld [vmem:[#allocation2 + $0xe8] sm:$0xff]
        %v5545 = vld [vmem:[#allocation2 + $0xf0] sm:$0xff]
        %v5546 = vld [vmem:[#allocation2 + $0xf8] sm:$0xff]
        %v5547 = vld [vmem:[#allocation2 + $0x100] sm:$0xff]
        %v5548 = vld [vmem:[#allocation2 + $0x108] sm:$0xff]
        %v5549 = vld [vmem:[#allocation2 + $0x110] sm:$0xff]
        %v5550 = vld [vmem:[#allocation2 + $0x118] sm:$0xff]
        %v5551 = vld [vmem:[%s298] sm:$0x1]
        %v5553 = vlaneseq
        %v5554 = vshrl.u32 %v5553, 7
        %v5555 = vsub.s32 0, %v5554
        %v5556 = vrot.slane %v5551, %v5555
        %v5558 = vmul.f32 %v5515, %v5556
        %v5559 = vmul.f32 %v5516, %v5556
        %v5560 = vmul.f32 %v5517, %v5556
        %v5561 = vmul.f32 %v5518, %v5556
        %v5562 = vmul.f32 %v5519, %v5556
        %v5563 = vmul.f32 %v5520, %v5556
        %v5564 = vmul.f32 %v5521, %v5556
        %v5565 = vmul.f32 %v5522, %v5556
        %v5566 = vmul.f32 %v5523, %v5556
        %v5567 = vmul.f32 %v5524, %v5556
        %v5568 = vmul.f32 %v5525, %v5556
        %v5569 = vmul.f32 %v5526, %v5556
        %v5570 = vmul.f32 %v5527, %v5556
        %v5571 = vmul.f32 %v5528, %v5556
        %v5572 = vmul.f32 %v5529, %v5556
        %v5573 = vmul.f32 %v5530, %v5556
        %v5574 = vmul.f32 %v5531, %v5556
        %v5575 = vmul.f32 %v5532, %v5556
        %v5576 = vmul.f32 %v5533, %v5556
        %v5577 = vmul.f32 %v5534, %v5556
        %v5578 = vmul.f32 %v5535, %v5556
        %v5579 = vmul.f32 %v5536, %v5556
        %v5580 = vmul.f32 %v5537, %v5556
        %v5581 = vmul.f32 %v5538, %v5556
        %v5582 = vmul.f32 %v5539, %v5556
        %v5583 = vmul.f32 %v5540, %v5556
        %v5584 = vmul.f32 %v5541, %v5556
        %v5585 = vmul.f32 %v5542, %v5556
        %v5586 = vmul.f32 %v5543, %v5556
        %v5587 = vmul.f32 %v5544, %v5556
        %v5588 = vmul.f32 %v5545, %v5556
        %v5589 = vmul.f32 %v5546, %v5556
        %v5590 = vmul.f32 %v5547, %v5556
        %v5591 = vmul.f32 %v5548, %v5556
        %v5592 = vmul.f32 %v5549, %v5556
        %v5593 = vmul.f32 %v5550, %v5556
        %v5594 = vld [vmem:[%s301] sm:$0x1]
        %v5596 = vlaneseq
        %v5597 = vshrl.u32 %v5596, 7
        %v5598 = vsub.s32 0, %v5597
        %v5599 = vrot.slane %v5594, %v5598
        %v5601 = vadd.f32 %v5558, %v5599
        %v5602 = vadd.f32 %v5559, %v5599
        %v5603 = vadd.f32 %v5560, %v5599
        %v5604 = vadd.f32 %v5561, %v5599
        %v5605 = vadd.f32 %v5562, %v5599
        %v5606 = vadd.f32 %v5563, %v5599
        %v5607 = vadd.f32 %v5564, %v5599
        %v5608 = vadd.f32 %v5565, %v5599
        %v5609 = vadd.f32 %v5566, %v5599
        %v5610 = vadd.f32 %v5567, %v5599
        %v5611 = vadd.f32 %v5568, %v5599
        %v5612 = vadd.f32 %v5569, %v5599
        %v5613 = vadd.f32 %v5570, %v5599
        %v5614 = vadd.f32 %v5571, %v5599
        %v5615 = vadd.f32 %v5572, %v5599
        %v5616 = vadd.f32 %v5573, %v5599
        %v5617 = vadd.f32 %v5574, %v5599
        %v5618 = vadd.f32 %v5575, %v5599
        %v5619 = vadd.f32 %v5576, %v5599
        %v5620 = vadd.f32 %v5577, %v5599
        %v5621 = vadd.f32 %v5578, %v5599
        %v5622 = vadd.f32 %v5579, %v5599
        %v5623 = vadd.f32 %v5580, %v5599
        %v5624 = vadd.f32 %v5581, %v5599
        %v5625 = vadd.f32 %v5582, %v5599
        %v5626 = vadd.f32 %v5583, %v5599
        %v5627 = vadd.f32 %v5584, %v5599
        %v5628 = vadd.f32 %v5585, %v5599
        %v5629 = vadd.f32 %v5586, %v5599
        %v5630 = vadd.f32 %v5587, %v5599
        %v5631 = vadd.f32 %v5588, %v5599
        %v5632 = vadd.f32 %v5589, %v5599
        %v5633 = vadd.f32 %v5590, %v5599
        %v5634 = vadd.f32 %v5591, %v5599
        %v5635 = vadd.f32 %v5592, %v5599
        %v5636 = vadd.f32 %v5593, %v5599
        %v5637 = vmax.f32 %v5601, 0.0
        %v5638 = vmax.f32 %v5602, 0.0
        %v5639 = vmax.f32 %v5603, 0.0
        %v5640 = vmax.f32 %v5604, 0.0
        %v5641 = vmax.f32 %v5605, 0.0
        %v5642 = vmax.f32 %v5606, 0.0
        %v5643 = vmax.f32 %v5607, 0.0
        %v5644 = vmax.f32 %v5608, 0.0
        %v5645 = vmax.f32 %v5609, 0.0
        %v5646 = vmax.f32 %v5610, 0.0
        %v5647 = vmax.f32 %v5611, 0.0
        %v5648 = vmax.f32 %v5612, 0.0
        %v5649 = vmax.f32 %v5613, 0.0
        %v5650 = vmax.f32 %v5614, 0.0
        %v5651 = vmax.f32 %v5615, 0.0
        %v5652 = vmax.f32 %v5616, 0.0
        %v5653 = vmax.f32 %v5617, 0.0
        %v5654 = vmax.f32 %v5618, 0.0
        %v5655 = vmax.f32 %v5619, 0.0
        %v5656 = vmax.f32 %v5620, 0.0
        %v5657 = vmax.f32 %v5621, 0.0
        %v5658 = vmax.f32 %v5622, 0.0
        %v5659 = vmax.f32 %v5623, 0.0
        %v5660 = vmax.f32 %v5624, 0.0
        %v5661 = vmax.f32 %v5625, 0.0
        %v5662 = vmax.f32 %v5626, 0.0
        %v5663 = vmax.f32 %v5627, 0.0
        %v5664 = vmax.f32 %v5628, 0.0
        %v5665 = vmax.f32 %v5629, 0.0
        %v5666 = vmax.f32 %v5630, 0.0
        %v5667 = vmax.f32 %v5631, 0.0
        %v5668 = vmax.f32 %v5632, 0.0
        %v5669 = vmax.f32 %v5633, 0.0
        %v5670 = vmax.f32 %v5634, 0.0
        %v5671 = vmax.f32 %v5635, 0.0
        %v5672 = vmax.f32 %v5636, 0.0
        %5673 = vst [vmem:[%s313] sm:$0xff] %v5637
        %5674 = vst [vmem:[%s313 + $0x8] sm:$0xff] %v5638
        %5675 = vst [vmem:[%s313 + $0x10] sm:$0xff] %v5639
        %5676 = vst [vmem:[%s313 + $0x18] sm:$0xff] %v5640
        %5677 = vst [vmem:[%s313 + $0x20] sm:$0xff] %v5641
        %5678 = vst [vmem:[%s313 + $0x28] sm:$0xff] %v5642
        %5679 = vst [vmem:[%s313 + $0x30] sm:$0xff] %v5643
        %5680 = vst [vmem:[%s313 + $0x38] sm:$0xff] %v5644
        %5681 = vst [vmem:[%s313 + $0x40] sm:$0xff] %v5645
        %5682 = vst [vmem:[%s313 + $0x48] sm:$0xff] %v5646
        %5683 = vst [vmem:[%s313 + $0x50] sm:$0xff] %v5647
        %5684 = vst [vmem:[%s313 + $0x58] sm:$0xff] %v5648
        %5685 = vst [vmem:[%s313 + $0x60] sm:$0xff] %v5649
        %5686 = vst [vmem:[%s313 + $0x68] sm:$0xff] %v5650
        %5687 = vst [vmem:[%s313 + $0x70] sm:$0xff] %v5651
        %5688 = vst [vmem:[%s313 + $0x78] sm:$0xff] %v5652
        %5689 = vst [vmem:[%s313 + $0x80] sm:$0xff] %v5653
        %5690 = vst [vmem:[%s313 + $0x88] sm:$0xff] %v5654
        %5691 = vst [vmem:[%s313 + $0x90] sm:$0xff] %v5655
        %5692 = vst [vmem:[%s313 + $0x98] sm:$0xff] %v5656
        %5693 = vst [vmem:[%s313 + $0xa0] sm:$0xff] %v5657
        %5694 = vst [vmem:[%s313 + $0xa8] sm:$0xff] %v5658
        %5695 = vst [vmem:[%s313 + $0xb0] sm:$0xff] %v5659
        %5696 = vst [vmem:[%s313 + $0xb8] sm:$0xff] %v5660
        %5697 = vst [vmem:[%s313 + $0xc0] sm:$0xff] %v5661
        %5698 = vst [vmem:[%s313 + $0xc8] sm:$0xff] %v5662
        %5699 = vst [vmem:[%s313 + $0xd0] sm:$0xff] %v5663
        %5700 = vst [vmem:[%s313 + $0xd8] sm:$0xff] %v5664
        %5701 = vst [vmem:[%s313 + $0xe0] sm:$0xff] %v5665
        %5702 = vst [vmem:[%s313 + $0xe8] sm:$0xff] %v5666
        %5703 = vst [vmem:[%s313 + $0xf0] sm:$0xff] %v5667
        %5704 = vst [vmem:[%s313 + $0xf8] sm:$0xff] %v5668
        %5705 = vst [vmem:[%s313 + $0x100] sm:$0xff] %v5669
        %5706 = vst [vmem:[%s313 + $0x108] sm:$0xff] %v5670
        %5707 = vst [vmem:[%s313 + $0x110] sm:$0xff] %v5671
        %5708 = vst [vmem:[%s313 + $0x118] sm:$0xff] %v5672
      $region44: #{psp_forward.3} parent=35 // pred_fallthru
        _
      %s5709 = smul.u32 36, %s22
      %p5710 = scmp.lt.s32.totalorder %s21, 1
      %s5711 = scalar_select %p5710, %s21, 1
      %p5712 = scmp.lt.s32.totalorder %s5709, 35
      %s5713 = scalar_select %p5712, %s5709, 35
      %p5714 = scmp.lt.s32.totalorder %s23, 0
      %s5715 = scalar_select %p5714, %s23, 0
      %s5716 = sadd.s32 %s5715, %s5713
      %s5717 = smul.addr %s5711, 36
      %s5718 = sadd.s32 %s5716, %s5717
      %s5719 = smul.addr %s5718, 8
      %s5720 = scalar_lea.vmem %s4, %s5719
      // Predicated region
      $region45: #{psp_forward.3} parent=35 // pred_check
        %p5721 = pneg %p171
      $region46: #{psp_forward.3} parent=35 // pred_check_branch
        %5723 = sbr.rel (%p5721) target = $region48
      $region47: #{psp_forward.3} parent=35 // pred_region
        %s5724 = smul.u32 36, %s22
      $region48: #{psp_forward.3} parent=35 // pred_fallthru
        _
    $region36: #{psp_forward.3} parent=5 // pred_fallthru
      _
    %p5725 = scmp.le.s32.totalorder 2, %s10
    // Predicated region
    $region49: #{psp_forward.3} parent=5 // pred_check
      %p5726 = pneg %p5725
    $region50: #{psp_forward.3} parent=5 // pred_check_branch
      %5728 = sbr.rel (%p5726) target = $region52
    $region51: #{psp_forward.3} parent=5 // pred_region
      %s5729 = ssub.s32 %s10, 2
      // Predicated region
      $region53: #{psp_forward.3} parent=51 // pred_check
        %p5730 = pneg %p177
      $region54: #{psp_forward.3} parent=51 // pred_check_branch
        %5732 = sbr.rel (%p5730) target = $region56
      $region55: #{psp_forward.3} parent=51 // pred_region
        %s5733 = smul.u32 36, %s26
        %p5734 = scmp.lt.s32.totalorder %s25, 1
        %s5735 = scalar_select %p5734, %s25, 1
        %p5736 = scmp.lt.s32.totalorder %s5733, 35
        %s5737 = scalar_select %p5736, %s5733, 35
        %p5738 = scmp.lt.s32.totalorder %s27, 0
        %s5739 = scalar_select %p5738, %s27, 0
        %s5740 = sadd.s32 %s5739, %s5737
        %s5741 = smul.addr %s5735, 36
        %s5742 = sadd.s32 %s5740, %s5741
        %s5743 = smul.addr %s5742, 8
        %s5744 = scalar_lea.vmem %s4, %s5743
      $region56: #{psp_forward.3} parent=51 // pred_fallthru
        _
    $region52: #{psp_forward.3} parent=5 // pred_fallthru
      _
  $region6: #{psp_forward.3} parent=0 // loop_footer
    %s14 = sadd.s32 1, %s10
  $region7: #{psp_forward.3} parent=0 // loop_footer_branch
    %9 = sbr.rel target = $region3
  $region8: #{psp_forward.3} parent=0 // loop_exit
    _

</llo_original>
